<compile_context>
chip_gen: v5e
topology: v5e:2x2
jax: 0.10.0
libtpu: 0.0.40
codegen_flags: <defaults>
</compile_context>

<pallas_src>
import numpy as np

import jax
import jax.numpy as jnp
from jax.experimental import pallas as pl
from jax.experimental.pallas import tpu as pltpu


# ---------------------------------------------------------------------------
# Host-side (numpy, executed once) packing of weights + layer geometry into the
# matrices the fused kernel consumes.
# ---------------------------------------------------------------------------
def _conv_constants(w, b, stride, pad, h_in, h_out):
    """Conv2d.  w: (C_out, C_in, k, k), b: (C_out,).  Square spatial dims."""
    w = np.asarray(w, np.float32)
    b = np.asarray(b, np.float32)
    c_out, c_in, k, _ = w.shape
    w_in, w_out = h_in, h_out
    p_mats = np.zeros((k, h_out, h_in), np.float32)
    for kh in range(k):
        for oh in range(h_out):
            h = stride * oh + kh - pad
            if 0 <= h < h_in:
                p_mats[kh, oh, h] = 1.0
    w_mats = np.zeros((k, w_in * c_in, w_out * c_out), np.float32)
    for kh in range(k):
        for wi in range(w_in):
            for ow in range(w_out):
                kw = wi - stride * ow + pad
                if 0 <= kw < k:
                    w_mats[kh, wi * c_in:(wi + 1) * c_in,
                           ow * c_out:(ow + 1) * c_out] = w[:, :, kh, kw].T
    b_row = np.tile(b, w_out).reshape(1, w_out * c_out)
    return p_mats, w_mats, b_row


def _tconv_constants(w, b, stride, pad, h_in, h_out):
    """ConvTranspose2d.  w: (C_in, C_out, k, k), b: (C_out,).
    Contribution x[ih, iw, ci]*w[ci, co, kh, kw] lands at
    oh = s*ih + kh - p, ow = s*iw + kw - p  (sub-pixel form, no dilation)."""
    w = np.asarray(w, np.float32)
    b = np.asarray(b, np.float32)
    c_in, c_out, k, _ = w.shape
    w_in, w_out = h_in, h_out
    p_mats = np.zeros((k, h_out, h_in), np.float32)
    for kh in range(k):
        for ih in range(h_in):
            oh = stride * ih + kh - pad
            if 0 <= oh < h_out:
                p_mats[kh, oh, ih] = 1.0
    w_mats = np.zeros((k, w_in * c_in, w_out * c_out), np.float32)
    for kh in range(k):
        for iw in range(w_in):
            for ow in range(w_out):
                kw = ow - stride * iw + pad
                if 0 <= kw < k:
                    w_mats[kh, iw * c_in:(iw + 1) * c_in,
                           ow * c_out:(ow + 1) * c_out] = w[:, :, kh, kw]
    b_row = np.tile(b, w_out).reshape(1, w_out * c_out)
    return p_mats, w_mats, b_row


def _pool_constants(k, stride, h_in, h_out, c):
    """MaxPool2d(k, stride), VALID.  0/1 selections on rows and (w, c) lanes."""
    p_mats = np.zeros((k, h_out, h_in), np.float32)
    q_mats = np.zeros((k, h_in * c, h_out * c), np.float32)
    for kh in range(k):
        for oh in range(h_out):
            h = stride * oh + kh
            if 0 <= h < h_in:
                p_mats[kh, oh, h] = 1.0
    for kw in range(k):
        for ow in range(h_out):
            w = stride * ow + kw
            if 0 <= w < h_in:
                for ch in range(c):
                    q_mats[kw, w * c + ch, ow * c + ch] = 1.0
    return p_mats, q_mats


def pack_constants(params):
    """Repack PyTorch-layout weights into the kernel's matrices (host, once)."""
    c = []
    c += list(_conv_constants(params["c1_w"], params["c1_b"], 3, 1, 28, 10))
    c += list(_pool_constants(2, 2, 10, 5, 16))
    c += list(_conv_constants(params["c2_w"], params["c2_b"], 2, 1, 5, 3))
    c += list(_pool_constants(2, 1, 3, 2, 8))
    c += list(_tconv_constants(params["t1_w"], params["t1_b"], 2, 0, 2, 5))
    c += list(_tconv_constants(params["t2_w"], params["t2_b"], 3, 1, 5, 15))
    c += list(_tconv_constants(params["t3_w"], params["t3_b"], 2, 1, 15, 28))
    return tuple(jnp.asarray(a) for a in c)


# ---------------------------------------------------------------------------
# The single fused Pallas kernel.
# ---------------------------------------------------------------------------
def _conv_layer(a, p_ref, w_ref, b_ref, act):
    k = p_ref.shape[0]
    acc = None
    for kh in range(k):
        rows = jnp.dot(p_ref[kh], a, preferred_element_type=jnp.float32)
        term = jnp.dot(rows, w_ref[kh], preferred_element_type=jnp.float32)
        acc = term if acc is None else acc + term
    acc = acc + b_ref[...]
    if act == "relu":
        return jnp.maximum(acc, 0.0)
    # Sigmoid: exp rides the EUP; exact divide keeps the result inside [0, 1].
    return 1.0 / (1.0 + jnp.exp(-acc))


def _pool_layer(a, p_ref, q_ref):
    k = p_ref.shape[0]
    out = None
    for kh in range(k):
        rows = jnp.dot(p_ref[kh], a, preferred_element_type=jnp.float32)
        for kw in range(k):
            g = jnp.dot(rows, q_ref[kw], preferred_element_type=jnp.float32)
            out = g if out is None else jnp.maximum(out, g)
    return out


def _fused_autoencoder_kernel(
    x_ref,
    c1_p, c1_w, c1_b, q1_p, q1_q,
    c2_p, c2_w, c2_b, q2_p, q2_q,
    t1_p, t1_w, t1_b,
    t2_p, t2_w, t2_b,
    t3_p, t3_w, t3_b,
    out_ref,
):
    a = x_ref[0]                                      # (28, 28)   C_in == 1
    a = _conv_layer(a, c1_p, c1_w, c1_b, "relu")      # (10, 10*16)
    a = _pool_layer(a, q1_p, q1_q)                    # (5,  5*16)
    a = _conv_layer(a, c2_p, c2_w, c2_b, "relu")      # (3,  3*8)
    a = _pool_layer(a, q2_p, q2_q)                    # (2,  2*8)
    a = _conv_layer(a, t1_p, t1_w, t1_b, "relu")      # (5,  5*16)
    a = _conv_layer(a, t2_p, t2_w, t2_b, "relu")      # (15, 15*8)
    a = _conv_layer(a, t3_p, t3_w, t3_b, "sigmoid")   # (28, 28)
    out_ref[0, :, :] = a


@jax.jit
def encoder_model_forward(consts, x):
    b, _, h, w = x.shape
    x3 = x.reshape(b, h, w)                           # drop the C_in == 1 axis

    def const_spec(arr):
        zeros = (0,) * arr.ndim
        return pl.BlockSpec(arr.shape, lambda i, _z=zeros: _z)

    grid_spec = pltpu.PrefetchScalarGridSpec(
        num_scalar_prefetch=0,
        grid=(b,),                                    # one batch element / step
        in_specs=[pl.BlockSpec((1, h, w), lambda i: (i, 0, 0))]
        + [const_spec(arr) for arr in consts],
        out_specs=pl.BlockSpec((1, h, w), lambda i: (i, 0, 0)),
    )
    out = pl.pallas_call(
        _fused_autoencoder_kernel,
        out_shape=jax.ShapeDtypeStruct((b, h, w), jnp.float32),
        grid_spec=grid_spec,
        compiler_params=pltpu.CompilerParams(
            dimension_semantics=("parallel",)),       # v7x: batch across 2 TCs
    )(x3, *consts)
    return out.reshape(b, 1, h, w)


# ---------------------------------------------------------------------------
# Parameters (PyTorch default init) and a pure-JAX reference for validation.
# ---------------------------------------------------------------------------
def init_params(key):
    def u(k, shape, bound):
        return jax.random.uniform(k, shape, jnp.float32, -bound, bound)

    def conv_init(k, c_out, c_in, ks):
        kw, kb = jax.random.split(k)
        bound = 1.0 / float(np.sqrt(c_in * ks * ks))
        return u(kw, (c_out, c_in, ks, ks), bound), u(kb, (c_out,), bound)

    def tconv_init(k, c_in, c_out, ks):
        # PyTorch fan_in for ConvTranspose2d weight (C_in, C_out, k, k) is C_out*k*k.
        kw, kb = jax.random.split(k)
        bound = 1.0 / float(np.sqrt(c_out * ks * ks))
        return u(kw, (c_in, c_out, ks, ks), bound), u(kb, (c_out,), bound)

    k1, k2, k3, k4, k5 = jax.random.split(key, 5)
    p = {}
    p["c1_w"], p["c1_b"] = conv_init(k1, 16, 1, 3)
    p["c2_w"], p["c2_b"] = conv_init(k2, 8, 16, 3)
    p["t1_w"], p["t1_b"] = tconv_init(k3, 8, 16, 3)
    p["t2_w"], p["t2_b"] = tconv_init(k4, 16, 8, 5)
    p["t3_w"], p["t3_b"] = tconv_init(k5, 8, 1, 2)
    return p


def _ref_forward(params, x):
    """Pure-JAX reference of the original PyTorch module (for validation)."""
    dn = ("NCHW", "OIHW", "NCHW")
    hi = jax.lax.Precision.HIGHEST

    def conv(h, w, b, s, p):
        y = jax.lax.conv_general_dilated(h, w, (s, s), [(p, p), (p, p)],
                                         dimension_numbers=dn, precision=hi)
        return y + b.reshape(1, -1, 1, 1)

    def tconv(h, w, b, s, p):
        k = w.shape[2]
        w_conv = jnp.flip(w, (2, 3)).transpose(1, 0, 2, 3)
        y = jax.lax.conv_general_dilated(h, w_conv, (1, 1),
                                         [(k - 1 - p, k - 1 - p)] * 2,
                                         lhs_dilation=(s, s),
                                         dimension_numbers=dn, precision=hi)
        return y + b.reshape(1, -1, 1, 1)

    def pool(h, k, s):
        return jax.lax.reduce_window(h, -jnp.inf, jax.lax.max,
                                     (1, 1, k, k), (1, 1, s, s), "VALID")

    h = jax.nn.relu(conv(x, params["c1_w"], params["c1_b"], 3, 1))
    h = pool(h, 2, 2)
    h = jax.nn.relu(conv(h, params["c2_w"], params["c2_b"], 2, 1))
    h = pool(h, 2, 1)
    h = jax.nn.relu(tconv(h, params["t1_w"], params["t1_b"], 2, 0))
    h = jax.nn.relu(tconv(h, params["t2_w"], params["t2_b"], 3, 1))
    h = jax.nn.sigmoid(tconv(h, params["t3_w"], params["t3_b"], 2, 1))
    return h


if __name__ == "__main__":
    key = jax.random.PRNGKey(0)
    pkey, xkey = jax.random.split(key)
    params = init_params(pkey)
    # MNIST-style input the module was designed for: batch=2, 1 channel, 28x28.
    x = jax.random.uniform(xkey, (2, 1, 28, 28), jnp.float32)

    # One-time host-side weight repacking; the forward is a single fused kernel.
    consts = pack_constants({k: np.asarray(v) for k, v in params.items()})

    out = jax.block_until_ready(encoder_model_forward(consts, x))

    assert out.shape == (2, 1, 28, 28), out.shape
    assert bool(jnp.all(jnp.isfinite(out)))
    assert bool(jnp.all((out >= 0.0) & (out <= 1.0)))  # sigmoid output range

    # Validate against the pure-JAX reference of the PyTorch module.
    ref = jax.block_until_ready(_ref_forward(params, x))
    assert float(jnp.max(jnp.abs(out - ref))) < 1e-2

    print("KERNEL_OK")
</pallas_src>

<mosaic_0001>
module attributes {stable_mosaic.version = 11 : i64} {
  func.func @_fused_autoencoder_kernel(%arg0: i32, %arg1: memref<1x28x28xf32, #tpu.memory_space<vmem>>, %arg2: memref<3x10x28xf32, #tpu.memory_space<vmem>>, %arg3: memref<3x28x160xf32, #tpu.memory_space<vmem>>, %arg4: memref<1x160xf32, #tpu.memory_space<vmem>>, %arg5: memref<2x5x10xf32, #tpu.memory_space<vmem>>, %arg6: memref<2x160x80xf32, #tpu.memory_space<vmem>>, %arg7: memref<3x3x5xf32, #tpu.memory_space<vmem>>, %arg8: memref<3x80x24xf32, #tpu.memory_space<vmem>>, %arg9: memref<1x24xf32, #tpu.memory_space<vmem>>, %arg10: memref<2x2x3xf32, #tpu.memory_space<vmem>>, %arg11: memref<2x24x16xf32, #tpu.memory_space<vmem>>, %arg12: memref<3x5x2xf32, #tpu.memory_space<vmem>>, %arg13: memref<3x16x80xf32, #tpu.memory_space<vmem>>, %arg14: memref<1x80xf32, #tpu.memory_space<vmem>>, %arg15: memref<5x15x5xf32, #tpu.memory_space<vmem>>, %arg16: memref<5x80x120xf32, #tpu.memory_space<vmem>>, %arg17: memref<1x120xf32, #tpu.memory_space<vmem>>, %arg18: memref<2x28x15xf32, #tpu.memory_space<vmem>>, %arg19: memref<2x120x28xf32, #tpu.memory_space<vmem>>, %arg20: memref<1x28xf32, #tpu.memory_space<vmem>>, %arg21: memref<1x28x28xf32, #tpu.memory_space<vmem>>) attributes {dimension_semantics = [#tpu.dimension_semantics<parallel>], iteration_bounds = array<i64: 2>, scalar_prefetch = 0 : i64, scratch_operands = 0 : i64, tpu.core_type = #tpu.core_type<tc>, window_params = [{transform_indices = @transform_0, window_bounds = array<i64: 1, 28, 28>}, {pipeline_mode = #tpu.pipeline_mode<synchronous>, transform_indices = @transform_1, window_bounds = array<i64: 3, 10, 28>}, {pipeline_mode = #tpu.pipeline_mode<synchronous>, transform_indices = @transform_2, window_bounds = array<i64: 3, 28, 160>}, {pipeline_mode = #tpu.pipeline_mode<synchronous>, transform_indices = @transform_3, window_bounds = array<i64: 1, 160>}, {pipeline_mode = #tpu.pipeline_mode<synchronous>, transform_indices = @transform_4, window_bounds = array<i64: 2, 5, 10>}, {pipeline_mode = #tpu.pipeline_mode<synchronous>, transform_indices = @transform_5, window_bounds = array<i64: 2, 160, 80>}, {pipeline_mode = #tpu.pipeline_mode<synchronous>, transform_indices = @transform_6, window_bounds = array<i64: 3, 3, 5>}, {pipeline_mode = #tpu.pipeline_mode<synchronous>, transform_indices = @transform_7, window_bounds = array<i64: 3, 80, 24>}, {pipeline_mode = #tpu.pipeline_mode<synchronous>, transform_indices = @transform_8, window_bounds = array<i64: 1, 24>}, {pipeline_mode = #tpu.pipeline_mode<synchronous>, transform_indices = @transform_9, window_bounds = array<i64: 2, 2, 3>}, {pipeline_mode = #tpu.pipeline_mode<synchronous>, transform_indices = @transform_10, window_bounds = array<i64: 2, 24, 16>}, {pipeline_mode = #tpu.pipeline_mode<synchronous>, transform_indices = @transform_11, window_bounds = array<i64: 3, 5, 2>}, {pipeline_mode = #tpu.pipeline_mode<synchronous>, transform_indices = @transform_12, window_bounds = array<i64: 3, 16, 80>}, {pipeline_mode = #tpu.pipeline_mode<synchronous>, transform_indices = @transform_13, window_bounds = array<i64: 1, 80>}, {pipeline_mode = #tpu.pipeline_mode<synchronous>, transform_indices = @transform_14, window_bounds = array<i64: 5, 15, 5>}, {pipeline_mode = #tpu.pipeline_mode<synchronous>, transform_indices = @transform_15, window_bounds = array<i64: 5, 80, 120>}, {pipeline_mode = #tpu.pipeline_mode<synchronous>, transform_indices = @transform_16, window_bounds = array<i64: 1, 120>}, {pipeline_mode = #tpu.pipeline_mode<synchronous>, transform_indices = @transform_17, window_bounds = array<i64: 2, 28, 15>}, {pipeline_mode = #tpu.pipeline_mode<synchronous>, transform_indices = @transform_18, window_bounds = array<i64: 2, 120, 28>}, {pipeline_mode = #tpu.pipeline_mode<synchronous>, transform_indices = @transform_19, window_bounds = array<i64: 1, 28>}, {transform_indices = @transform_20, window_bounds = array<i64: 1, 28, 28>}]} {
    %c0 = arith.constant 0 : index
    %c0_0 = arith.constant 0 : index
    %c0_1 = arith.constant 0 : index
    %0 = vector.load %arg1[%c0, %c0_0, %c0_1] : memref<1x28x28xf32, #tpu.memory_space<vmem>>, vector<1x28x28xf32>
    %1 = vector.shape_cast %0 : vector<1x28x28xf32> to vector<28x28xf32>
    %c0_2 = arith.constant 0 : index
    %c0_3 = arith.constant 0 : index
    %c0_4 = arith.constant 0 : index
    %2 = vector.load %arg2[%c0_2, %c0_3, %c0_4] : memref<3x10x28xf32, #tpu.memory_space<vmem>>, vector<1x10x28xf32>
    %3 = vector.shape_cast %2 : vector<1x10x28xf32> to vector<10x28xf32>
    %cst = arith.constant dense<0.000000e+00> : vector<10x28xf32>
    %4 = tpu.matmul %3, %1, %cst {dimension_numbers = #tpu.dot_dimension_numbers<[1], [0], [0], [1], [0, 0, 1, 1], [], []>} : vector<10x28xf32>, vector<28x28xf32>, vector<10x28xf32> -> vector<10x28xf32>
    %c0_5 = arith.constant 0 : index
    %c0_6 = arith.constant 0 : index
    %c0_7 = arith.constant 0 : index
    %5 = vector.load %arg3[%c0_5, %c0_6, %c0_7] : memref<3x28x160xf32, #tpu.memory_space<vmem>>, vector<1x28x160xf32>
    %6 = vector.shape_cast %5 : vector<1x28x160xf32> to vector<28x160xf32>
    %cst_8 = arith.constant dense<0.000000e+00> : vector<10x160xf32>
    %7 = tpu.matmul %4, %6, %cst_8 {dimension_numbers = #tpu.dot_dimension_numbers<[1], [0], [0], [1], [0, 0, 1, 1], [], []>} : vector<10x28xf32>, vector<28x160xf32>, vector<10x160xf32> -> vector<10x160xf32>
    %c1 = arith.constant 1 : index
    %c0_9 = arith.constant 0 : index
    %c0_10 = arith.constant 0 : index
    %8 = vector.load %arg2[%c1, %c0_9, %c0_10] : memref<3x10x28xf32, #tpu.memory_space<vmem>>, vector<1x10x28xf32>
    %9 = vector.shape_cast %8 : vector<1x10x28xf32> to vector<10x28xf32>
    %cst_11 = arith.constant dense<0.000000e+00> : vector<10x28xf32>
    %10 = tpu.matmul %9, %1, %cst_11 {dimension_numbers = #tpu.dot_dimension_numbers<[1], [0], [0], [1], [0, 0, 1, 1], [], []>} : vector<10x28xf32>, vector<28x28xf32>, vector<10x28xf32> -> vector<10x28xf32>
    %c1_12 = arith.constant 1 : index
    %c0_13 = arith.constant 0 : index
    %c0_14 = arith.constant 0 : index
    %11 = vector.load %arg3[%c1_12, %c0_13, %c0_14] : memref<3x28x160xf32, #tpu.memory_space<vmem>>, vector<1x28x160xf32>
    %12 = vector.shape_cast %11 : vector<1x28x160xf32> to vector<28x160xf32>
    %cst_15 = arith.constant dense<0.000000e+00> : vector<10x160xf32>
    %13 = tpu.matmul %10, %12, %cst_15 {dimension_numbers = #tpu.dot_dimension_numbers<[1], [0], [0], [1], [0, 0, 1, 1], [], []>} : vector<10x28xf32>, vector<28x160xf32>, vector<10x160xf32> -> vector<10x160xf32>
    %14 = arith.addf %7, %13 : vector<10x160xf32>
    %c2 = arith.constant 2 : index
    %c0_16 = arith.constant 0 : index
    %c0_17 = arith.constant 0 : index
    %15 = vector.load %arg2[%c2, %c0_16, %c0_17] : memref<3x10x28xf32, #tpu.memory_space<vmem>>, vector<1x10x28xf32>
    %16 = vector.shape_cast %15 : vector<1x10x28xf32> to vector<10x28xf32>
    %cst_18 = arith.constant dense<0.000000e+00> : vector<10x28xf32>
    %17 = tpu.matmul %16, %1, %cst_18 {dimension_numbers = #tpu.dot_dimension_numbers<[1], [0], [0], [1], [0, 0, 1, 1], [], []>} : vector<10x28xf32>, vector<28x28xf32>, vector<10x28xf32> -> vector<10x28xf32>
    %c2_19 = arith.constant 2 : index
    %c0_20 = arith.constant 0 : index
    %c0_21 = arith.constant 0 : index
    %18 = vector.load %arg3[%c2_19, %c0_20, %c0_21] : memref<3x28x160xf32, #tpu.memory_space<vmem>>, vector<1x28x160xf32>
    %19 = vector.shape_cast %18 : vector<1x28x160xf32> to vector<28x160xf32>
    %cst_22 = arith.constant dense<0.000000e+00> : vector<10x160xf32>
    %20 = tpu.matmul %17, %19, %cst_22 {dimension_numbers = #tpu.dot_dimension_numbers<[1], [0], [0], [1], [0, 0, 1, 1], [], []>} : vector<10x28xf32>, vector<28x160xf32>, vector<10x160xf32> -> vector<10x160xf32>
    %21 = arith.addf %14, %20 : vector<10x160xf32>
    %c0_23 = arith.constant 0 : index
    %c0_24 = arith.constant 0 : index
    %22 = vector.load %arg4[%c0_23, %c0_24] : memref<1x160xf32, #tpu.memory_space<vmem>>, vector<1x160xf32>
    %23 = vector.broadcast %22 : vector<1x160xf32> to vector<10x160xf32>
    %24 = arith.addf %21, %23 : vector<10x160xf32>
    %cst_25 = arith.constant 0.000000e+00 : f32
    %25 = vector.broadcast %cst_25 : f32 to vector<10x160xf32>
    %26 = arith.maximumf %24, %25 : vector<10x160xf32>
    %c0_26 = arith.constant 0 : index
    %c0_27 = arith.constant 0 : index
    %c0_28 = arith.constant 0 : index
    %27 = vector.load %arg5[%c0_26, %c0_27, %c0_28] : memref<2x5x10xf32, #tpu.memory_space<vmem>>, vector<1x5x10xf32>
    %28 = vector.shape_cast %27 : vector<1x5x10xf32> to vector<5x10xf32>
    %cst_29 = arith.constant dense<0.000000e+00> : vector<5x160xf32>
    %29 = tpu.matmul %28, %26, %cst_29 {dimension_numbers = #tpu.dot_dimension_numbers<[1], [0], [0], [1], [0, 0, 1, 1], [], []>} : vector<5x10xf32>, vector<10x160xf32>, vector<5x160xf32> -> vector<5x160xf32>
    %c0_30 = arith.constant 0 : index
    %c0_31 = arith.constant 0 : index
    %c0_32 = arith.constant 0 : index
    %30 = vector.load %arg6[%c0_30, %c0_31, %c0_32] : memref<2x160x80xf32, #tpu.memory_space<vmem>>, vector<1x160x80xf32>
    %31 = vector.shape_cast %30 : vector<1x160x80xf32> to vector<160x80xf32>
    %cst_33 = arith.constant dense<0.000000e+00> : vector<5x80xf32>
    %32 = tpu.matmul %29, %31, %cst_33 {dimension_numbers = #tpu.dot_dimension_numbers<[1], [0], [0], [1], [0, 0, 1, 1], [], []>} : vector<5x160xf32>, vector<160x80xf32>, vector<5x80xf32> -> vector<5x80xf32>
    %c1_34 = arith.constant 1 : index
    %c0_35 = arith.constant 0 : index
    %c0_36 = arith.constant 0 : index
    %33 = vector.load %arg6[%c1_34, %c0_35, %c0_36] : memref<2x160x80xf32, #tpu.memory_space<vmem>>, vector<1x160x80xf32>
    %34 = vector.shape_cast %33 : vector<1x160x80xf32> to vector<160x80xf32>
    %cst_37 = arith.constant dense<0.000000e+00> : vector<5x80xf32>
    %35 = tpu.matmul %29, %34, %cst_37 {dimension_numbers = #tpu.dot_dimension_numbers<[1], [0], [0], [1], [0, 0, 1, 1], [], []>} : vector<5x160xf32>, vector<160x80xf32>, vector<5x80xf32> -> vector<5x80xf32>
    %36 = arith.maximumf %32, %35 : vector<5x80xf32>
    %c1_38 = arith.constant 1 : index
    %c0_39 = arith.constant 0 : index
    %c0_40 = arith.constant 0 : index
    %37 = vector.load %arg5[%c1_38, %c0_39, %c0_40] : memref<2x5x10xf32, #tpu.memory_space<vmem>>, vector<1x5x10xf32>
    %38 = vector.shape_cast %37 : vector<1x5x10xf32> to vector<5x10xf32>
    %cst_41 = arith.constant dense<0.000000e+00> : vector<5x160xf32>
    %39 = tpu.matmul %38, %26, %cst_41 {dimension_numbers = #tpu.dot_dimension_numbers<[1], [0], [0], [1], [0, 0, 1, 1], [], []>} : vector<5x10xf32>, vector<10x160xf32>, vector<5x160xf32> -> vector<5x160xf32>
    %c0_42 = arith.constant 0 : index
    %c0_43 = arith.constant 0 : index
    %c0_44 = arith.constant 0 : index
    %40 = vector.load %arg6[%c0_42, %c0_43, %c0_44] : memref<2x160x80xf32, #tpu.memory_space<vmem>>, vector<1x160x80xf32>
    %41 = vector.shape_cast %40 : vector<1x160x80xf32> to vector<160x80xf32>
    %cst_45 = arith.constant dense<0.000000e+00> : vector<5x80xf32>
    %42 = tpu.matmul %39, %41, %cst_45 {dimension_numbers = #tpu.dot_dimension_numbers<[1], [0], [0], [1], [0, 0, 1, 1], [], []>} : vector<5x160xf32>, vector<160x80xf32>, vector<5x80xf32> -> vector<5x80xf32>
    %43 = arith.maximumf %36, %42 : vector<5x80xf32>
    %c1_46 = arith.constant 1 : index
    %c0_47 = arith.constant 0 : index
    %c0_48 = arith.constant 0 : index
    %44 = vector.load %arg6[%c1_46, %c0_47, %c0_48] : memref<2x160x80xf32, #tpu.memory_space<vmem>>, vector<1x160x80xf32>
    %45 = vector.shape_cast %44 : vector<1x160x80xf32> to vector<160x80xf32>
    %cst_49 = arith.constant dense<0.000000e+00> : vector<5x80xf32>
    %46 = tpu.matmul %39, %45, %cst_49 {dimension_numbers = #tpu.dot_dimension_numbers<[1], [0], [0], [1], [0, 0, 1, 1], [], []>} : vector<5x160xf32>, vector<160x80xf32>, vector<5x80xf32> -> vector<5x80xf32>
    %47 = arith.maximumf %43, %46 : vector<5x80xf32>
    %c0_50 = arith.constant 0 : index
    %c0_51 = arith.constant 0 : index
    %c0_52 = arith.constant 0 : index
    %48 = vector.load %arg7[%c0_50, %c0_51, %c0_52] : memref<3x3x5xf32, #tpu.memory_space<vmem>>, vector<1x3x5xf32>
    %49 = vector.shape_cast %48 : vector<1x3x5xf32> to vector<3x5xf32>
    %cst_53 = arith.constant dense<0.000000e+00> : vector<3x80xf32>
    %50 = tpu.matmul %49, %47, %cst_53 {dimension_numbers = #tpu.dot_dimension_numbers<[1], [0], [0], [1], [0, 0, 1, 1], [], []>} : vector<3x5xf32>, vector<5x80xf32>, vector<3x80xf32> -> vector<3x80xf32>
    %c0_54 = arith.constant 0 : index
    %c0_55 = arith.constant 0 : index
    %c0_56 = arith.constant 0 : index
    %51 = vector.load %arg8[%c0_54, %c0_55, %c0_56] : memref<3x80x24xf32, #tpu.memory_space<vmem>>, vector<1x80x24xf32>
    %52 = vector.shape_cast %51 : vector<1x80x24xf32> to vector<80x24xf32>
    %cst_57 = arith.constant dense<0.000000e+00> : vector<3x24xf32>
    %53 = tpu.matmul %50, %52, %cst_57 {dimension_numbers = #tpu.dot_dimension_numbers<[1], [0], [0], [1], [0, 0, 1, 1], [], []>} : vector<3x80xf32>, vector<80x24xf32>, vector<3x24xf32> -> vector<3x24xf32>
    %c1_58 = arith.constant 1 : index
    %c0_59 = arith.constant 0 : index
    %c0_60 = arith.constant 0 : index
    %54 = vector.load %arg7[%c1_58, %c0_59, %c0_60] : memref<3x3x5xf32, #tpu.memory_space<vmem>>, vector<1x3x5xf32>
    %55 = vector.shape_cast %54 : vector<1x3x5xf32> to vector<3x5xf32>
    %cst_61 = arith.constant dense<0.000000e+00> : vector<3x80xf32>
    %56 = tpu.matmul %55, %47, %cst_61 {dimension_numbers = #tpu.dot_dimension_numbers<[1], [0], [0], [1], [0, 0, 1, 1], [], []>} : vector<3x5xf32>, vector<5x80xf32>, vector<3x80xf32> -> vector<3x80xf32>
    %c1_62 = arith.constant 1 : index
    %c0_63 = arith.constant 0 : index
    %c0_64 = arith.constant 0 : index
    %57 = vector.load %arg8[%c1_62, %c0_63, %c0_64] : memref<3x80x24xf32, #tpu.memory_space<vmem>>, vector<1x80x24xf32>
    %58 = vector.shape_cast %57 : vector<1x80x24xf32> to vector<80x24xf32>
    %cst_65 = arith.constant dense<0.000000e+00> : vector<3x24xf32>
    %59 = tpu.matmul %56, %58, %cst_65 {dimension_numbers = #tpu.dot_dimension_numbers<[1], [0], [0], [1], [0, 0, 1, 1], [], []>} : vector<3x80xf32>, vector<80x24xf32>, vector<3x24xf32> -> vector<3x24xf32>
    %60 = arith.addf %53, %59 : vector<3x24xf32>
    %c2_66 = arith.constant 2 : index
    %c0_67 = arith.constant 0 : index
    %c0_68 = arith.constant 0 : index
    %61 = vector.load %arg7[%c2_66, %c0_67, %c0_68] : memref<3x3x5xf32, #tpu.memory_space<vmem>>, vector<1x3x5xf32>
    %62 = vector.shape_cast %61 : vector<1x3x5xf32> to vector<3x5xf32>
    %cst_69 = arith.constant dense<0.000000e+00> : vector<3x80xf32>
    %63 = tpu.matmul %62, %47, %cst_69 {dimension_numbers = #tpu.dot_dimension_numbers<[1], [0], [0], [1], [0, 0, 1, 1], [], []>} : vector<3x5xf32>, vector<5x80xf32>, vector<3x80xf32> -> vector<3x80xf32>
    %c2_70 = arith.constant 2 : index
    %c0_71 = arith.constant 0 : index
    %c0_72 = arith.constant 0 : index
    %64 = vector.load %arg8[%c2_70, %c0_71, %c0_72] : memref<3x80x24xf32, #tpu.memory_space<vmem>>, vector<1x80x24xf32>
    %65 = vector.shape_cast %64 : vector<1x80x24xf32> to vector<80x24xf32>
    %cst_73 = arith.constant dense<0.000000e+00> : vector<3x24xf32>
    %66 = tpu.matmul %63, %65, %cst_73 {dimension_numbers = #tpu.dot_dimension_numbers<[1], [0], [0], [1], [0, 0, 1, 1], [], []>} : vector<3x80xf32>, vector<80x24xf32>, vector<3x24xf32> -> vector<3x24xf32>
    %67 = arith.addf %60, %66 : vector<3x24xf32>
    %c0_74 = arith.constant 0 : index
    %c0_75 = arith.constant 0 : index
    %68 = vector.load %arg9[%c0_74, %c0_75] : memref<1x24xf32, #tpu.memory_space<vmem>>, vector<1x24xf32>
    %69 = vector.broadcast %68 : vector<1x24xf32> to vector<3x24xf32>
    %70 = arith.addf %67, %69 : vector<3x24xf32>
    %cst_76 = arith.constant 0.000000e+00 : f32
    %71 = vector.broadcast %cst_76 : f32 to vector<3x24xf32>
    %72 = arith.maximumf %70, %71 : vector<3x24xf32>
    %c0_77 = arith.constant 0 : index
    %c0_78 = arith.constant 0 : index
    %c0_79 = arith.constant 0 : index
    %73 = vector.load %arg10[%c0_77, %c0_78, %c0_79] : memref<2x2x3xf32, #tpu.memory_space<vmem>>, vector<1x2x3xf32>
    %74 = vector.shape_cast %73 : vector<1x2x3xf32> to vector<2x3xf32>
    %cst_80 = arith.constant dense<0.000000e+00> : vector<2x24xf32>
    %75 = tpu.matmul %74, %72, %cst_80 {dimension_numbers = #tpu.dot_dimension_numbers<[1], [0], [0], [1], [0, 0, 1, 1], [], []>} : vector<2x3xf32>, vector<3x24xf32>, vector<2x24xf32> -> vector<2x24xf32>
    %c0_81 = arith.constant 0 : index
    %c0_82 = arith.constant 0 : index
    %c0_83 = arith.constant 0 : index
    %76 = vector.load %arg11[%c0_81, %c0_82, %c0_83] : memref<2x24x16xf32, #tpu.memory_space<vmem>>, vector<1x24x16xf32>
    %77 = vector.shape_cast %76 : vector<1x24x16xf32> to vector<24x16xf32>
    %cst_84 = arith.constant dense<0.000000e+00> : vector<2x16xf32>
    %78 = tpu.matmul %75, %77, %cst_84 {dimension_numbers = #tpu.dot_dimension_numbers<[1], [0], [0], [1], [0, 0, 1, 1], [], []>} : vector<2x24xf32>, vector<24x16xf32>, vector<2x16xf32> -> vector<2x16xf32>
    %c1_85 = arith.constant 1 : index
    %c0_86 = arith.constant 0 : index
    %c0_87 = arith.constant 0 : index
    %79 = vector.load %arg11[%c1_85, %c0_86, %c0_87] : memref<2x24x16xf32, #tpu.memory_space<vmem>>, vector<1x24x16xf32>
    %80 = vector.shape_cast %79 : vector<1x24x16xf32> to vector<24x16xf32>
    %cst_88 = arith.constant dense<0.000000e+00> : vector<2x16xf32>
    %81 = tpu.matmul %75, %80, %cst_88 {dimension_numbers = #tpu.dot_dimension_numbers<[1], [0], [0], [1], [0, 0, 1, 1], [], []>} : vector<2x24xf32>, vector<24x16xf32>, vector<2x16xf32> -> vector<2x16xf32>
    %82 = arith.maximumf %78, %81 : vector<2x16xf32>
    %c1_89 = arith.constant 1 : index
    %c0_90 = arith.constant 0 : index
    %c0_91 = arith.constant 0 : index
    %83 = vector.load %arg10[%c1_89, %c0_90, %c0_91] : memref<2x2x3xf32, #tpu.memory_space<vmem>>, vector<1x2x3xf32>
    %84 = vector.shape_cast %83 : vector<1x2x3xf32> to vector<2x3xf32>
    %cst_92 = arith.constant dense<0.000000e+00> : vector<2x24xf32>
    %85 = tpu.matmul %84, %72, %cst_92 {dimension_numbers = #tpu.dot_dimension_numbers<[1], [0], [0], [1], [0, 0, 1, 1], [], []>} : vector<2x3xf32>, vector<3x24xf32>, vector<2x24xf32> -> vector<2x24xf32>
    %c0_93 = arith.constant 0 : index
    %c0_94 = arith.constant 0 : index
    %c0_95 = arith.constant 0 : index
    %86 = vector.load %arg11[%c0_93, %c0_94, %c0_95] : memref<2x24x16xf32, #tpu.memory_space<vmem>>, vector<1x24x16xf32>
    %87 = vector.shape_cast %86 : vector<1x24x16xf32> to vector<24x16xf32>
    %cst_96 = arith.constant dense<0.000000e+00> : vector<2x16xf32>
    %88 = tpu.matmul %85, %87, %cst_96 {dimension_numbers = #tpu.dot_dimension_numbers<[1], [0], [0], [1], [0, 0, 1, 1], [], []>} : vector<2x24xf32>, vector<24x16xf32>, vector<2x16xf32> -> vector<2x16xf32>
    %89 = arith.maximumf %82, %88 : vector<2x16xf32>
    %c1_97 = arith.constant 1 : index
    %c0_98 = arith.constant 0 : index
    %c0_99 = arith.constant 0 : index
    %90 = vector.load %arg11[%c1_97, %c0_98, %c0_99] : memref<2x24x16xf32, #tpu.memory_space<vmem>>, vector<1x24x16xf32>
    %91 = vector.shape_cast %90 : vector<1x24x16xf32> to vector<24x16xf32>
    %cst_100 = arith.constant dense<0.000000e+00> : vector<2x16xf32>
    %92 = tpu.matmul %85, %91, %cst_100 {dimension_numbers = #tpu.dot_dimension_numbers<[1], [0], [0], [1], [0, 0, 1, 1], [], []>} : vector<2x24xf32>, vector<24x16xf32>, vector<2x16xf32> -> vector<2x16xf32>
    %93 = arith.maximumf %89, %92 : vector<2x16xf32>
    %c0_101 = arith.constant 0 : index
    %c0_102 = arith.constant 0 : index
    %c0_103 = arith.constant 0 : index
    %94 = vector.load %arg12[%c0_101, %c0_102, %c0_103] : memref<3x5x2xf32, #tpu.memory_space<vmem>>, vector<1x5x2xf32>
    %95 = vector.shape_cast %94 : vector<1x5x2xf32> to vector<5x2xf32>
    %cst_104 = arith.constant dense<0.000000e+00> : vector<5x16xf32>
    %96 = tpu.matmul %95, %93, %cst_104 {dimension_numbers = #tpu.dot_dimension_numbers<[1], [0], [0], [1], [0, 0, 1, 1], [], []>} : vector<5x2xf32>, vector<2x16xf32>, vector<5x16xf32> -> vector<5x16xf32>
    %c0_105 = arith.constant 0 : index
    %c0_106 = arith.constant 0 : index
    %c0_107 = arith.constant 0 : index
    %97 = vector.load %arg13[%c0_105, %c0_106, %c0_107] : memref<3x16x80xf32, #tpu.memory_space<vmem>>, vector<1x16x80xf32>
    %98 = vector.shape_cast %97 : vector<1x16x80xf32> to vector<16x80xf32>
    %cst_108 = arith.constant dense<0.000000e+00> : vector<5x80xf32>
    %99 = tpu.matmul %96, %98, %cst_108 {dimension_numbers = #tpu.dot_dimension_numbers<[1], [0], [0], [1], [0, 0, 1, 1], [], []>} : vector<5x16xf32>, vector<16x80xf32>, vector<5x80xf32> -> vector<5x80xf32>
    %c1_109 = arith.constant 1 : index
    %c0_110 = arith.constant 0 : index
    %c0_111 = arith.constant 0 : index
    %100 = vector.load %arg12[%c1_109, %c0_110, %c0_111] : memref<3x5x2xf32, #tpu.memory_space<vmem>>, vector<1x5x2xf32>
    %101 = vector.shape_cast %100 : vector<1x5x2xf32> to vector<5x2xf32>
    %cst_112 = arith.constant dense<0.000000e+00> : vector<5x16xf32>
    %102 = tpu.matmul %101, %93, %cst_112 {dimension_numbers = #tpu.dot_dimension_numbers<[1], [0], [0], [1], [0, 0, 1, 1], [], []>} : vector<5x2xf32>, vector<2x16xf32>, vector<5x16xf32> -> vector<5x16xf32>
    %c1_113 = arith.constant 1 : index
    %c0_114 = arith.constant 0 : index
    %c0_115 = arith.constant 0 : index
    %103 = vector.load %arg13[%c1_113, %c0_114, %c0_115] : memref<3x16x80xf32, #tpu.memory_space<vmem>>, vector<1x16x80xf32>
    %104 = vector.shape_cast %103 : vector<1x16x80xf32> to vector<16x80xf32>
    %cst_116 = arith.constant dense<0.000000e+00> : vector<5x80xf32>
    %105 = tpu.matmul %102, %104, %cst_116 {dimension_numbers = #tpu.dot_dimension_numbers<[1], [0], [0], [1], [0, 0, 1, 1], [], []>} : vector<5x16xf32>, vector<16x80xf32>, vector<5x80xf32> -> vector<5x80xf32>
    %106 = arith.addf %99, %105 : vector<5x80xf32>
    %c2_117 = arith.constant 2 : index
    %c0_118 = arith.constant 0 : index
    %c0_119 = arith.constant 0 : index
    %107 = vector.load %arg12[%c2_117, %c0_118, %c0_119] : memref<3x5x2xf32, #tpu.memory_space<vmem>>, vector<1x5x2xf32>
    %108 = vector.shape_cast %107 : vector<1x5x2xf32> to vector<5x2xf32>
    %cst_120 = arith.constant dense<0.000000e+00> : vector<5x16xf32>
    %109 = tpu.matmul %108, %93, %cst_120 {dimension_numbers = #tpu.dot_dimension_numbers<[1], [0], [0], [1], [0, 0, 1, 1], [], []>} : vector<5x2xf32>, vector<2x16xf32>, vector<5x16xf32> -> vector<5x16xf32>
    %c2_121 = arith.constant 2 : index
    %c0_122 = arith.constant 0 : index
    %c0_123 = arith.constant 0 : index
    %110 = vector.load %arg13[%c2_121, %c0_122, %c0_123] : memref<3x16x80xf32, #tpu.memory_space<vmem>>, vector<1x16x80xf32>
    %111 = vector.shape_cast %110 : vector<1x16x80xf32> to vector<16x80xf32>
    %cst_124 = arith.constant dense<0.000000e+00> : vector<5x80xf32>
    %112 = tpu.matmul %109, %111, %cst_124 {dimension_numbers = #tpu.dot_dimension_numbers<[1], [0], [0], [1], [0, 0, 1, 1], [], []>} : vector<5x16xf32>, vector<16x80xf32>, vector<5x80xf32> -> vector<5x80xf32>
    %113 = arith.addf %106, %112 : vector<5x80xf32>
    %c0_125 = arith.constant 0 : index
    %c0_126 = arith.constant 0 : index
    %114 = vector.load %arg14[%c0_125, %c0_126] : memref<1x80xf32, #tpu.memory_space<vmem>>, vector<1x80xf32>
    %115 = vector.broadcast %114 : vector<1x80xf32> to vector<5x80xf32>
    %116 = arith.addf %113, %115 : vector<5x80xf32>
    %cst_127 = arith.constant 0.000000e+00 : f32
    %117 = vector.broadcast %cst_127 : f32 to vector<5x80xf32>
    %118 = arith.maximumf %116, %117 : vector<5x80xf32>
    %c0_128 = arith.constant 0 : index
    %c0_129 = arith.constant 0 : index
    %c0_130 = arith.constant 0 : index
    %119 = vector.load %arg15[%c0_128, %c0_129, %c0_130] : memref<5x15x5xf32, #tpu.memory_space<vmem>>, vector<1x15x5xf32>
    %120 = vector.shape_cast %119 : vector<1x15x5xf32> to vector<15x5xf32>
    %cst_131 = arith.constant dense<0.000000e+00> : vector<15x80xf32>
    %121 = tpu.matmul %120, %118, %cst_131 {dimension_numbers = #tpu.dot_dimension_numbers<[1], [0], [0], [1], [0, 0, 1, 1], [], []>} : vector<15x5xf32>, vector<5x80xf32>, vector<15x80xf32> -> vector<15x80xf32>
    %c0_132 = arith.constant 0 : index
    %c0_133 = arith.constant 0 : index
    %c0_134 = arith.constant 0 : index
    %122 = vector.load %arg16[%c0_132, %c0_133, %c0_134] : memref<5x80x120xf32, #tpu.memory_space<vmem>>, vector<1x80x120xf32>
    %123 = vector.shape_cast %122 : vector<1x80x120xf32> to vector<80x120xf32>
    %cst_135 = arith.constant dense<0.000000e+00> : vector<15x120xf32>
    %124 = tpu.matmul %121, %123, %cst_135 {dimension_numbers = #tpu.dot_dimension_numbers<[1], [0], [0], [1], [0, 0, 1, 1], [], []>} : vector<15x80xf32>, vector<80x120xf32>, vector<15x120xf32> -> vector<15x120xf32>
    %c1_136 = arith.constant 1 : index
    %c0_137 = arith.constant 0 : index
    %c0_138 = arith.constant 0 : index
    %125 = vector.load %arg15[%c1_136, %c0_137, %c0_138] : memref<5x15x5xf32, #tpu.memory_space<vmem>>, vector<1x15x5xf32>
    %126 = vector.shape_cast %125 : vector<1x15x5xf32> to vector<15x5xf32>
    %cst_139 = arith.constant dense<0.000000e+00> : vector<15x80xf32>
    %127 = tpu.matmul %126, %118, %cst_139 {dimension_numbers = #tpu.dot_dimension_numbers<[1], [0], [0], [1], [0, 0, 1, 1], [], []>} : vector<15x5xf32>, vector<5x80xf32>, vector<15x80xf32> -> vector<15x80xf32>
    %c1_140 = arith.constant 1 : index
    %c0_141 = arith.constant 0 : index
    %c0_142 = arith.constant 0 : index
    %128 = vector.load %arg16[%c1_140, %c0_141, %c0_142] : memref<5x80x120xf32, #tpu.memory_space<vmem>>, vector<1x80x120xf32>
    %129 = vector.shape_cast %128 : vector<1x80x120xf32> to vector<80x120xf32>
    %cst_143 = arith.constant dense<0.000000e+00> : vector<15x120xf32>
    %130 = tpu.matmul %127, %129, %cst_143 {dimension_numbers = #tpu.dot_dimension_numbers<[1], [0], [0], [1], [0, 0, 1, 1], [], []>} : vector<15x80xf32>, vector<80x120xf32>, vector<15x120xf32> -> vector<15x120xf32>
    %131 = arith.addf %124, %130 : vector<15x120xf32>
    %c2_144 = arith.constant 2 : index
    %c0_145 = arith.constant 0 : index
    %c0_146 = arith.constant 0 : index
    %132 = vector.load %arg15[%c2_144, %c0_145, %c0_146] : memref<5x15x5xf32, #tpu.memory_space<vmem>>, vector<1x15x5xf32>
    %133 = vector.shape_cast %132 : vector<1x15x5xf32> to vector<15x5xf32>
    %cst_147 = arith.constant dense<0.000000e+00> : vector<15x80xf32>
    %134 = tpu.matmul %133, %118, %cst_147 {dimension_numbers = #tpu.dot_dimension_numbers<[1], [0], [0], [1], [0, 0, 1, 1], [], []>} : vector<15x5xf32>, vector<5x80xf32>, vector<15x80xf32> -> vector<15x80xf32>
    %c2_148 = arith.constant 2 : index
    %c0_149 = arith.constant 0 : index
    %c0_150 = arith.constant 0 : index
    %135 = vector.load %arg16[%c2_148, %c0_149, %c0_150] : memref<5x80x120xf32, #tpu.memory_space<vmem>>, vector<1x80x120xf32>
    %136 = vector.shape_cast %135 : vector<1x80x120xf32> to vector<80x120xf32>
    %cst_151 = arith.constant dense<0.000000e+00> : vector<15x120xf32>
    %137 = tpu.matmul %134, %136, %cst_151 {dimension_numbers = #tpu.dot_dimension_numbers<[1], [0], [0], [1], [0, 0, 1, 1], [], []>} : vector<15x80xf32>, vector<80x120xf32>, vector<15x120xf32> -> vector<15x120xf32>
    %138 = arith.addf %131, %137 : vector<15x120xf32>
    %c3 = arith.constant 3 : index
    %c0_152 = arith.constant 0 : index
    %c0_153 = arith.constant 0 : index
    %139 = vector.load %arg15[%c3, %c0_152, %c0_153] : memref<5x15x5xf32, #tpu.memory_space<vmem>>, vector<1x15x5xf32>
    %140 = vector.shape_cast %139 : vector<1x15x5xf32> to vector<15x5xf32>
    %cst_154 = arith.constant dense<0.000000e+00> : vector<15x80xf32>
    %141 = tpu.matmul %140, %118, %cst_154 {dimension_numbers = #tpu.dot_dimension_numbers<[1], [0], [0], [1], [0, 0, 1, 1], [], []>} : vector<15x5xf32>, vector<5x80xf32>, vector<15x80xf32> -> vector<15x80xf32>
    %c3_155 = arith.constant 3 : index
    %c0_156 = arith.constant 0 : index
    %c0_157 = arith.constant 0 : index
    %142 = vector.load %arg16[%c3_155, %c0_156, %c0_157] : memref<5x80x120xf32, #tpu.memory_space<vmem>>, vector<1x80x120xf32>
    %143 = vector.shape_cast %142 : vector<1x80x120xf32> to vector<80x120xf32>
    %cst_158 = arith.constant dense<0.000000e+00> : vector<15x120xf32>
    %144 = tpu.matmul %141, %143, %cst_158 {dimension_numbers = #tpu.dot_dimension_numbers<[1], [0], [0], [1], [0, 0, 1, 1], [], []>} : vector<15x80xf32>, vector<80x120xf32>, vector<15x120xf32> -> vector<15x120xf32>
    %145 = arith.addf %138, %144 : vector<15x120xf32>
    %c4 = arith.constant 4 : index
    %c0_159 = arith.constant 0 : index
    %c0_160 = arith.constant 0 : index
    %146 = vector.load %arg15[%c4, %c0_159, %c0_160] : memref<5x15x5xf32, #tpu.memory_space<vmem>>, vector<1x15x5xf32>
    %147 = vector.shape_cast %146 : vector<1x15x5xf32> to vector<15x5xf32>
    %cst_161 = arith.constant dense<0.000000e+00> : vector<15x80xf32>
    %148 = tpu.matmul %147, %118, %cst_161 {dimension_numbers = #tpu.dot_dimension_numbers<[1], [0], [0], [1], [0, 0, 1, 1], [], []>} : vector<15x5xf32>, vector<5x80xf32>, vector<15x80xf32> -> vector<15x80xf32>
    %c4_162 = arith.constant 4 : index
    %c0_163 = arith.constant 0 : index
    %c0_164 = arith.constant 0 : index
    %149 = vector.load %arg16[%c4_162, %c0_163, %c0_164] : memref<5x80x120xf32, #tpu.memory_space<vmem>>, vector<1x80x120xf32>
    %150 = vector.shape_cast %149 : vector<1x80x120xf32> to vector<80x120xf32>
    %cst_165 = arith.constant dense<0.000000e+00> : vector<15x120xf32>
    %151 = tpu.matmul %148, %150, %cst_165 {dimension_numbers = #tpu.dot_dimension_numbers<[1], [0], [0], [1], [0, 0, 1, 1], [], []>} : vector<15x80xf32>, vector<80x120xf32>, vector<15x120xf32> -> vector<15x120xf32>
    %152 = arith.addf %145, %151 : vector<15x120xf32>
    %c0_166 = arith.constant 0 : index
    %c0_167 = arith.constant 0 : index
    %153 = vector.load %arg17[%c0_166, %c0_167] : memref<1x120xf32, #tpu.memory_space<vmem>>, vector<1x120xf32>
    %154 = vector.broadcast %153 : vector<1x120xf32> to vector<15x120xf32>
    %155 = arith.addf %152, %154 : vector<15x120xf32>
    %cst_168 = arith.constant 0.000000e+00 : f32
    %156 = vector.broadcast %cst_168 : f32 to vector<15x120xf32>
    %157 = arith.maximumf %155, %156 : vector<15x120xf32>
    %c0_169 = arith.constant 0 : index
    %c0_170 = arith.constant 0 : index
    %c0_171 = arith.constant 0 : index
    %158 = vector.load %arg18[%c0_169, %c0_170, %c0_171] : memref<2x28x15xf32, #tpu.memory_space<vmem>>, vector<1x28x15xf32>
    %159 = vector.shape_cast %158 : vector<1x28x15xf32> to vector<28x15xf32>
    %cst_172 = arith.constant dense<0.000000e+00> : vector<28x120xf32>
    %160 = tpu.matmul %159, %157, %cst_172 {dimension_numbers = #tpu.dot_dimension_numbers<[1], [0], [0], [1], [0, 0, 1, 1], [], []>} : vector<28x15xf32>, vector<15x120xf32>, vector<28x120xf32> -> vector<28x120xf32>
    %c0_173 = arith.constant 0 : index
    %c0_174 = arith.constant 0 : index
    %c0_175 = arith.constant 0 : index
    %161 = vector.load %arg19[%c0_173, %c0_174, %c0_175] : memref<2x120x28xf32, #tpu.memory_space<vmem>>, vector<1x120x28xf32>
    %162 = vector.shape_cast %161 : vector<1x120x28xf32> to vector<120x28xf32>
    %cst_176 = arith.constant dense<0.000000e+00> : vector<28x28xf32>
    %163 = tpu.matmul %160, %162, %cst_176 {dimension_numbers = #tpu.dot_dimension_numbers<[1], [0], [0], [1], [0, 0, 1, 1], [], []>} : vector<28x120xf32>, vector<120x28xf32>, vector<28x28xf32> -> vector<28x28xf32>
    %c1_177 = arith.constant 1 : index
    %c0_178 = arith.constant 0 : index
    %c0_179 = arith.constant 0 : index
    %164 = vector.load %arg18[%c1_177, %c0_178, %c0_179] : memref<2x28x15xf32, #tpu.memory_space<vmem>>, vector<1x28x15xf32>
    %165 = vector.shape_cast %164 : vector<1x28x15xf32> to vector<28x15xf32>
    %cst_180 = arith.constant dense<0.000000e+00> : vector<28x120xf32>
    %166 = tpu.matmul %165, %157, %cst_180 {dimension_numbers = #tpu.dot_dimension_numbers<[1], [0], [0], [1], [0, 0, 1, 1], [], []>} : vector<28x15xf32>, vector<15x120xf32>, vector<28x120xf32> -> vector<28x120xf32>
    %c1_181 = arith.constant 1 : index
    %c0_182 = arith.constant 0 : index
    %c0_183 = arith.constant 0 : index
    %167 = vector.load %arg19[%c1_181, %c0_182, %c0_183] : memref<2x120x28xf32, #tpu.memory_space<vmem>>, vector<1x120x28xf32>
    %168 = vector.shape_cast %167 : vector<1x120x28xf32> to vector<120x28xf32>
    %cst_184 = arith.constant dense<0.000000e+00> : vector<28x28xf32>
    %169 = tpu.matmul %166, %168, %cst_184 {dimension_numbers = #tpu.dot_dimension_numbers<[1], [0], [0], [1], [0, 0, 1, 1], [], []>} : vector<28x120xf32>, vector<120x28xf32>, vector<28x28xf32> -> vector<28x28xf32>
    %170 = arith.addf %163, %169 : vector<28x28xf32>
    %c0_185 = arith.constant 0 : index
    %c0_186 = arith.constant 0 : index
    %171 = vector.load %arg20[%c0_185, %c0_186] : memref<1x28xf32, #tpu.memory_space<vmem>>, vector<1x28xf32>
    %172 = vector.broadcast %171 : vector<1x28xf32> to vector<28x28xf32>
    %173 = arith.addf %170, %172 : vector<28x28xf32>
    %cst_187 = arith.constant 0.000000e+00 : f32
    %174 = vector.broadcast %cst_187 : f32 to vector<28x28xf32>
    %175 = arith.subf %174, %173 : vector<28x28xf32>
    %176 = math.exp %175 : vector<28x28xf32>
    %cst_188 = arith.constant 1.000000e+00 : f32
    %177 = vector.broadcast %cst_188 : f32 to vector<28x28xf32>
    %178 = arith.addf %177, %176 : vector<28x28xf32>
    %cst_189 = arith.constant 1.000000e+00 : f32
    %179 = vector.broadcast %cst_189 : f32 to vector<28x28xf32>
    %180 = arith.divf %179, %178 : vector<28x28xf32>
    %c0_190 = arith.constant 0 : index
    %c0_191 = arith.constant 0 : index
    %c0_192 = arith.constant 0 : index
    %181 = vector.load %arg21[%c0_190, %c0_191, %c0_192] : memref<1x28x28xf32, #tpu.memory_space<vmem>>, vector<1x28x28xf32>
    %182 = vector.shape_cast %181 : vector<1x28x28xf32> to vector<28x28xf32>
    %183 = vector.shape_cast %180 : vector<28x28xf32> to vector<1x28x28xf32>
    tpu.vector_store %arg21[%c0_190, %c0_191, %c0_192], %183 {strides = array<i32>} : memref<1x28x28xf32, #tpu.memory_space<vmem>>, vector<1x28x28xf32>,
    return
  }
  func.func @transform_0(%arg0: i32) -> (i32, i32, i32) {
    %c0_i32 = arith.constant 0 : i32
    %c0_i32_0 = arith.constant 0 : i32
    %c0_i32_1 = arith.constant 0 : i32
    return %arg0, %c0_i32, %c0_i32_0 : i32, i32, i32
  }
  func.func @transform_1(%arg0: i32) -> (i32, i32, i32) {
    %c0_i32 = arith.constant 0 : i32
    %c0_i32_0 = arith.constant 0 : i32
    %c0_i32_1 = arith.constant 0 : i32
    %c0_i32_2 = arith.constant 0 : i32
    return %c0_i32, %c0_i32_0, %c0_i32_1 : i32, i32, i32
  }
  func.func @transform_2(%arg0: i32) -> (i32, i32, i32) {
    %c0_i32 = arith.constant 0 : i32
    %c0_i32_0 = arith.constant 0 : i32
    %c0_i32_1 = arith.constant 0 : i32
    %c0_i32_2 = arith.constant 0 : i32
    return %c0_i32, %c0_i32_0, %c0_i32_1 : i32, i32, i32
  }
  func.func @transform_3(%arg0: i32) -> (i32, i32) {
    %c0_i32 = arith.constant 0 : i32
    %c0_i32_0 = arith.constant 0 : i32
    %c0_i32_1 = arith.constant 0 : i32
    return %c0_i32, %c0_i32_0 : i32, i32
  }
  func.func @transform_4(%arg0: i32) -> (i32, i32, i32) {
    %c0_i32 = arith.constant 0 : i32
    %c0_i32_0 = arith.constant 0 : i32
    %c0_i32_1 = arith.constant 0 : i32
    %c0_i32_2 = arith.constant 0 : i32
    return %c0_i32, %c0_i32_0, %c0_i32_1 : i32, i32, i32
  }
  func.func @transform_5(%arg0: i32) -> (i32, i32, i32) {
    %c0_i32 = arith.constant 0 : i32
    %c0_i32_0 = arith.constant 0 : i32
    %c0_i32_1 = arith.constant 0 : i32
    %c0_i32_2 = arith.constant 0 : i32
    return %c0_i32, %c0_i32_0, %c0_i32_1 : i32, i32, i32
  }
  func.func @transform_6(%arg0: i32) -> (i32, i32, i32) {
    %c0_i32 = arith.constant 0 : i32
    %c0_i32_0 = arith.constant 0 : i32
    %c0_i32_1 = arith.constant 0 : i32
    %c0_i32_2 = arith.constant 0 : i32
    return %c0_i32, %c0_i32_0, %c0_i32_1 : i32, i32, i32
  }
  func.func @transform_7(%arg0: i32) -> (i32, i32, i32) {
    %c0_i32 = arith.constant 0 : i32
    %c0_i32_0 = arith.constant 0 : i32
    %c0_i32_1 = arith.constant 0 : i32
    %c0_i32_2 = arith.constant 0 : i32
    return %c0_i32, %c0_i32_0, %c0_i32_1 : i32, i32, i32
  }
  func.func @transform_8(%arg0: i32) -> (i32, i32) {
    %c0_i32 = arith.constant 0 : i32
    %c0_i32_0 = arith.constant 0 : i32
    %c0_i32_1 = arith.constant 0 : i32
    return %c0_i32, %c0_i32_0 : i32, i32
  }
  func.func @transform_9(%arg0: i32) -> (i32, i32, i32) {
    %c0_i32 = arith.constant 0 : i32
    %c0_i32_0 = arith.constant 0 : i32
    %c0_i32_1 = arith.constant 0 : i32
    %c0_i32_2 = arith.constant 0 : i32
    return %c0_i32, %c0_i32_0, %c0_i32_1 : i32, i32, i32
  }
  func.func @transform_10(%arg0: i32) -> (i32, i32, i32) {
    %c0_i32 = arith.constant 0 : i32
    %c0_i32_0 = arith.constant 0 : i32
    %c0_i32_1 = arith.constant 0 : i32
    %c0_i32_2 = arith.constant 0 : i32
    return %c0_i32, %c0_i32_0, %c0_i32_1 : i32, i32, i32
  }
  func.func @transform_11(%arg0: i32) -> (i32, i32, i32) {
    %c0_i32 = arith.constant 0 : i32
    %c0_i32_0 = arith.constant 0 : i32
    %c0_i32_1 = arith.constant 0 : i32
    %c0_i32_2 = arith.constant 0 : i32
    return %c0_i32, %c0_i32_0, %c0_i32_1 : i32, i32, i32
  }
  func.func @transform_12(%arg0: i32) -> (i32, i32, i32) {
    %c0_i32 = arith.constant 0 : i32
    %c0_i32_0 = arith.constant 0 : i32
    %c0_i32_1 = arith.constant 0 : i32
    %c0_i32_2 = arith.constant 0 : i32
    return %c0_i32, %c0_i32_0, %c0_i32_1 : i32, i32, i32
  }
  func.func @transform_13(%arg0: i32) -> (i32, i32) {
    %c0_i32 = arith.constant 0 : i32
    %c0_i32_0 = arith.constant 0 : i32
    %c0_i32_1 = arith.constant 0 : i32
    return %c0_i32, %c0_i32_0 : i32, i32
  }
  func.func @transform_14(%arg0: i32) -> (i32, i32, i32) {
    %c0_i32 = arith.constant 0 : i32
    %c0_i32_0 = arith.constant 0 : i32
    %c0_i32_1 = arith.constant 0 : i32
    %c0_i32_2 = arith.constant 0 : i32
    return %c0_i32, %c0_i32_0, %c0_i32_1 : i32, i32, i32
  }
  func.func @transform_15(%arg0: i32) -> (i32, i32, i32) {
    %c0_i32 = arith.constant 0 : i32
    %c0_i32_0 = arith.constant 0 : i32
    %c0_i32_1 = arith.constant 0 : i32
    %c0_i32_2 = arith.constant 0 : i32
    return %c0_i32, %c0_i32_0, %c0_i32_1 : i32, i32, i32
  }
  func.func @transform_16(%arg0: i32) -> (i32, i32) {
    %c0_i32 = arith.constant 0 : i32
    %c0_i32_0 = arith.constant 0 : i32
    %c0_i32_1 = arith.constant 0 : i32
    return %c0_i32, %c0_i32_0 : i32, i32
  }
  func.func @transform_17(%arg0: i32) -> (i32, i32, i32) {
    %c0_i32 = arith.constant 0 : i32
    %c0_i32_0 = arith.constant 0 : i32
    %c0_i32_1 = arith.constant 0 : i32
    %c0_i32_2 = arith.constant 0 : i32
    return %c0_i32, %c0_i32_0, %c0_i32_1 : i32, i32, i32
  }
  func.func @transform_18(%arg0: i32) -> (i32, i32, i32) {
    %c0_i32 = arith.constant 0 : i32
    %c0_i32_0 = arith.constant 0 : i32
    %c0_i32_1 = arith.constant 0 : i32
    %c0_i32_2 = arith.constant 0 : i32
    return %c0_i32, %c0_i32_0, %c0_i32_1 : i32, i32, i32
  }
  func.func @transform_19(%arg0: i32) -> (i32, i32) {
    %c0_i32 = arith.constant 0 : i32
    %c0_i32_0 = arith.constant 0 : i32
    %c0_i32_1 = arith.constant 0 : i32
    return %c0_i32, %c0_i32_0 : i32, i32
  }
  func.func @transform_20(%arg0: i32) -> (i32, i32, i32) {
    %c0_i32 = arith.constant 0 : i32
    %c0_i32_0 = arith.constant 0 : i32
    %c0_i32_1 = arith.constant 0 : i32
    return %arg0, %c0_i32, %c0_i32_0 : i32, i32, i32
  }
}

</mosaic_0001>

<llo_original>
// kernel: encoder_model_forward.1
$region0: #{encoder_model_forward.1}
  #allocation0 [shape = 'u32[]', space=smem, size = 0x4, offset = 0x4, fixed_abs, tag = 'smem constant byte address 0x4 - core index']
  #allocation1 [shape = 'u32[72,128]{1,0:T(1,128)}', space=vmem, size = 0x9000, scoped, tag = 'internal scratch']
  %s0 = inlined_call_operand.vmem [shape: f32[2,28,28], index: 0, kind: input, shape index: {}]
  %s1 = inlined_call_operand.vmem [shape: f32[3,10,28], index: 1, kind: input, shape index: {}]
  %s2 = inlined_call_operand.vmem [shape: f32[3,28,160], index: 2, kind: input, shape index: {}]
  %s3 = inlined_call_operand.vmem [shape: f32[1,160], index: 3, kind: input, shape index: {}]
  %s4 = inlined_call_operand.vmem [shape: f32[2,5,10], index: 4, kind: input, shape index: {}]
  %s5 = inlined_call_operand.hbm [shape: f32[2,160,80], index: 5, kind: input, shape index: {}]
  %s6 = inlined_call_operand.vmem [shape: f32[3,3,5], index: 6, kind: input, shape index: {}]
  %s7 = inlined_call_operand.vmem [shape: f32[3,80,24], index: 7, kind: input, shape index: {}]
  %s8 = inlined_call_operand.vmem [shape: f32[1,24], index: 8, kind: input, shape index: {}]
  %s9 = inlined_call_operand.vmem [shape: f32[2,2,3], index: 9, kind: input, shape index: {}]
  %s10 = inlined_call_operand.vmem [shape: f32[2,24,16], index: 10, kind: input, shape index: {}]
  %s11 = inlined_call_operand.vmem [shape: f32[3,5,2], index: 11, kind: input, shape index: {}]
  %s12 = inlined_call_operand.vmem [shape: f32[3,16,80], index: 12, kind: input, shape index: {}]
  %s13 = inlined_call_operand.vmem [shape: f32[1,80], index: 13, kind: input, shape index: {}]
  %s14 = inlined_call_operand.vmem [shape: f32[5,15,5], index: 14, kind: input, shape index: {}]
  %s15 = inlined_call_operand.vmem [shape: f32[5,80,120], index: 15, kind: input, shape index: {}]
  %s16 = inlined_call_operand.vmem [shape: f32[1,120], index: 16, kind: input, shape index: {}]
  %s17 = inlined_call_operand.vmem [shape: f32[2,28,15], index: 17, kind: input, shape index: {}]
  %s18 = inlined_call_operand.vmem [shape: f32[2,120,28], index: 18, kind: input, shape index: {}]
  %s19 = inlined_call_operand.vmem [shape: f32[1,28], index: 19, kind: input, shape index: {}]
  %s20 = inlined_call_operand.vmem [shape: f32[2,28,28], index: 20, kind: output, shape index: {}]
  %s21 = sld [smem:[#allocation0]]
  $region117: #{encoder_model_forward.1} parent=0
    _
  %s23 = ssub.s32 1, %s21
  %s24 = scalar_select 0, %s23, %s21
  $region1: #{encoder_model_forward.1} parent=0
    #allocation2 [shape = 'u8[163840]{0}', space=vmem, size = 0x28000, scoped, tag = 'input window, operand 5, single buffered']
    #allocation3 [shape = 's32[2]{0}', space=sflag, size = 0x8, scoped, tag = 'scoped memory for encoder_model_forward.1']
    %25 = vsyncpa [#allocation3], 0
    loop: start=0, step=1, limit=4
    $region2: #{encoder_model_forward.1} parent=1 // loop_pre_header
      _
    $region3: #{encoder_model_forward.1} parent=1 // loop_header
      %s27 = sphi 0, %s31
      %p28 = scmp.ge.s32.totalorder %s27, 4
      %s37 = sphi 0, %s39
      %s40 = sphi 0, %s37
      %s41 = sphi 0, %s40
      %s57 = sphi 0, %s41
      %s61 = sphi 0, %s61
      %s63 = sphi 0, %s61
      %s64 = sphi 0, %s63
      %s78 = sphi 0, %s64
      %s82 = sphi 0, %s82
      %s84 = sphi 0, %s82
      %s85 = sphi 0, %s84
      %s99 = sphi 0, %s85
      %s103 = sphi 0, %s103
      %s105 = sphi 0, %s103
      %s106 = sphi 0, %s105
      %s120 = sphi 0, %s106
      %s124 = sphi 0, %s124
      %s126 = sphi 0, %s124
      %s127 = sphi 0, %s126
      %s141 = sphi 0, %s127
      %s145 = sphi 0, %s145
      %s147 = sphi 0, %s145
      %s148 = sphi 0, %s147
      %s162 = sphi 0, %s148
      %s166 = sphi 0, %s166
      %s168 = sphi 0, %s166
      %s169 = sphi 0, %s168
      %s183 = sphi 0, %s169
      %s187 = sphi 0, %s187
      %s189 = sphi 0, %s187
      %s190 = sphi 0, %s189
      %s204 = sphi 0, %s190
      %s208 = sphi 0, %s208
      %s210 = sphi 0, %s208
      %s211 = sphi 0, %s210
      %s225 = sphi 0, %s211
      %s229 = sphi 0, %s229
      %s231 = sphi 0, %s229
      %s232 = sphi 0, %s231
      %s246 = sphi 0, %s232
      %s250 = sphi 0, %s250
      %s252 = sphi 0, %s250
      %s253 = sphi 0, %s252
      %s267 = sphi 0, %s253
      %s271 = sphi 0, %s271
      %s273 = sphi 0, %s271
      %s274 = sphi 0, %s273
      %s288 = sphi 0, %s274
      %s292 = sphi 0, %s292
      %s294 = sphi 0, %s292
      %s295 = sphi 0, %s294
      %s309 = sphi 0, %s295
      %s313 = sphi 0, %s313
      %s315 = sphi 0, %s313
      %s316 = sphi 0, %s315
      %s330 = sphi 0, %s316
      %s334 = sphi 0, %s334
      %s336 = sphi 0, %s334
      %s337 = sphi 0, %s336
      %s351 = sphi 0, %s337
      %s355 = sphi 0, %s355
      %s357 = sphi 0, %s355
      %s358 = sphi 0, %s357
      %s372 = sphi 0, %s358
      %s376 = sphi 0, %s376
      %s378 = sphi 0, %s376
      %s379 = sphi 0, %s378
      %s393 = sphi 0, %s379
      %s397 = sphi 0, %s397
      %s399 = sphi 0, %s397
      %s400 = sphi 0, %s399
      %s414 = sphi 0, %s400
      %s418 = sphi 0, %s418
      %s420 = sphi 0, %s418
      %s421 = sphi 0, %s420
      %s435 = sphi 0, %s421
      %s439 = sphi 0, %s439
      %s441 = sphi 0, %s439
      %s442 = sphi 0, %s441
      %s456 = sphi 0, %s442
      %s462 = sphi 0, %s464
      %s465 = sphi 0, %s462
      %s466 = sphi 0, %s465
      %s482 = sphi 0, %s466
    $region4: #{encoder_model_forward.1} parent=1 // loop_header_branch
      %30 = sbr.rel (%p28) target = $region8
    $region5: #{encoder_model_forward.1} parent=1 // loop_body
      %s32 = ssub.s32 %s27, 1
      %s33 = ssub.s32 %s27, 2
      %s34 = sadd.s32 %s27, 1
      %s35 = ssub.s32 %s27, %s34
      %p36 = scmp.eq.s32.totalorder %s35, 0
      %s38 = sadd.s32 %s37, 1
      %s39 = scalar_select %p36, %s37, %s38
      %p42 = pneg %p36
      %p43 = scmp.eq.s32.totalorder %s27, 1
      %p44 = por %p42, %p43
      %p45 = scmp.ne.s32.totalorder %s37, %s40
      %p46 = scmp.eq.s32.totalorder %s27, 0
      %p47 = por %p45, %p46
      %p48 = scmp.ne.s32.totalorder %s37, %s40
      %p49 = scmp.eq.s32.totalorder %s32, 1
      %p50 = por %p48, %p49
      %p51 = scmp.ne.s32.totalorder %s40, %s41
      %p52 = scmp.eq.s32.totalorder %s32, 0
      %p53 = por %p51, %p52
      %p54 = scmp.ne.s32.totalorder %s40, %s41
      %p55 = scmp.eq.s32.totalorder %s33, 1
      %p56 = por %p54, %p55
      %p58 = scmp.ne.s32.totalorder %s41, %s57
      %p59 = scmp.eq.s32.totalorder %s33, 0
      %p60 = por %p58, %p59
      %s62 = sadd.s32 %s61, 1
      %p65 = scmp.eq.s32.totalorder %s27, 1
      %p66 = scmp.ne.s32.totalorder %s61, %s63
      %p67 = scmp.eq.s32.totalorder %s27, 0
      %p68 = por %p66, %p67
      %p69 = scmp.ne.s32.totalorder %s61, %s63
      %p70 = scmp.eq.s32.totalorder %s32, 1
      %p71 = por %p69, %p70
      %p72 = scmp.ne.s32.totalorder %s63, %s64
      %p73 = scmp.eq.s32.totalorder %s32, 0
      %p74 = por %p72, %p73
      %p75 = scmp.ne.s32.totalorder %s63, %s64
      %p76 = scmp.eq.s32.totalorder %s33, 1
      %p77 = por %p75, %p76
      %p79 = scmp.ne.s32.totalorder %s64, %s78
      %p80 = scmp.eq.s32.totalorder %s33, 0
      %p81 = por %p79, %p80
      %s83 = sadd.s32 %s82, 1
      %p86 = scmp.eq.s32.totalorder %s27, 1
      %p87 = scmp.ne.s32.totalorder %s82, %s84
      %p88 = scmp.eq.s32.totalorder %s27, 0
      %p89 = por %p87, %p88
      %p90 = scmp.ne.s32.totalorder %s82, %s84
      %p91 = scmp.eq.s32.totalorder %s32, 1
      %p92 = por %p90, %p91
      %p93 = scmp.ne.s32.totalorder %s84, %s85
      %p94 = scmp.eq.s32.totalorder %s32, 0
      %p95 = por %p93, %p94
      %p96 = scmp.ne.s32.totalorder %s84, %s85
      %p97 = scmp.eq.s32.totalorder %s33, 1
      %p98 = por %p96, %p97
      %p100 = scmp.ne.s32.totalorder %s85, %s99
      %p101 = scmp.eq.s32.totalorder %s33, 0
      %p102 = por %p100, %p101
      %s104 = sadd.s32 %s103, 1
      %p107 = scmp.eq.s32.totalorder %s27, 1
      %p108 = scmp.ne.s32.totalorder %s103, %s105
      %p109 = scmp.eq.s32.totalorder %s27, 0
      %p110 = por %p108, %p109
      %p111 = scmp.ne.s32.totalorder %s103, %s105
      %p112 = scmp.eq.s32.totalorder %s32, 1
      %p113 = por %p111, %p112
      %p114 = scmp.ne.s32.totalorder %s105, %s106
      %p115 = scmp.eq.s32.totalorder %s32, 0
      %p116 = por %p114, %p115
      %p117 = scmp.ne.s32.totalorder %s105, %s106
      %p118 = scmp.eq.s32.totalorder %s33, 1
      %p119 = por %p117, %p118
      %p121 = scmp.ne.s32.totalorder %s106, %s120
      %p122 = scmp.eq.s32.totalorder %s33, 0
      %p123 = por %p121, %p122
      %s125 = sadd.s32 %s124, 1
      %p128 = scmp.eq.s32.totalorder %s27, 1
      %p129 = scmp.ne.s32.totalorder %s124, %s126
      %p130 = scmp.eq.s32.totalorder %s27, 0
      %p131 = por %p129, %p130
      %p132 = scmp.ne.s32.totalorder %s124, %s126
      %p133 = scmp.eq.s32.totalorder %s32, 1
      %p134 = por %p132, %p133
      %p135 = scmp.ne.s32.totalorder %s126, %s127
      %p136 = scmp.eq.s32.totalorder %s32, 0
      %p137 = por %p135, %p136
      %p138 = scmp.ne.s32.totalorder %s126, %s127
      %p139 = scmp.eq.s32.totalorder %s33, 1
      %p140 = por %p138, %p139
      %p142 = scmp.ne.s32.totalorder %s127, %s141
      %p143 = scmp.eq.s32.totalorder %s33, 0
      %p144 = por %p142, %p143
      %s146 = sadd.s32 %s145, 1
      %p149 = scmp.eq.s32.totalorder %s27, 1
      %p150 = scmp.ne.s32.totalorder %s145, %s147
      %p151 = scmp.eq.s32.totalorder %s27, 0
      %p152 = por %p150, %p151
      %p153 = scmp.ne.s32.totalorder %s145, %s147
      %p154 = scmp.eq.s32.totalorder %s32, 1
      %p155 = por %p153, %p154
      %p156 = scmp.ne.s32.totalorder %s147, %s148
      %p157 = scmp.eq.s32.totalorder %s32, 0
      %p158 = por %p156, %p157
      %p159 = scmp.ne.s32.totalorder %s147, %s148
      %p160 = scmp.eq.s32.totalorder %s33, 1
      %p161 = por %p159, %p160
      %p163 = scmp.ne.s32.totalorder %s148, %s162
      %p164 = scmp.eq.s32.totalorder %s33, 0
      %p165 = por %p163, %p164
      %s167 = sadd.s32 %s166, 1
      %p170 = scmp.eq.s32.totalorder %s27, 1
      %p171 = scmp.ne.s32.totalorder %s166, %s168
      %p172 = scmp.eq.s32.totalorder %s27, 0
      %p173 = por %p171, %p172
      %p174 = scmp.ne.s32.totalorder %s166, %s168
      %p175 = scmp.eq.s32.totalorder %s32, 1
      %p176 = por %p174, %p175
      %p177 = scmp.ne.s32.totalorder %s168, %s169
      %p178 = scmp.eq.s32.totalorder %s32, 0
      %p179 = por %p177, %p178
      %p180 = scmp.ne.s32.totalorder %s168, %s169
      %p181 = scmp.eq.s32.totalorder %s33, 1
      %p182 = por %p180, %p181
      %p184 = scmp.ne.s32.totalorder %s169, %s183
      %p185 = scmp.eq.s32.totalorder %s33, 0
      %p186 = por %p184, %p185
      %s188 = sadd.s32 %s187, 1
      %p191 = scmp.eq.s32.totalorder %s27, 1
      %p192 = scmp.ne.s32.totalorder %s187, %s189
      %p193 = scmp.eq.s32.totalorder %s27, 0
      %p194 = por %p192, %p193
      %p195 = scmp.ne.s32.totalorder %s187, %s189
      %p196 = scmp.eq.s32.totalorder %s32, 1
      %p197 = por %p195, %p196
      %p198 = scmp.ne.s32.totalorder %s189, %s190
      %p199 = scmp.eq.s32.totalorder %s32, 0
      %p200 = por %p198, %p199
      %p201 = scmp.ne.s32.totalorder %s189, %s190
      %p202 = scmp.eq.s32.totalorder %s33, 1
      %p203 = por %p201, %p202
      %p205 = scmp.ne.s32.totalorder %s190, %s204
      %p206 = scmp.eq.s32.totalorder %s33, 0
      %p207 = por %p205, %p206
      %s209 = sadd.s32 %s208, 1
      %p212 = scmp.eq.s32.totalorder %s27, 1
      %p213 = scmp.ne.s32.totalorder %s208, %s210
      %p214 = scmp.eq.s32.totalorder %s27, 0
      %p215 = por %p213, %p214
      %p216 = scmp.ne.s32.totalorder %s208, %s210
      %p217 = scmp.eq.s32.totalorder %s32, 1
      %p218 = por %p216, %p217
      %p219 = scmp.ne.s32.totalorder %s210, %s211
      %p220 = scmp.eq.s32.totalorder %s32, 0
      %p221 = por %p219, %p220
      %p222 = scmp.ne.s32.totalorder %s210, %s211
      %p223 = scmp.eq.s32.totalorder %s33, 1
      %p224 = por %p222, %p223
      %p226 = scmp.ne.s32.totalorder %s211, %s225
      %p227 = scmp.eq.s32.totalorder %s33, 0
      %p228 = por %p226, %p227
      %s230 = sadd.s32 %s229, 1
      %p233 = scmp.eq.s32.totalorder %s27, 1
      %p234 = scmp.ne.s32.totalorder %s229, %s231
      %p235 = scmp.eq.s32.totalorder %s27, 0
      %p236 = por %p234, %p235
      %p237 = scmp.ne.s32.totalorder %s229, %s231
      %p238 = scmp.eq.s32.totalorder %s32, 1
      %p239 = por %p237, %p238
      %p240 = scmp.ne.s32.totalorder %s231, %s232
      %p241 = scmp.eq.s32.totalorder %s32, 0
      %p242 = por %p240, %p241
      %p243 = scmp.ne.s32.totalorder %s231, %s232
      %p244 = scmp.eq.s32.totalorder %s33, 1
      %p245 = por %p243, %p244
      %p247 = scmp.ne.s32.totalorder %s232, %s246
      %p248 = scmp.eq.s32.totalorder %s33, 0
      %p249 = por %p247, %p248
      %s251 = sadd.s32 %s250, 1
      %p254 = scmp.eq.s32.totalorder %s27, 1
      %p255 = scmp.ne.s32.totalorder %s250, %s252
      %p256 = scmp.eq.s32.totalorder %s27, 0
      %p257 = por %p255, %p256
      %p258 = scmp.ne.s32.totalorder %s250, %s252
      %p259 = scmp.eq.s32.totalorder %s32, 1
      %p260 = por %p258, %p259
      %p261 = scmp.ne.s32.totalorder %s252, %s253
      %p262 = scmp.eq.s32.totalorder %s32, 0
      %p263 = por %p261, %p262
      %p264 = scmp.ne.s32.totalorder %s252, %s253
      %p265 = scmp.eq.s32.totalorder %s33, 1
      %p266 = por %p264, %p265
      %p268 = scmp.ne.s32.totalorder %s253, %s267
      %p269 = scmp.eq.s32.totalorder %s33, 0
      %p270 = por %p268, %p269
      %s272 = sadd.s32 %s271, 1
      %p275 = scmp.eq.s32.totalorder %s27, 1
      %p276 = scmp.ne.s32.totalorder %s271, %s273
      %p277 = scmp.eq.s32.totalorder %s27, 0
      %p278 = por %p276, %p277
      %p279 = scmp.ne.s32.totalorder %s271, %s273
      %p280 = scmp.eq.s32.totalorder %s32, 1
      %p281 = por %p279, %p280
      %p282 = scmp.ne.s32.totalorder %s273, %s274
      %p283 = scmp.eq.s32.totalorder %s32, 0
      %p284 = por %p282, %p283
      %p285 = scmp.ne.s32.totalorder %s273, %s274
      %p286 = scmp.eq.s32.totalorder %s33, 1
      %p287 = por %p285, %p286
      %p289 = scmp.ne.s32.totalorder %s274, %s288
      %p290 = scmp.eq.s32.totalorder %s33, 0
      %p291 = por %p289, %p290
      %s293 = sadd.s32 %s292, 1
      %p296 = scmp.eq.s32.totalorder %s27, 1
      %p297 = scmp.ne.s32.totalorder %s292, %s294
      %p298 = scmp.eq.s32.totalorder %s27, 0
      %p299 = por %p297, %p298
      %p300 = scmp.ne.s32.totalorder %s292, %s294
      %p301 = scmp.eq.s32.totalorder %s32, 1
      %p302 = por %p300, %p301
      %p303 = scmp.ne.s32.totalorder %s294, %s295
      %p304 = scmp.eq.s32.totalorder %s32, 0
      %p305 = por %p303, %p304
      %p306 = scmp.ne.s32.totalorder %s294, %s295
      %p307 = scmp.eq.s32.totalorder %s33, 1
      %p308 = por %p306, %p307
      %p310 = scmp.ne.s32.totalorder %s295, %s309
      %p311 = scmp.eq.s32.totalorder %s33, 0
      %p312 = por %p310, %p311
      %s314 = sadd.s32 %s313, 1
      %p317 = scmp.eq.s32.totalorder %s27, 1
      %p318 = scmp.ne.s32.totalorder %s313, %s315
      %p319 = scmp.eq.s32.totalorder %s27, 0
      %p320 = por %p318, %p319
      %p321 = scmp.ne.s32.totalorder %s313, %s315
      %p322 = scmp.eq.s32.totalorder %s32, 1
      %p323 = por %p321, %p322
      %p324 = scmp.ne.s32.totalorder %s315, %s316
      %p325 = scmp.eq.s32.totalorder %s32, 0
      %p326 = por %p324, %p325
      %p327 = scmp.ne.s32.totalorder %s315, %s316
      %p328 = scmp.eq.s32.totalorder %s33, 1
      %p329 = por %p327, %p328
      %p331 = scmp.ne.s32.totalorder %s316, %s330
      %p332 = scmp.eq.s32.totalorder %s33, 0
      %p333 = por %p331, %p332
      %s335 = sadd.s32 %s334, 1
      %p338 = scmp.eq.s32.totalorder %s27, 1
      %p339 = scmp.ne.s32.totalorder %s334, %s336
      %p340 = scmp.eq.s32.totalorder %s27, 0
      %p341 = por %p339, %p340
      %p342 = scmp.ne.s32.totalorder %s334, %s336
      %p343 = scmp.eq.s32.totalorder %s32, 1
      %p344 = por %p342, %p343
      %p345 = scmp.ne.s32.totalorder %s336, %s337
      %p346 = scmp.eq.s32.totalorder %s32, 0
      %p347 = por %p345, %p346
      %p348 = scmp.ne.s32.totalorder %s336, %s337
      %p349 = scmp.eq.s32.totalorder %s33, 1
      %p350 = por %p348, %p349
      %p352 = scmp.ne.s32.totalorder %s337, %s351
      %p353 = scmp.eq.s32.totalorder %s33, 0
      %p354 = por %p352, %p353
      %s356 = sadd.s32 %s355, 1
      %p359 = scmp.eq.s32.totalorder %s27, 1
      %p360 = scmp.ne.s32.totalorder %s355, %s357
      %p361 = scmp.eq.s32.totalorder %s27, 0
      %p362 = por %p360, %p361
      %p363 = scmp.ne.s32.totalorder %s355, %s357
      %p364 = scmp.eq.s32.totalorder %s32, 1
      %p365 = por %p363, %p364
      %p366 = scmp.ne.s32.totalorder %s357, %s358
      %p367 = scmp.eq.s32.totalorder %s32, 0
      %p368 = por %p366, %p367
      %p369 = scmp.ne.s32.totalorder %s357, %s358
      %p370 = scmp.eq.s32.totalorder %s33, 1
      %p371 = por %p369, %p370
      %p373 = scmp.ne.s32.totalorder %s358, %s372
      %p374 = scmp.eq.s32.totalorder %s33, 0
      %p375 = por %p373, %p374
      %s377 = sadd.s32 %s376, 1
      %p380 = scmp.eq.s32.totalorder %s27, 1
      %p381 = scmp.ne.s32.totalorder %s376, %s378
      %p382 = scmp.eq.s32.totalorder %s27, 0
      %p383 = por %p381, %p382
      %p384 = scmp.ne.s32.totalorder %s376, %s378
      %p385 = scmp.eq.s32.totalorder %s32, 1
      %p386 = por %p384, %p385
      %p387 = scmp.ne.s32.totalorder %s378, %s379
      %p388 = scmp.eq.s32.totalorder %s32, 0
      %p389 = por %p387, %p388
      %p390 = scmp.ne.s32.totalorder %s378, %s379
      %p391 = scmp.eq.s32.totalorder %s33, 1
      %p392 = por %p390, %p391
      %p394 = scmp.ne.s32.totalorder %s379, %s393
      %p395 = scmp.eq.s32.totalorder %s33, 0
      %p396 = por %p394, %p395
      %s398 = sadd.s32 %s397, 1
      %p401 = scmp.eq.s32.totalorder %s27, 1
      %p402 = scmp.ne.s32.totalorder %s397, %s399
      %p403 = scmp.eq.s32.totalorder %s27, 0
      %p404 = por %p402, %p403
      %p405 = scmp.ne.s32.totalorder %s397, %s399
      %p406 = scmp.eq.s32.totalorder %s32, 1
      %p407 = por %p405, %p406
      %p408 = scmp.ne.s32.totalorder %s399, %s400
      %p409 = scmp.eq.s32.totalorder %s32, 0
      %p410 = por %p408, %p409
      %p411 = scmp.ne.s32.totalorder %s399, %s400
      %p412 = scmp.eq.s32.totalorder %s33, 1
      %p413 = por %p411, %p412
      %p415 = scmp.ne.s32.totalorder %s400, %s414
      %p416 = scmp.eq.s32.totalorder %s33, 0
      %p417 = por %p415, %p416
      %s419 = sadd.s32 %s418, 1
      %p422 = scmp.eq.s32.totalorder %s27, 1
      %p423 = scmp.ne.s32.totalorder %s418, %s420
      %p424 = scmp.eq.s32.totalorder %s27, 0
      %p425 = por %p423, %p424
      %p426 = scmp.ne.s32.totalorder %s418, %s420
      %p427 = scmp.eq.s32.totalorder %s32, 1
      %p428 = por %p426, %p427
      %p429 = scmp.ne.s32.totalorder %s420, %s421
      %p430 = scmp.eq.s32.totalorder %s32, 0
      %p431 = por %p429, %p430
      %p432 = scmp.ne.s32.totalorder %s420, %s421
      %p433 = scmp.eq.s32.totalorder %s33, 1
      %p434 = por %p432, %p433
      %p436 = scmp.ne.s32.totalorder %s421, %s435
      %p437 = scmp.eq.s32.totalorder %s33, 0
      %p438 = por %p436, %p437
      %s440 = sadd.s32 %s439, 1
      %p443 = scmp.eq.s32.totalorder %s27, 1
      %p444 = scmp.ne.s32.totalorder %s439, %s441
      %p445 = scmp.eq.s32.totalorder %s27, 0
      %p446 = por %p444, %p445
      %p447 = scmp.ne.s32.totalorder %s439, %s441
      %p448 = scmp.eq.s32.totalorder %s32, 1
      %p449 = por %p447, %p448
      %p450 = scmp.ne.s32.totalorder %s441, %s442
      %p451 = scmp.eq.s32.totalorder %s32, 0
      %p452 = por %p450, %p451
      %p453 = scmp.ne.s32.totalorder %s441, %s442
      %p454 = scmp.eq.s32.totalorder %s33, 1
      %p455 = por %p453, %p454
      %p457 = scmp.ne.s32.totalorder %s442, %s456
      %p458 = scmp.eq.s32.totalorder %s33, 0
      %p459 = por %p457, %p458
      %s460 = ssub.s32 %s27, %s34
      %p461 = scmp.eq.s32.totalorder %s460, 0
      %s463 = sadd.s32 %s462, 1
      %s464 = scalar_select %p461, %s462, %s463
      %p467 = pneg %p461
      %p468 = scmp.eq.s32.totalorder %s27, 1
      %p469 = por %p467, %p468
      %p470 = scmp.ne.s32.totalorder %s462, %s465
      %p471 = scmp.eq.s32.totalorder %s27, 0
      %p472 = por %p470, %p471
      %p473 = scmp.ne.s32.totalorder %s462, %s465
      %p474 = scmp.eq.s32.totalorder %s32, 1
      %p475 = por %p473, %p474
      %p476 = scmp.ne.s32.totalorder %s465, %s466
      %p477 = scmp.eq.s32.totalorder %s32, 0
      %p478 = por %p476, %p477
      %p479 = scmp.ne.s32.totalorder %s465, %s466
      %p480 = scmp.eq.s32.totalorder %s33, 1
      %p481 = por %p479, %p480
      %p483 = scmp.ne.s32.totalorder %s466, %s482
      %p484 = scmp.eq.s32.totalorder %s33, 0
      %p485 = por %p483, %p484
      %p486 = scmp.le.s32.totalorder 1, %s27
      %p487 = scmp.lt.s32.totalorder %s27, 3
      %p488 = pnand %p486, %p487
      %p489 = pneg %p488
      // Predicated region
      $region9: #{encoder_model_forward.1} parent=5 // pred_check
        _
      $region10: #{encoder_model_forward.1} parent=5 // pred_check_branch
        %491 = sbr.rel (%p488) target = $region12
      $region11: #{encoder_model_forward.1} parent=5 // pred_region
        %s492 = ssub.s32 %s27, 1
        // Predicated region
        $region13: #{encoder_model_forward.1} parent=11 // pred_check
          %p493 = pneg %p74
        $region14: #{encoder_model_forward.1} parent=11 // pred_check_branch
          %495 = sbr.rel (%p493) target = $region16
        $region15: #{encoder_model_forward.1} parent=11 // pred_region
          _
        $region16: #{encoder_model_forward.1} parent=11 // pred_fallthru
          _
        // Predicated region
        $region17: #{encoder_model_forward.1} parent=11 // pred_check
          %p496 = pneg %p95
        $region18: #{encoder_model_forward.1} parent=11 // pred_check_branch
          %498 = sbr.rel (%p496) target = $region20
        $region19: #{encoder_model_forward.1} parent=11 // pred_region
          _
        $region20: #{encoder_model_forward.1} parent=11 // pred_fallthru
          _
        // Predicated region
        $region21: #{encoder_model_forward.1} parent=11 // pred_check
          %p499 = pneg %p116
        $region22: #{encoder_model_forward.1} parent=11 // pred_check_branch
          %501 = sbr.rel (%p499) target = $region24
        $region23: #{encoder_model_forward.1} parent=11 // pred_region
          _
        $region24: #{encoder_model_forward.1} parent=11 // pred_fallthru
          _
        // Predicated region
        $region25: #{encoder_model_forward.1} parent=11 // pred_check
          %p502 = pneg %p137
        $region26: #{encoder_model_forward.1} parent=11 // pred_check_branch
          %504 = sbr.rel (%p502) target = $region28
        $region27: #{encoder_model_forward.1} parent=11 // pred_region
          _
        $region28: #{encoder_model_forward.1} parent=11 // pred_fallthru
          _
        // Predicated region
        $region29: #{encoder_model_forward.1} parent=11 // pred_check
          %p505 = pneg %p158
        $region30: #{encoder_model_forward.1} parent=11 // pred_check_branch
          %507 = sbr.rel (%p505) target = $region32
        $region31: #{encoder_model_forward.1} parent=11 // pred_region
          %509 = vsyncadd [#allocation3], 0
          %s510 = sshll.u32 %s5, 4
          %s511 = int_to_ptr.hbm [resolvable:$true] %s510
          %s512 = sshll.u32 [#allocation2], 4
          %s513 = int_to_ptr.vmem [resolvable:$true] %s512
          %518 = dma.hbm_to_vmem [thread:$0]  %s511, 5120, %s513, [#allocation3], 128, 128, 8
        $region32: #{encoder_model_forward.1} parent=11 // pred_fallthru
          _
        // Predicated region
        $region33: #{encoder_model_forward.1} parent=11 // pred_check
          %p519 = pneg %p179
        $region34: #{encoder_model_forward.1} parent=11 // pred_check_branch
          %521 = sbr.rel (%p519) target = $region36
        $region35: #{encoder_model_forward.1} parent=11 // pred_region
          _
        $region36: #{encoder_model_forward.1} parent=11 // pred_fallthru
          _
        // Predicated region
        $region37: #{encoder_model_forward.1} parent=11 // pred_check
          %p522 = pneg %p200
        $region38: #{encoder_model_forward.1} parent=11 // pred_check_branch
          %524 = sbr.rel (%p522) target = $region40
        $region39: #{encoder_model_forward.1} parent=11 // pred_region
          _
        $region40: #{encoder_model_forward.1} parent=11 // pred_fallthru
          _
        // Predicated region
        $region41: #{encoder_model_forward.1} parent=11 // pred_check
          %p525 = pneg %p221
        $region42: #{encoder_model_forward.1} parent=11 // pred_check_branch
          %527 = sbr.rel (%p525) target = $region44
        $region43: #{encoder_model_forward.1} parent=11 // pred_region
          _
        $region44: #{encoder_model_forward.1} parent=11 // pred_fallthru
          _
        // Predicated region
        $region45: #{encoder_model_forward.1} parent=11 // pred_check
          %p528 = pneg %p242
        $region46: #{encoder_model_forward.1} parent=11 // pred_check_branch
          %530 = sbr.rel (%p528) target = $region48
        $region47: #{encoder_model_forward.1} parent=11 // pred_region
          _
        $region48: #{encoder_model_forward.1} parent=11 // pred_fallthru
          _
        // Predicated region
        $region49: #{encoder_model_forward.1} parent=11 // pred_check
          %p531 = pneg %p263
        $region50: #{encoder_model_forward.1} parent=11 // pred_check_branch
          %533 = sbr.rel (%p531) target = $region52
        $region51: #{encoder_model_forward.1} parent=11 // pred_region
          _
        $region52: #{encoder_model_forward.1} parent=11 // pred_fallthru
          _
        // Predicated region
        $region53: #{encoder_model_forward.1} parent=11 // pred_check
          %p534 = pneg %p284
        $region54: #{encoder_model_forward.1} parent=11 // pred_check_branch
          %536 = sbr.rel (%p534) target = $region56
        $region55: #{encoder_model_forward.1} parent=11 // pred_region
          _
        $region56: #{encoder_model_forward.1} parent=11 // pred_fallthru
          _
        // Predicated region
        $region57: #{encoder_model_forward.1} parent=11 // pred_check
          %p537 = pneg %p305
        $region58: #{encoder_model_forward.1} parent=11 // pred_check_branch
          %539 = sbr.rel (%p537) target = $region60
        $region59: #{encoder_model_forward.1} parent=11 // pred_region
          _
        $region60: #{encoder_model_forward.1} parent=11 // pred_fallthru
          _
        // Predicated region
        $region61: #{encoder_model_forward.1} parent=11 // pred_check
          %p540 = pneg %p326
        $region62: #{encoder_model_forward.1} parent=11 // pred_check_branch
          %542 = sbr.rel (%p540) target = $region64
        $region63: #{encoder_model_forward.1} parent=11 // pred_region
          _
        $region64: #{encoder_model_forward.1} parent=11 // pred_fallthru
          _
        // Predicated region
        $region65: #{encoder_model_forward.1} parent=11 // pred_check
          %p543 = pneg %p347
        $region66: #{encoder_model_forward.1} parent=11 // pred_check_branch
          %545 = sbr.rel (%p543) target = $region68
        $region67: #{encoder_model_forward.1} parent=11 // pred_region
          _
        $region68: #{encoder_model_forward.1} parent=11 // pred_fallthru
          _
        // Predicated region
        $region69: #{encoder_model_forward.1} parent=11 // pred_check
          %p546 = pneg %p368
        $region70: #{encoder_model_forward.1} parent=11 // pred_check_branch
          %548 = sbr.rel (%p546) target = $region72
        $region71: #{encoder_model_forward.1} parent=11 // pred_region
          _
        $region72: #{encoder_model_forward.1} parent=11 // pred_fallthru
          _
        // Predicated region
        $region73: #{encoder_model_forward.1} parent=11 // pred_check
          %p549 = pneg %p389
        $region74: #{encoder_model_forward.1} parent=11 // pred_check_branch
          %551 = sbr.rel (%p549) target = $region76
        $region75: #{encoder_model_forward.1} parent=11 // pred_region
          _
        $region76: #{encoder_model_forward.1} parent=11 // pred_fallthru
          _
        // Predicated region
        $region77: #{encoder_model_forward.1} parent=11 // pred_check
          %p552 = pneg %p410
        $region78: #{encoder_model_forward.1} parent=11 // pred_check_branch
          %554 = sbr.rel (%p552) target = $region80
        $region79: #{encoder_model_forward.1} parent=11 // pred_region
          _
        $region80: #{encoder_model_forward.1} parent=11 // pred_fallthru
          _
        // Predicated region
        $region81: #{encoder_model_forward.1} parent=11 // pred_check
          %p555 = pneg %p431
        $region82: #{encoder_model_forward.1} parent=11 // pred_check_branch
          %557 = sbr.rel (%p555) target = $region84
        $region83: #{encoder_model_forward.1} parent=11 // pred_region
          _
        $region84: #{encoder_model_forward.1} parent=11 // pred_fallthru
          _
        // Predicated region
        $region85: #{encoder_model_forward.1} parent=11 // pred_check
          %p558 = pneg %p452
        $region86: #{encoder_model_forward.1} parent=11 // pred_check_branch
          %560 = sbr.rel (%p558) target = $region88
        $region87: #{encoder_model_forward.1} parent=11 // pred_region
          _
        $region88: #{encoder_model_forward.1} parent=11 // pred_fallthru
          _
      $region12: #{encoder_model_forward.1} parent=5 // pred_fallthru
        _
      %p561 = scmp.lt.s32.totalorder %s27, 2
      // Predicated region
      $region89: #{encoder_model_forward.1} parent=5 // pred_check
        %p562 = pneg %p561
      $region90: #{encoder_model_forward.1} parent=5 // pred_check_branch
        %564 = sbr.rel (%p562) target = $region92
      $region91: #{encoder_model_forward.1} parent=5 // pred_region
        // Predicated region
        $region93: #{encoder_model_forward.1} parent=91 // pred_check
          %p565 = pneg %p47
        $region94: #{encoder_model_forward.1} parent=91 // pred_check_branch
          %567 = sbr.rel (%p565) target = $region96
        $region95: #{encoder_model_forward.1} parent=91 // pred_region
          %p568 = scmp.lt.s32.totalorder %s27, 1
          %s569 = scalar_select %p568, %s27, 1
          %s570 = smul.addr %s569, 4
          %s571 = smul.addr %s570, 8
          %s572 = scalar_lea.vmem %s0, %s571
        $region96: #{encoder_model_forward.1} parent=91 // pred_fallthru
          _
      $region92: #{encoder_model_forward.1} parent=5 // pred_fallthru
        _
      %p573 = scmp.le.s32.totalorder 1, %s27
      %p574 = scmp.lt.s32.totalorder %s27, 3
      %p575 = pnand %p573, %p574
      %p576 = pneg %p575
      // Predicated region
      $region97: #{encoder_model_forward.1} parent=5 // pred_check
        _
      $region98: #{encoder_model_forward.1} parent=5 // pred_check_branch
        %578 = sbr.rel (%p575) target = $region100
      $region99: #{encoder_model_forward.1} parent=5 // pred_region
        %s579 = ssub.s32 %s27, 1
        // Predicated region
        $region101: #{encoder_model_forward.1} parent=99 // pred_check
          %p580 = pneg %p158
        $region102: #{encoder_model_forward.1} parent=99 // pred_check_branch
          %582 = sbr.rel (%p580) target = $region104
        $region103: #{encoder_model_forward.1} parent=99 // pred_region
          %584 = dma.done [#allocation3], 5120
        $region104: #{encoder_model_forward.1} parent=99 // pred_fallthru
          _
        %p585 = scmp.lt.s32.totalorder %s32, 1
        %s586 = scalar_select %p585, %s32, 1
        %s587 = smul.addr %s586, 4
        %s588 = smul.addr %s587, 8
        %s589 = scalar_lea.vmem %s0, %s588
        %p590 = pneg %p53
        %p591 = pneg %p50
        %p592 = pneg %p74
        %p593 = pneg %p71
        %p594 = pneg %p95
        %p595 = pneg %p92
        %p596 = pneg %p116
        %p597 = pneg %p113
        %p598 = pneg %p137
        %p599 = pneg %p134
        %p600 = pneg %p158
        %p601 = pneg %p155
        %p602 = pneg %p179
        %p603 = pneg %p176
        %p604 = pneg %p200
        %p605 = pneg %p197
        %p606 = pneg %p221
        %p607 = pneg %p218
        %p608 = pneg %p242
        %p609 = pneg %p239
        %p610 = pneg %p263
        %p611 = pneg %p260
        %p612 = pneg %p284
        %p613 = pneg %p281
        %p614 = pneg %p305
        %p615 = pneg %p302
        %p616 = pneg %p326
        %p617 = pneg %p323
        %p618 = pneg %p347
        %p619 = pneg %p344
        %p620 = pneg %p368
        %p621 = pneg %p365
        %p622 = pneg %p389
        %p623 = pneg %p386
        %p624 = pneg %p410
        %p625 = pneg %p407
        %p626 = pneg %p431
        %p627 = pneg %p428
        %p628 = pneg %p452
        %p629 = pneg %p449
        %p630 = pneg %p478
        %p631 = pneg %p475
        %p632 = scmp.lt.s32.totalorder %s32, 1
        %s633 = scalar_select %p632, %s32, 1
        %s634 = smul.addr %s633, 4
        %s635 = smul.addr %s634, 8
        %s636 = scalar_lea.vmem %s20, %s635
        %p637 = scmp.lt.s32.totalorder %s32, 1
        %s638 = scalar_select %p637, %s32, 1
        %s639 = smul.addr %s638, 4
        %s640 = smul.addr %s639, 8
        %s641 = scalar_lea.vmem %s0, %s640
        %p642 = scmp.lt.s32.totalorder %s32, 1
        %s643 = scalar_select %p642, %s32, 1
        %s644 = smul.addr %s643, 4
        %s645 = smul.addr %s644, 8
        %s646 = scalar_lea.vmem %s20, %s645
        %v647 = vld [vmem:[%s641] sm:$0xff]
        %v648 = vld [vmem:[%s641 + $0x8] sm:$0xff]
        %v649 = vld [vmem:[%s641 + $0x10] sm:$0xff]
        %v650 = vld [vmem:[%s641 + $0x18] sm:$0xf]
        %v651 = vld [vmem:[%s1] sm:$0xff]
        %v652 = vld [vmem:[%s1 + $0x8] sm:$0x3]
        %vm653 = vcmask 228352
        %v655 = vsel %vm653, %v651, 0
        %v658 = vsel %vm653, %v652, 0
        %vm660 = vcmask 1043456
        %v662 = vsel %vm660, %v650, 0
        %664 = vmatpush.msra.mxu0 0.0
        %665 = vmatpush.msra.mxu0 0.0
        %666 = vmatpush.msra.mxu0 0.0
        %667 = vmatpush.msra.mxu0 0.0
        %668 = vmatpush.msra.mxu0 0.0
        %669 = vmatpush.msra.mxu0 0.0
        %670 = vmatpush.msra.mxu0 0.0
        %671 = vmatpush.msra.mxu0 0.0
        %672 = vmatpush.msra.mxu0 0.0
        %673 = vmatpush.msra.mxu0 0.0
        %674 = vmatpush.msra.mxu0 0.0
        %675 = vmatpush.msra.mxu0 0.0
        %676 = vmatpush.msra.mxu0 %v662
        %677 = vmatpush.msra.mxu0 %v649
        %678 = vmatpush.msra.mxu0 %v648
        %679 = vmatpush.msra.mxu0 %v647
        %680 = vmatmul.f32.gmra.mxu0 %v655
        %v681 = vpop.f32.mrf.mxu0
        %v682 = vadd.f32 0.0, %v681
        %683 = vmatmul.f32.gmra.mxu0 %v658
        %v684 = vpop.f32.mrf.mxu0
        %v685 = vadd.f32 0.0, %v684
        %686 = vdwg.mxu0
        %v687 = vld [vmem:[%s2] sm:$0xff]
        %v688 = vld [vmem:[%s2 + $0x8] sm:$0xff]
        %v689 = vld [vmem:[%s2 + $0x10] sm:$0xff]
        %v690 = vld [vmem:[%s2 + $0x18] sm:$0xff]
        %v691 = vld [vmem:[%s2 + $0x20] sm:$0xff]
        %v692 = vld [vmem:[%s2 + $0x28] sm:$0xff]
        %v693 = vld [vmem:[%s2 + $0x30] sm:$0xf]
        %v694 = vld [vmem:[%s2 + $0x38] sm:$0xf]
        %s695 = scalar_lea.vmem %s1, 16
        %v696 = vld [vmem:[%s695] sm:$0xff]
        %v697 = vld [vmem:[%s695 + $0x8] sm:$0x3]
        %v699 = vsel %vm653, %v696, 0
        %v702 = vsel %vm653, %v697, 0
        %704 = vmatpush.msra.mxu0 0.0
        %705 = vmatpush.msra.mxu0 0.0
        %706 = vmatpush.msra.mxu0 0.0
        %707 = vmatpush.msra.mxu0 0.0
        %708 = vmatpush.msra.mxu0 0.0
        %709 = vmatpush.msra.mxu0 0.0
        %710 = vmatpush.msra.mxu0 0.0
        %711 = vmatpush.msra.mxu0 0.0
        %712 = vmatpush.msra.mxu0 0.0
        %713 = vmatpush.msra.mxu0 0.0
        %714 = vmatpush.msra.mxu0 0.0
        %715 = vmatpush.msra.mxu0 0.0
        %716 = vmatpush.msra.mxu0 %v662
        %717 = vmatpush.msra.mxu0 %v649
        %718 = vmatpush.msra.mxu0 %v648
        %719 = vmatpush.msra.mxu0 %v647
        %720 = vmatmul.f32.gmra.mxu0 %v699
        %v721 = vpop.f32.mrf.mxu0
        %v722 = vadd.f32 0.0, %v721
        %723 = vmatmul.f32.gmra.mxu0 %v702
        %v724 = vpop.f32.mrf.mxu0
        %v725 = vadd.f32 0.0, %v724
        %726 = vdwg.mxu0
        %s727 = scalar_lea.vmem %s2, 64
        %v728 = vld [vmem:[%s727] sm:$0xff]
        %v729 = vld [vmem:[%s727 + $0x8] sm:$0xff]
        %v730 = vld [vmem:[%s727 + $0x10] sm:$0xff]
        %v731 = vld [vmem:[%s727 + $0x18] sm:$0xff]
        %v732 = vld [vmem:[%s727 + $0x20] sm:$0xff]
        %v733 = vld [vmem:[%s727 + $0x28] sm:$0xff]
        %v734 = vld [vmem:[%s727 + $0x30] sm:$0xf]
        %v735 = vld [vmem:[%s727 + $0x38] sm:$0xf]
        %v737 = vsel %vm653, %v722, 0
        %v740 = vsel %vm653, %v725, 0
        %v743 = vsel %vm660, %v734, 0
        %v746 = vsel %vm660, %v735, 0
        %748 = vmatpush.msra.mxu0 0.0
        %749 = vmatpush.msra.mxu0 0.0
        %750 = vmatpush.msra.mxu0 0.0
        %751 = vmatpush.msra.mxu0 0.0
        %752 = vmatpush.msra.mxu0 0.0
        %753 = vmatpush.msra.mxu0 0.0
        %754 = vmatpush.msra.mxu0 0.0
        %755 = vmatpush.msra.mxu0 0.0
        %756 = vmatpush.msra.mxu0 0.0
        %757 = vmatpush.msra.mxu0 0.0
        %758 = vmatpush.msra.mxu0 0.0
        %759 = vmatpush.msra.mxu0 0.0
        %760 = vmatpush.msra.mxu0 %v743
        %761 = vmatpush.msra.mxu0 %v732
        %762 = vmatpush.msra.mxu0 %v730
        %763 = vmatpush.msra.mxu0 %v728
        %764 = vmatmul.f32.gmra.mxu0 %v737
        %v765 = vpop.f32.mrf.mxu0
        %v766 = vadd.f32 0.0, %v765
        %767 = vmatmul.f32.gmra.mxu0 %v740
        %v768 = vpop.f32.mrf.mxu0
        %v769 = vadd.f32 0.0, %v768
        %770 = vdwg.mxu0
        %771 = vmatpush.msra.mxu0 0.0
        %772 = vmatpush.msra.mxu0 0.0
        %773 = vmatpush.msra.mxu0 0.0
        %774 = vmatpush.msra.mxu0 0.0
        %775 = vmatpush.msra.mxu0 0.0
        %776 = vmatpush.msra.mxu0 0.0
        %777 = vmatpush.msra.mxu0 0.0
        %778 = vmatpush.msra.mxu0 0.0
        %779 = vmatpush.msra.mxu0 0.0
        %780 = vmatpush.msra.mxu0 0.0
        %781 = vmatpush.msra.mxu0 0.0
        %782 = vmatpush.msra.mxu0 0.0
        %783 = vmatpush.msra.mxu0 %v746
        %784 = vmatpush.msra.mxu0 %v733
        %785 = vmatpush.msra.mxu0 %v731
        %786 = vmatpush.msra.mxu0 %v729
        %787 = vmatmul.f32.gmra.mxu0 %v737
        %v788 = vpop.f32.mrf.mxu0
        %v789 = vadd.f32 0.0, %v788
        %790 = vmatmul.f32.gmra.mxu0 %v740
        %v791 = vpop.f32.mrf.mxu0
        %v792 = vadd.f32 0.0, %v791
        %793 = vdwg.mxu0
        %v795 = vsel %vm653, %v682, 0
        %v798 = vsel %vm653, %v685, 0
        %v801 = vsel %vm660, %v693, 0
        %v804 = vsel %vm660, %v694, 0
        %806 = vmatpush.msra.mxu0 0.0
        %807 = vmatpush.msra.mxu0 0.0
        %808 = vmatpush.msra.mxu0 0.0
        %809 = vmatpush.msra.mxu0 0.0
        %810 = vmatpush.msra.mxu0 0.0
        %811 = vmatpush.msra.mxu0 0.0
        %812 = vmatpush.msra.mxu0 0.0
        %813 = vmatpush.msra.mxu0 0.0
        %814 = vmatpush.msra.mxu0 0.0
        %815 = vmatpush.msra.mxu0 0.0
        %816 = vmatpush.msra.mxu0 0.0
        %817 = vmatpush.msra.mxu0 0.0
        %818 = vmatpush.msra.mxu0 %v801
        %819 = vmatpush.msra.mxu0 %v691
        %820 = vmatpush.msra.mxu0 %v689
        %821 = vmatpush.msra.mxu0 %v687
        %822 = vmatmul.f32.gmra.mxu0 %v795
        %v823 = vpop.f32.mrf.mxu0
        %v824 = vadd.f32 %v766, %v823
        %825 = vmatmul.f32.gmra.mxu0 %v798
        %v826 = vpop.f32.mrf.mxu0
        %v827 = vadd.f32 %v769, %v826
        %828 = vdwg.mxu0
        %829 = vmatpush.msra.mxu0 0.0
        %830 = vmatpush.msra.mxu0 0.0
        %831 = vmatpush.msra.mxu0 0.0
        %832 = vmatpush.msra.mxu0 0.0
        %833 = vmatpush.msra.mxu0 0.0
        %834 = vmatpush.msra.mxu0 0.0
        %835 = vmatpush.msra.mxu0 0.0
        %836 = vmatpush.msra.mxu0 0.0
        %837 = vmatpush.msra.mxu0 0.0
        %838 = vmatpush.msra.mxu0 0.0
        %839 = vmatpush.msra.mxu0 0.0
        %840 = vmatpush.msra.mxu0 0.0
        %841 = vmatpush.msra.mxu0 %v804
        %842 = vmatpush.msra.mxu0 %v692
        %843 = vmatpush.msra.mxu0 %v690
        %844 = vmatpush.msra.mxu0 %v688
        %845 = vmatmul.f32.gmra.mxu0 %v795
        %v846 = vpop.f32.mrf.mxu0
        %v847 = vadd.f32 %v789, %v846
        %848 = vmatmul.f32.gmra.mxu0 %v798
        %v849 = vpop.f32.mrf.mxu0
        %v850 = vadd.f32 %v792, %v849
        %851 = vdwg.mxu0
        %s852 = scalar_lea.vmem %s1, 32
        %v853 = vld [vmem:[%s852] sm:$0xff]
        %v854 = vld [vmem:[%s852 + $0x8] sm:$0x3]
        %v856 = vsel %vm653, %v853, 0
        %v859 = vsel %vm653, %v854, 0
        %861 = vmatpush.msra.mxu0 0.0
        %862 = vmatpush.msra.mxu0 0.0
        %863 = vmatpush.msra.mxu0 0.0
        %864 = vmatpush.msra.mxu0 0.0
        %865 = vmatpush.msra.mxu0 0.0
        %866 = vmatpush.msra.mxu0 0.0
        %867 = vmatpush.msra.mxu0 0.0
        %868 = vmatpush.msra.mxu0 0.0
        %869 = vmatpush.msra.mxu0 0.0
        %870 = vmatpush.msra.mxu0 0.0
        %871 = vmatpush.msra.mxu0 0.0
        %872 = vmatpush.msra.mxu0 0.0
        %873 = vmatpush.msra.mxu0 %v662
        %874 = vmatpush.msra.mxu0 %v649
        %875 = vmatpush.msra.mxu0 %v648
        %876 = vmatpush.msra.mxu0 %v647
        %877 = vmatmul.f32.gmra.mxu0 %v856
        %v878 = vpop.f32.mrf.mxu0
        %v879 = vadd.f32 0.0, %v878
        %880 = vmatmul.f32.gmra.mxu0 %v859
        %v881 = vpop.f32.mrf.mxu0
        %v882 = vadd.f32 0.0, %v881
        %883 = vdwg.mxu0
        %s884 = scalar_lea.vmem %s2, 128
        %v885 = vld [vmem:[%s884] sm:$0xff]
        %v886 = vld [vmem:[%s884 + $0x8] sm:$0xff]
        %v887 = vld [vmem:[%s884 + $0x10] sm:$0xff]
        %v888 = vld [vmem:[%s884 + $0x18] sm:$0xff]
        %v889 = vld [vmem:[%s884 + $0x20] sm:$0xff]
        %v890 = vld [vmem:[%s884 + $0x28] sm:$0xff]
        %v891 = vld [vmem:[%s884 + $0x30] sm:$0xf]
        %v892 = vld [vmem:[%s884 + $0x38] sm:$0xf]
        %v894 = vsel %vm653, %v879, 0
        %v897 = vsel %vm653, %v882, 0
        %v900 = vsel %vm660, %v891, 0
        %v903 = vsel %vm660, %v892, 0
        %905 = vmatpush.msra.mxu0 0.0
        %906 = vmatpush.msra.mxu0 0.0
        %907 = vmatpush.msra.mxu0 0.0
        %908 = vmatpush.msra.mxu0 0.0
        %909 = vmatpush.msra.mxu0 0.0
        %910 = vmatpush.msra.mxu0 0.0
        %911 = vmatpush.msra.mxu0 0.0
        %912 = vmatpush.msra.mxu0 0.0
        %913 = vmatpush.msra.mxu0 0.0
        %914 = vmatpush.msra.mxu0 0.0
        %915 = vmatpush.msra.mxu0 0.0
        %916 = vmatpush.msra.mxu0 0.0
        %917 = vmatpush.msra.mxu0 %v900
        %918 = vmatpush.msra.mxu0 %v889
        %919 = vmatpush.msra.mxu0 %v887
        %920 = vmatpush.msra.mxu0 %v885
        %921 = vmatmul.f32.gmra.mxu0 %v894
        %v922 = vpop.f32.mrf.mxu0
        %v923 = vadd.f32 0.0, %v922
        %924 = vmatmul.f32.gmra.mxu0 %v897
        %v925 = vpop.f32.mrf.mxu0
        %v926 = vadd.f32 0.0, %v925
        %927 = vdwg.mxu0
        %928 = vmatpush.msra.mxu0 0.0
        %929 = vmatpush.msra.mxu0 0.0
        %930 = vmatpush.msra.mxu0 0.0
        %931 = vmatpush.msra.mxu0 0.0
        %932 = vmatpush.msra.mxu0 0.0
        %933 = vmatpush.msra.mxu0 0.0
        %934 = vmatpush.msra.mxu0 0.0
        %935 = vmatpush.msra.mxu0 0.0
        %936 = vmatpush.msra.mxu0 0.0
        %937 = vmatpush.msra.mxu0 0.0
        %938 = vmatpush.msra.mxu0 0.0
        %939 = vmatpush.msra.mxu0 0.0
        %940 = vmatpush.msra.mxu0 %v903
        %941 = vmatpush.msra.mxu0 %v890
        %942 = vmatpush.msra.mxu0 %v888
        %943 = vmatpush.msra.mxu0 %v886
        %944 = vmatmul.f32.gmra.mxu0 %v894
        %v945 = vpop.f32.mrf.mxu0
        %v946 = vadd.f32 0.0, %v945
        %947 = vmatmul.f32.gmra.mxu0 %v897
        %v948 = vpop.f32.mrf.mxu0
        %v949 = vadd.f32 0.0, %v948
        %950 = vdwg.mxu0
        %v951 = vadd.f32 %v824, %v923
        %v952 = vadd.f32 %v847, %v946
        %v953 = vadd.f32 %v827, %v926
        %v954 = vadd.f32 %v850, %v949
        %v955 = vld [vmem:[%s3] sm:$0x3]
        %v957 = vperm.slane %v955, 0
        %v958 = vperm.slane %v955, 1
        %v961 = vadd.f32 %v951, %v957
        %v962 = vadd.f32 %v952, %v958
        %v963 = vadd.f32 %v953, %v957
        %v964 = vadd.f32 %v954, %v958
        %v965 = vmax.f32 %v961, 0.0
        %v966 = vmax.f32 %v962, 0.0
        %v967 = vmax.f32 %v963, 0.0
        %v968 = vmax.f32 %v964, 0.0
        %v969 = vld [vmem:[%s4] sm:$0x1f]
        %vm970 = vcmask 80896
        %v972 = vsel %vm970, %v969, 0
        %vm974 = vcmask 1041408
        %v976 = vsel %vm974, %v967, 0
        %v979 = vsel %vm974, %v968, 0
        %981 = vmatpush.msra.mxu0 0.0
        %982 = vmatpush.msra.mxu0 0.0
        %983 = vmatpush.msra.mxu0 0.0
        %984 = vmatpush.msra.mxu0 0.0
        %985 = vmatpush.msra.mxu0 0.0
        %986 = vmatpush.msra.mxu0 0.0
        %987 = vmatpush.msra.mxu0 0.0
        %988 = vmatpush.msra.mxu0 0.0
        %989 = vmatpush.msra.mxu0 0.0
        %990 = vmatpush.msra.mxu0 0.0
        %991 = vmatpush.msra.mxu0 0.0
        %992 = vmatpush.msra.mxu0 0.0
        %993 = vmatpush.msra.mxu0 0.0
        %994 = vmatpush.msra.mxu0 0.0
        %995 = vmatpush.msra.mxu0 %v976
        %996 = vmatpush.msra.mxu0 %v965
        %997 = vmatmul.f32.gmra.mxu0 %v972
        %v998 = vpop.f32.mrf.mxu0
        %v999 = vadd.f32 0.0, %v998
        %1000 = vdwg.mxu0
        %1001 = vmatpush.msra.mxu0 0.0
        %1002 = vmatpush.msra.mxu0 0.0
        %1003 = vmatpush.msra.mxu0 0.0
        %1004 = vmatpush.msra.mxu0 0.0
        %1005 = vmatpush.msra.mxu0 0.0
        %1006 = vmatpush.msra.mxu0 0.0
        %1007 = vmatpush.msra.mxu0 0.0
        %1008 = vmatpush.msra.mxu0 0.0
        %1009 = vmatpush.msra.mxu0 0.0
        %1010 = vmatpush.msra.mxu0 0.0
        %1011 = vmatpush.msra.mxu0 0.0
        %1012 = vmatpush.msra.mxu0 0.0
        %1013 = vmatpush.msra.mxu0 0.0
        %1014 = vmatpush.msra.mxu0 0.0
        %1015 = vmatpush.msra.mxu0 %v979
        %1016 = vmatpush.msra.mxu0 %v966
        %1017 = vmatmul.f32.gmra.mxu0 %v972
        %v1018 = vpop.f32.mrf.mxu0
        %v1019 = vadd.f32 0.0, %v1018
        %1020 = vdwg.mxu0
        %v1021 = vld [vmem:[#allocation2] sm:$0xff]
        %v1022 = vld [vmem:[#allocation2 + $0x8] sm:$0xff]
        %v1023 = vld [vmem:[#allocation2 + $0x10] sm:$0xff]
        %v1024 = vld [vmem:[#allocation2 + $0x18] sm:$0xff]
        %v1025 = vld [vmem:[#allocation2 + $0x20] sm:$0xff]
        %v1026 = vld [vmem:[#allocation2 + $0x28] sm:$0xff]
        %v1027 = vld [vmem:[#allocation2 + $0x30] sm:$0xff]
        %v1028 = vld [vmem:[#allocation2 + $0x38] sm:$0xff]
        %v1029 = vld [vmem:[#allocation2 + $0x40] sm:$0xff]
        %v1030 = vld [vmem:[#allocation2 + $0x48] sm:$0xff]
        %v1031 = vld [vmem:[#allocation2 + $0x50] sm:$0xff]
        %v1032 = vld [vmem:[#allocation2 + $0x58] sm:$0xff]
        %v1033 = vld [vmem:[#allocation2 + $0x60] sm:$0xff]
        %v1034 = vld [vmem:[#allocation2 + $0x68] sm:$0xff]
        %v1035 = vld [vmem:[#allocation2 + $0x70] sm:$0xff]
        %v1036 = vld [vmem:[#allocation2 + $0x78] sm:$0xff]
        %v1037 = vld [vmem:[#allocation2 + $0x80] sm:$0xff]
        %v1038 = vld [vmem:[#allocation2 + $0x88] sm:$0xff]
        %v1039 = vld [vmem:[#allocation2 + $0x90] sm:$0xff]
        %v1040 = vld [vmem:[#allocation2 + $0x98] sm:$0xff]
        %vm1041 = vcmask 261120
        %v1043 = vsel %vm1041, %v1019, 0
        %1045 = vmatpush.msra.mxu0 %v1036
        %1046 = vmatpush.msra.mxu0 %v1035
        %1047 = vmatpush.msra.mxu0 %v1034
        %1048 = vmatpush.msra.mxu0 %v1033
        %1049 = vmatpush.msra.mxu0 %v1032
        %1050 = vmatpush.msra.mxu0 %v1031
        %1051 = vmatpush.msra.mxu0 %v1030
        %1052 = vmatpush.msra.mxu0 %v1029
        %1053 = vmatpush.msra.mxu0 %v1028
        %1054 = vmatpush.msra.mxu0 %v1027
        %1055 = vmatpush.msra.mxu0 %v1026
        %1056 = vmatpush.msra.mxu0 %v1025
        %1057 = vmatpush.msra.mxu0 %v1024
        %1058 = vmatpush.msra.mxu0 %v1023
        %1059 = vmatpush.msra.mxu0 %v1022
        %1060 = vmatpush.msra.mxu0 %v1021
        %1061 = vmatmul.f32.gmra.mxu0 %v999
        %v1062 = vpop.f32.mrf.mxu0
        %v1063 = vadd.f32 0.0, %v1062
        %1064 = vdwg.mxu0
        %1065 = vmatpush.msra.mxu0 0.0
        %1066 = vmatpush.msra.mxu0 0.0
        %1067 = vmatpush.msra.mxu0 0.0
        %1068 = vmatpush.msra.mxu0 0.0
        %1069 = vmatpush.msra.mxu0 0.0
        %1070 = vmatpush.msra.mxu0 0.0
        %1071 = vmatpush.msra.mxu0 0.0
        %1072 = vmatpush.msra.mxu0 0.0
        %1073 = vmatpush.msra.mxu0 0.0
        %1074 = vmatpush.msra.mxu0 0.0
        %1075 = vmatpush.msra.mxu0 0.0
        %1076 = vmatpush.msra.mxu0 0.0
        %1077 = vmatpush.msra.mxu0 %v1040
        %1078 = vmatpush.msra.mxu0 %v1039
        %1079 = vmatpush.msra.mxu0 %v1038
        %1080 = vmatpush.msra.mxu0 %v1037
        %1081 = vmatmul.f32.gmra.mxu0 %v1043
        %v1082 = vpop.f32.mrf.mxu0
        %v1083 = vadd.f32 %v1063, %v1082
        %1084 = vdwg.mxu0
        %s1085 = scalar_lea.vmem [#allocation2], 160
        %v1086 = vld [vmem:[%s1085] sm:$0xff]
        %v1087 = vld [vmem:[%s1085 + $0x8] sm:$0xff]
        %v1088 = vld [vmem:[%s1085 + $0x10] sm:$0xff]
        %v1089 = vld [vmem:[%s1085 + $0x18] sm:$0xff]
        %v1090 = vld [vmem:[%s1085 + $0x20] sm:$0xff]
        %v1091 = vld [vmem:[%s1085 + $0x28] sm:$0xff]
        %v1092 = vld [vmem:[%s1085 + $0x30] sm:$0xff]
        %v1093 = vld [vmem:[%s1085 + $0x38] sm:$0xff]
        %v1094 = vld [vmem:[%s1085 + $0x40] sm:$0xff]
        %v1095 = vld [vmem:[%s1085 + $0x48] sm:$0xff]
        %v1096 = vld [vmem:[%s1085 + $0x50] sm:$0xff]
        %v1097 = vld [vmem:[%s1085 + $0x58] sm:$0xff]
        %v1098 = vld [vmem:[%s1085 + $0x60] sm:$0xff]
        %v1099 = vld [vmem:[%s1085 + $0x68] sm:$0xff]
        %v1100 = vld [vmem:[%s1085 + $0x70] sm:$0xff]
        %v1101 = vld [vmem:[%s1085 + $0x78] sm:$0xff]
        %v1102 = vld [vmem:[%s1085 + $0x80] sm:$0xff]
        %v1103 = vld [vmem:[%s1085 + $0x88] sm:$0xff]
        %v1104 = vld [vmem:[%s1085 + $0x90] sm:$0xff]
        %v1105 = vld [vmem:[%s1085 + $0x98] sm:$0xff]
        %1106 = vmatpush.msra.mxu0 %v1101
        %1107 = vmatpush.msra.mxu0 %v1100
        %1108 = vmatpush.msra.mxu0 %v1099
        %1109 = vmatpush.msra.mxu0 %v1098
        %1110 = vmatpush.msra.mxu0 %v1097
        %1111 = vmatpush.msra.mxu0 %v1096
        %1112 = vmatpush.msra.mxu0 %v1095
        %1113 = vmatpush.msra.mxu0 %v1094
        %1114 = vmatpush.msra.mxu0 %v1093
        %1115 = vmatpush.msra.mxu0 %v1092
        %1116 = vmatpush.msra.mxu0 %v1091
        %1117 = vmatpush.msra.mxu0 %v1090
        %1118 = vmatpush.msra.mxu0 %v1089
        %1119 = vmatpush.msra.mxu0 %v1088
        %1120 = vmatpush.msra.mxu0 %v1087
        %1121 = vmatpush.msra.mxu0 %v1086
        %1122 = vmatmul.f32.gmra.mxu0 %v999
        %v1123 = vpop.f32.mrf.mxu0
        %v1124 = vadd.f32 0.0, %v1123
        %1125 = vdwg.mxu0
        %1126 = vmatpush.msra.mxu0 0.0
        %1127 = vmatpush.msra.mxu0 0.0
        %1128 = vmatpush.msra.mxu0 0.0
        %1129 = vmatpush.msra.mxu0 0.0
        %1130 = vmatpush.msra.mxu0 0.0
        %1131 = vmatpush.msra.mxu0 0.0
        %1132 = vmatpush.msra.mxu0 0.0
        %1133 = vmatpush.msra.mxu0 0.0
        %1134 = vmatpush.msra.mxu0 0.0
        %1135 = vmatpush.msra.mxu0 0.0
        %1136 = vmatpush.msra.mxu0 0.0
        %1137 = vmatpush.msra.mxu0 0.0
        %1138 = vmatpush.msra.mxu0 %v1105
        %1139 = vmatpush.msra.mxu0 %v1104
        %1140 = vmatpush.msra.mxu0 %v1103
        %1141 = vmatpush.msra.mxu0 %v1102
        %1142 = vmatmul.f32.gmra.mxu0 %v1043
        %v1143 = vpop.f32.mrf.mxu0
        %v1144 = vadd.f32 %v1124, %v1143
        %1145 = vdwg.mxu0
        %v1146 = vmax.f32 %v1083, %v1144
        %s1147 = scalar_lea.vmem %s4, 8
        %v1148 = vld [vmem:[%s1147] sm:$0x1f]
        %v1150 = vsel %vm970, %v1148, 0
        %1152 = vmatpush.msra.mxu0 0.0
        %1153 = vmatpush.msra.mxu0 0.0
        %1154 = vmatpush.msra.mxu0 0.0
        %1155 = vmatpush.msra.mxu0 0.0
        %1156 = vmatpush.msra.mxu0 0.0
        %1157 = vmatpush.msra.mxu0 0.0
        %1158 = vmatpush.msra.mxu0 0.0
        %1159 = vmatpush.msra.mxu0 0.0
        %1160 = vmatpush.msra.mxu0 0.0
        %1161 = vmatpush.msra.mxu0 0.0
        %1162 = vmatpush.msra.mxu0 0.0
        %1163 = vmatpush.msra.mxu0 0.0
        %1164 = vmatpush.msra.mxu0 0.0
        %1165 = vmatpush.msra.mxu0 0.0
        %1166 = vmatpush.msra.mxu0 %v976
        %1167 = vmatpush.msra.mxu0 %v965
        %1168 = vmatmul.f32.gmra.mxu0 %v1150
        %v1169 = vpop.f32.mrf.mxu0
        %v1170 = vadd.f32 0.0, %v1169
        %1171 = vdwg.mxu0
        %1172 = vmatpush.msra.mxu0 0.0
        %1173 = vmatpush.msra.mxu0 0.0
        %1174 = vmatpush.msra.mxu0 0.0
        %1175 = vmatpush.msra.mxu0 0.0
        %1176 = vmatpush.msra.mxu0 0.0
        %1177 = vmatpush.msra.mxu0 0.0
        %1178 = vmatpush.msra.mxu0 0.0
        %1179 = vmatpush.msra.mxu0 0.0
        %1180 = vmatpush.msra.mxu0 0.0
        %1181 = vmatpush.msra.mxu0 0.0
        %1182 = vmatpush.msra.mxu0 0.0
        %1183 = vmatpush.msra.mxu0 0.0
        %1184 = vmatpush.msra.mxu0 0.0
        %1185 = vmatpush.msra.mxu0 0.0
        %1186 = vmatpush.msra.mxu0 %v979
        %1187 = vmatpush.msra.mxu0 %v966
        %1188 = vmatmul.f32.gmra.mxu0 %v1150
        %v1189 = vpop.f32.mrf.mxu0
        %v1190 = vadd.f32 0.0, %v1189
        %1191 = vdwg.mxu0
        %v1193 = vsel %vm1041, %v1190, 0
        %1195 = vmatpush.msra.mxu0 %v1036
        %1196 = vmatpush.msra.mxu0 %v1035
        %1197 = vmatpush.msra.mxu0 %v1034
        %1198 = vmatpush.msra.mxu0 %v1033
        %1199 = vmatpush.msra.mxu0 %v1032
        %1200 = vmatpush.msra.mxu0 %v1031
        %1201 = vmatpush.msra.mxu0 %v1030
        %1202 = vmatpush.msra.mxu0 %v1029
        %1203 = vmatpush.msra.mxu0 %v1028
        %1204 = vmatpush.msra.mxu0 %v1027
        %1205 = vmatpush.msra.mxu0 %v1026
        %1206 = vmatpush.msra.mxu0 %v1025
        %1207 = vmatpush.msra.mxu0 %v1024
        %1208 = vmatpush.msra.mxu0 %v1023
        %1209 = vmatpush.msra.mxu0 %v1022
        %1210 = vmatpush.msra.mxu0 %v1021
        %1211 = vmatmul.f32.gmra.mxu0 %v1170
        %v1212 = vpop.f32.mrf.mxu0
        %v1213 = vadd.f32 0.0, %v1212
        %1214 = vdwg.mxu0
        %1215 = vmatpush.msra.mxu0 0.0
        %1216 = vmatpush.msra.mxu0 0.0
        %1217 = vmatpush.msra.mxu0 0.0
        %1218 = vmatpush.msra.mxu0 0.0
        %1219 = vmatpush.msra.mxu0 0.0
        %1220 = vmatpush.msra.mxu0 0.0
        %1221 = vmatpush.msra.mxu0 0.0
        %1222 = vmatpush.msra.mxu0 0.0
        %1223 = vmatpush.msra.mxu0 0.0
        %1224 = vmatpush.msra.mxu0 0.0
        %1225 = vmatpush.msra.mxu0 0.0
        %1226 = vmatpush.msra.mxu0 0.0
        %1227 = vmatpush.msra.mxu0 %v1040
        %1228 = vmatpush.msra.mxu0 %v1039
        %1229 = vmatpush.msra.mxu0 %v1038
        %1230 = vmatpush.msra.mxu0 %v1037
        %1231 = vmatmul.f32.gmra.mxu0 %v1193
        %v1232 = vpop.f32.mrf.mxu0
        %v1233 = vadd.f32 %v1213, %v1232
        %1234 = vdwg.mxu0
        %v1235 = vmax.f32 %v1146, %v1233
        %1236 = vmatpush.msra.mxu0 %v1101
        %1237 = vmatpush.msra.mxu0 %v1100
        %1238 = vmatpush.msra.mxu0 %v1099
        %1239 = vmatpush.msra.mxu0 %v1098
        %1240 = vmatpush.msra.mxu0 %v1097
        %1241 = vmatpush.msra.mxu0 %v1096
        %1242 = vmatpush.msra.mxu0 %v1095
        %1243 = vmatpush.msra.mxu0 %v1094
        %1244 = vmatpush.msra.mxu0 %v1093
        %1245 = vmatpush.msra.mxu0 %v1092
        %1246 = vmatpush.msra.mxu0 %v1091
        %1247 = vmatpush.msra.mxu0 %v1090
        %1248 = vmatpush.msra.mxu0 %v1089
        %1249 = vmatpush.msra.mxu0 %v1088
        %1250 = vmatpush.msra.mxu0 %v1087
        %1251 = vmatpush.msra.mxu0 %v1086
        %1252 = vmatmul.f32.gmra.mxu0 %v1170
        %v1253 = vpop.f32.mrf.mxu0
        %v1254 = vadd.f32 0.0, %v1253
        %1255 = vdwg.mxu0
        %1256 = vmatpush.msra.mxu0 0.0
        %1257 = vmatpush.msra.mxu0 0.0
        %1258 = vmatpush.msra.mxu0 0.0
        %1259 = vmatpush.msra.mxu0 0.0
        %1260 = vmatpush.msra.mxu0 0.0
        %1261 = vmatpush.msra.mxu0 0.0
        %1262 = vmatpush.msra.mxu0 0.0
        %1263 = vmatpush.msra.mxu0 0.0
        %1264 = vmatpush.msra.mxu0 0.0
        %1265 = vmatpush.msra.mxu0 0.0
        %1266 = vmatpush.msra.mxu0 0.0
        %1267 = vmatpush.msra.mxu0 0.0
        %1268 = vmatpush.msra.mxu0 %v1105
        %1269 = vmatpush.msra.mxu0 %v1104
        %1270 = vmatpush.msra.mxu0 %v1103
        %1271 = vmatpush.msra.mxu0 %v1102
        %1272 = vmatmul.f32.gmra.mxu0 %v1193
        %v1273 = vpop.f32.mrf.mxu0
        %v1274 = vadd.f32 %v1254, %v1273
        %1275 = vdwg.mxu0
        %v1276 = vmax.f32 %v1235, %v1274
        %v1277 = vld [vmem:[%s6] sm:$0x7]
        %vm1278 = vcmask 39936
        %v1280 = vsel %vm1278, %v1277, 0
        %vm1282 = vcmask 1044480
        %v1284 = vsel %vm1282, %v1276, 0
        %1286 = vmatpush.msra.mxu0 0.0
        %1287 = vmatpush.msra.mxu0 0.0
        %1288 = vmatpush.msra.mxu0 0.0
        %1289 = vmatpush.msra.mxu0 0.0
        %1290 = vmatpush.msra.mxu0 0.0
        %1291 = vmatpush.msra.mxu0 0.0
        %1292 = vmatpush.msra.mxu0 0.0
        %1293 = vmatpush.msra.mxu0 0.0
        %1294 = vmatpush.msra.mxu0 0.0
        %1295 = vmatpush.msra.mxu0 0.0
        %1296 = vmatpush.msra.mxu0 0.0
        %1297 = vmatpush.msra.mxu0 0.0
        %1298 = vmatpush.msra.mxu0 0.0
        %1299 = vmatpush.msra.mxu0 0.0
        %1300 = vmatpush.msra.mxu0 0.0
        %1301 = vmatpush.msra.mxu0 %v1284
        %1302 = vmatmul.f32.gmra.mxu0 %v1280
        %v1303 = vpop.f32.mrf.mxu0
        %v1304 = vadd.f32 0.0, %v1303
        %1305 = vdwg.mxu0
        %v1306 = vld [vmem:[%s7] sm:$0xff]
        %v1307 = vld [vmem:[%s7 + $0x8] sm:$0xff]
        %v1308 = vld [vmem:[%s7 + $0x10] sm:$0xff]
        %v1309 = vld [vmem:[%s7 + $0x18] sm:$0xff]
        %v1310 = vld [vmem:[%s7 + $0x20] sm:$0xff]
        %v1311 = vld [vmem:[%s7 + $0x28] sm:$0xff]
        %v1312 = vld [vmem:[%s7 + $0x30] sm:$0xff]
        %v1313 = vld [vmem:[%s7 + $0x38] sm:$0xff]
        %v1314 = vld [vmem:[%s7 + $0x40] sm:$0xff]
        %v1315 = vld [vmem:[%s7 + $0x48] sm:$0xff]
        %s1316 = scalar_lea.vmem %s6, 4
        %v1317 = vld [vmem:[%s1316] sm:$0x7]
        %v1319 = vsel %vm1278, %v1317, 0
        %1321 = vmatpush.msra.mxu0 0.0
        %1322 = vmatpush.msra.mxu0 0.0
        %1323 = vmatpush.msra.mxu0 0.0
        %1324 = vmatpush.msra.mxu0 0.0
        %1325 = vmatpush.msra.mxu0 0.0
        %1326 = vmatpush.msra.mxu0 0.0
        %1327 = vmatpush.msra.mxu0 0.0
        %1328 = vmatpush.msra.mxu0 0.0
        %1329 = vmatpush.msra.mxu0 0.0
        %1330 = vmatpush.msra.mxu0 0.0
        %1331 = vmatpush.msra.mxu0 0.0
        %1332 = vmatpush.msra.mxu0 0.0
        %1333 = vmatpush.msra.mxu0 0.0
        %1334 = vmatpush.msra.mxu0 0.0
        %1335 = vmatpush.msra.mxu0 0.0
        %1336 = vmatpush.msra.mxu0 %v1284
        %1337 = vmatmul.f32.gmra.mxu0 %v1319
        %v1338 = vpop.f32.mrf.mxu0
        %v1339 = vadd.f32 0.0, %v1338
        %1340 = vdwg.mxu0
        %s1341 = scalar_lea.vmem %s7, 80
        %v1342 = vld [vmem:[%s1341] sm:$0xff]
        %v1343 = vld [vmem:[%s1341 + $0x8] sm:$0xff]
        %v1344 = vld [vmem:[%s1341 + $0x10] sm:$0xff]
        %v1345 = vld [vmem:[%s1341 + $0x18] sm:$0xff]
        %v1346 = vld [vmem:[%s1341 + $0x20] sm:$0xff]
        %v1347 = vld [vmem:[%s1341 + $0x28] sm:$0xff]
        %v1348 = vld [vmem:[%s1341 + $0x30] sm:$0xff]
        %v1349 = vld [vmem:[%s1341 + $0x38] sm:$0xff]
        %v1350 = vld [vmem:[%s1341 + $0x40] sm:$0xff]
        %v1351 = vld [vmem:[%s1341 + $0x48] sm:$0xff]
        %vm1352 = vcmask 654336
        %v1354 = vsel %vm1352, %v1339, 0
        %1356 = vmatpush.msra.mxu0 0.0
        %1357 = vmatpush.msra.mxu0 0.0
        %1358 = vmatpush.msra.mxu0 0.0
        %1359 = vmatpush.msra.mxu0 0.0
        %1360 = vmatpush.msra.mxu0 0.0
        %1361 = vmatpush.msra.mxu0 0.0
        %1362 = vmatpush.msra.mxu0 %v1351
        %1363 = vmatpush.msra.mxu0 %v1350
        %1364 = vmatpush.msra.mxu0 %v1349
        %1365 = vmatpush.msra.mxu0 %v1348
        %1366 = vmatpush.msra.mxu0 %v1347
        %1367 = vmatpush.msra.mxu0 %v1346
        %1368 = vmatpush.msra.mxu0 %v1345
        %1369 = vmatpush.msra.mxu0 %v1344
        %1370 = vmatpush.msra.mxu0 %v1343
        %1371 = vmatpush.msra.mxu0 %v1342
        %1372 = vmatmul.f32.gmra.mxu0 %v1354
        %v1373 = vpop.f32.mrf.mxu0
        %v1374 = vadd.f32 0.0, %v1373
        %1375 = vdwg.mxu0
        %v1377 = vsel %vm1352, %v1304, 0
        %1379 = vmatpush.msra.mxu0 0.0
        %1380 = vmatpush.msra.mxu0 0.0
        %1381 = vmatpush.msra.mxu0 0.0
        %1382 = vmatpush.msra.mxu0 0.0
        %1383 = vmatpush.msra.mxu0 0.0
        %1384 = vmatpush.msra.mxu0 0.0
        %1385 = vmatpush.msra.mxu0 %v1315
        %1386 = vmatpush.msra.mxu0 %v1314
        %1387 = vmatpush.msra.mxu0 %v1313
        %1388 = vmatpush.msra.mxu0 %v1312
        %1389 = vmatpush.msra.mxu0 %v1311
        %1390 = vmatpush.msra.mxu0 %v1310
        %1391 = vmatpush.msra.mxu0 %v1309
        %1392 = vmatpush.msra.mxu0 %v1308
        %1393 = vmatpush.msra.mxu0 %v1307
        %1394 = vmatpush.msra.mxu0 %v1306
        %1395 = vmatmul.f32.gmra.mxu0 %v1377
        %v1396 = vpop.f32.mrf.mxu0
        %v1397 = vadd.f32 %v1374, %v1396
        %1398 = vdwg.mxu0
        %s1399 = scalar_lea.vmem %s6, 8
        %v1400 = vld [vmem:[%s1399] sm:$0x7]
        %v1402 = vsel %vm1278, %v1400, 0
        %1404 = vmatpush.msra.mxu0 0.0
        %1405 = vmatpush.msra.mxu0 0.0
        %1406 = vmatpush.msra.mxu0 0.0
        %1407 = vmatpush.msra.mxu0 0.0
        %1408 = vmatpush.msra.mxu0 0.0
        %1409 = vmatpush.msra.mxu0 0.0
        %1410 = vmatpush.msra.mxu0 0.0
        %1411 = vmatpush.msra.mxu0 0.0
        %1412 = vmatpush.msra.mxu0 0.0
        %1413 = vmatpush.msra.mxu0 0.0
        %1414 = vmatpush.msra.mxu0 0.0
        %1415 = vmatpush.msra.mxu0 0.0
        %1416 = vmatpush.msra.mxu0 0.0
        %1417 = vmatpush.msra.mxu0 0.0
        %1418 = vmatpush.msra.mxu0 0.0
        %1419 = vmatpush.msra.mxu0 %v1284
        %1420 = vmatmul.f32.gmra.mxu0 %v1402
        %v1421 = vpop.f32.mrf.mxu0
        %v1422 = vadd.f32 0.0, %v1421
        %1423 = vdwg.mxu0
        %s1424 = scalar_lea.vmem %s7, 160
        %v1425 = vld [vmem:[%s1424] sm:$0xff]
        %v1426 = vld [vmem:[%s1424 + $0x8] sm:$0xff]
        %v1427 = vld [vmem:[%s1424 + $0x10] sm:$0xff]
        %v1428 = vld [vmem:[%s1424 + $0x18] sm:$0xff]
        %v1429 = vld [vmem:[%s1424 + $0x20] sm:$0xff]
        %v1430 = vld [vmem:[%s1424 + $0x28] sm:$0xff]
        %v1431 = vld [vmem:[%s1424 + $0x30] sm:$0xff]
        %v1432 = vld [vmem:[%s1424 + $0x38] sm:$0xff]
        %v1433 = vld [vmem:[%s1424 + $0x40] sm:$0xff]
        %v1434 = vld [vmem:[%s1424 + $0x48] sm:$0xff]
        %v1436 = vsel %vm1352, %v1422, 0
        %1438 = vmatpush.msra.mxu0 0.0
        %1439 = vmatpush.msra.mxu0 0.0
        %1440 = vmatpush.msra.mxu0 0.0
        %1441 = vmatpush.msra.mxu0 0.0
        %1442 = vmatpush.msra.mxu0 0.0
        %1443 = vmatpush.msra.mxu0 0.0
        %1444 = vmatpush.msra.mxu0 %v1434
        %1445 = vmatpush.msra.mxu0 %v1433
        %1446 = vmatpush.msra.mxu0 %v1432
        %1447 = vmatpush.msra.mxu0 %v1431
        %1448 = vmatpush.msra.mxu0 %v1430
        %1449 = vmatpush.msra.mxu0 %v1429
        %1450 = vmatpush.msra.mxu0 %v1428
        %1451 = vmatpush.msra.mxu0 %v1427
        %1452 = vmatpush.msra.mxu0 %v1426
        %1453 = vmatpush.msra.mxu0 %v1425
        %1454 = vmatmul.f32.gmra.mxu0 %v1436
        %v1455 = vpop.f32.mrf.mxu0
        %v1456 = vadd.f32 0.0, %v1455
        %1457 = vdwg.mxu0
        %v1458 = vadd.f32 %v1397, %v1456
        %v1459 = vld [vmem:[%s8] sm:$0x1]
        %v1461 = vperm.slane %v1459, 0
        %v1463 = vadd.f32 %v1458, %v1461
        %v1464 = vmax.f32 %v1463, 0.0
        %v1465 = vld [vmem:[%s9] sm:$0x3]
        %vm1466 = vcmask 23552
        %v1468 = vsel %vm1466, %v1465, 0
        %vm1470 = vcmask 1042432
        %v1472 = vsel %vm1470, %v1464, 0
        %1474 = vmatpush.msra.mxu0 0.0
        %1475 = vmatpush.msra.mxu0 0.0
        %1476 = vmatpush.msra.mxu0 0.0
        %1477 = vmatpush.msra.mxu0 0.0
        %1478 = vmatpush.msra.mxu0 0.0
        %1479 = vmatpush.msra.mxu0 0.0
        %1480 = vmatpush.msra.mxu0 0.0
        %1481 = vmatpush.msra.mxu0 0.0
        %1482 = vmatpush.msra.mxu0 0.0
        %1483 = vmatpush.msra.mxu0 0.0
        %1484 = vmatpush.msra.mxu0 0.0
        %1485 = vmatpush.msra.mxu0 0.0
        %1486 = vmatpush.msra.mxu0 0.0
        %1487 = vmatpush.msra.mxu0 0.0
        %1488 = vmatpush.msra.mxu0 0.0
        %1489 = vmatpush.msra.mxu0 %v1472
        %1490 = vmatmul.f32.gmra.mxu0 %v1468
        %v1491 = vpop.f32.mrf.mxu0
        %v1492 = vadd.f32 0.0, %v1491
        %1493 = vdwg.mxu0
        %v1494 = vld [vmem:[%s10] sm:$0xff]
        %v1495 = vld [vmem:[%s10 + $0x8] sm:$0xff]
        %v1496 = vld [vmem:[%s10 + $0x10] sm:$0xff]
        %vm1497 = vcmask 195584
        %v1499 = vsel %vm1497, %v1492, 0
        %1501 = vmatpush.msra.mxu0 0.0
        %1502 = vmatpush.msra.mxu0 0.0
        %1503 = vmatpush.msra.mxu0 0.0
        %1504 = vmatpush.msra.mxu0 0.0
        %1505 = vmatpush.msra.mxu0 0.0
        %1506 = vmatpush.msra.mxu0 0.0
        %1507 = vmatpush.msra.mxu0 0.0
        %1508 = vmatpush.msra.mxu0 0.0
        %1509 = vmatpush.msra.mxu0 0.0
        %1510 = vmatpush.msra.mxu0 0.0
        %1511 = vmatpush.msra.mxu0 0.0
        %1512 = vmatpush.msra.mxu0 0.0
        %1513 = vmatpush.msra.mxu0 0.0
        %1514 = vmatpush.msra.mxu0 %v1496
        %1515 = vmatpush.msra.mxu0 %v1495
        %1516 = vmatpush.msra.mxu0 %v1494
        %1517 = vmatmul.f32.gmra.mxu0 %v1499
        %v1518 = vpop.f32.mrf.mxu0
        %v1519 = vadd.f32 0.0, %v1518
        %1520 = vdwg.mxu0
        %s1521 = scalar_lea.vmem %s10, 24
        %v1522 = vld [vmem:[%s1521] sm:$0xff]
        %v1523 = vld [vmem:[%s1521 + $0x8] sm:$0xff]
        %v1524 = vld [vmem:[%s1521 + $0x10] sm:$0xff]
        %1525 = vmatpush.msra.mxu0 0.0
        %1526 = vmatpush.msra.mxu0 0.0
        %1527 = vmatpush.msra.mxu0 0.0
        %1528 = vmatpush.msra.mxu0 0.0
        %1529 = vmatpush.msra.mxu0 0.0
        %1530 = vmatpush.msra.mxu0 0.0
        %1531 = vmatpush.msra.mxu0 0.0
        %1532 = vmatpush.msra.mxu0 0.0
        %1533 = vmatpush.msra.mxu0 0.0
        %1534 = vmatpush.msra.mxu0 0.0
        %1535 = vmatpush.msra.mxu0 0.0
        %1536 = vmatpush.msra.mxu0 0.0
        %1537 = vmatpush.msra.mxu0 0.0
        %1538 = vmatpush.msra.mxu0 %v1524
        %1539 = vmatpush.msra.mxu0 %v1523
        %1540 = vmatpush.msra.mxu0 %v1522
        %1541 = vmatmul.f32.gmra.mxu0 %v1499
        %v1542 = vpop.f32.mrf.mxu0
        %v1543 = vadd.f32 0.0, %v1542
        %1544 = vdwg.mxu0
        %v1545 = vmax.f32 %v1519, %v1543
        %s1546 = scalar_lea.vmem %s9, 2
        %v1547 = vld [vmem:[%s1546] sm:$0x3]
        %v1549 = vsel %vm1466, %v1547, 0
        %1551 = vmatpush.msra.mxu0 0.0
        %1552 = vmatpush.msra.mxu0 0.0
        %1553 = vmatpush.msra.mxu0 0.0
        %1554 = vmatpush.msra.mxu0 0.0
        %1555 = vmatpush.msra.mxu0 0.0
        %1556 = vmatpush.msra.mxu0 0.0
        %1557 = vmatpush.msra.mxu0 0.0
        %1558 = vmatpush.msra.mxu0 0.0
        %1559 = vmatpush.msra.mxu0 0.0
        %1560 = vmatpush.msra.mxu0 0.0
        %1561 = vmatpush.msra.mxu0 0.0
        %1562 = vmatpush.msra.mxu0 0.0
        %1563 = vmatpush.msra.mxu0 0.0
        %1564 = vmatpush.msra.mxu0 0.0
        %1565 = vmatpush.msra.mxu0 0.0
        %1566 = vmatpush.msra.mxu0 %v1472
        %1567 = vmatmul.f32.gmra.mxu0 %v1549
        %v1568 = vpop.f32.mrf.mxu0
        %v1569 = vadd.f32 0.0, %v1568
        %1570 = vdwg.mxu0
        %v1572 = vsel %vm1497, %v1569, 0
        %1574 = vmatpush.msra.mxu0 0.0
        %1575 = vmatpush.msra.mxu0 0.0
        %1576 = vmatpush.msra.mxu0 0.0
        %1577 = vmatpush.msra.mxu0 0.0
        %1578 = vmatpush.msra.mxu0 0.0
        %1579 = vmatpush.msra.mxu0 0.0
        %1580 = vmatpush.msra.mxu0 0.0
        %1581 = vmatpush.msra.mxu0 0.0
        %1582 = vmatpush.msra.mxu0 0.0
        %1583 = vmatpush.msra.mxu0 0.0
        %1584 = vmatpush.msra.mxu0 0.0
        %1585 = vmatpush.msra.mxu0 0.0
        %1586 = vmatpush.msra.mxu0 0.0
        %1587 = vmatpush.msra.mxu0 %v1496
        %1588 = vmatpush.msra.mxu0 %v1495
        %1589 = vmatpush.msra.mxu0 %v1494
        %1590 = vmatmul.f32.gmra.mxu0 %v1572
        %v1591 = vpop.f32.mrf.mxu0
        %v1592 = vadd.f32 0.0, %v1591
        %1593 = vdwg.mxu0
        %v1594 = vmax.f32 %v1545, %v1592
        %1595 = vmatpush.msra.mxu0 0.0
        %1596 = vmatpush.msra.mxu0 0.0
        %1597 = vmatpush.msra.mxu0 0.0
        %1598 = vmatpush.msra.mxu0 0.0
        %1599 = vmatpush.msra.mxu0 0.0
        %1600 = vmatpush.msra.mxu0 0.0
        %1601 = vmatpush.msra.mxu0 0.0
        %1602 = vmatpush.msra.mxu0 0.0
        %1603 = vmatpush.msra.mxu0 0.0
        %1604 = vmatpush.msra.mxu0 0.0
        %1605 = vmatpush.msra.mxu0 0.0
        %1606 = vmatpush.msra.mxu0 0.0
        %1607 = vmatpush.msra.mxu0 0.0
        %1608 = vmatpush.msra.mxu0 %v1524
        %1609 = vmatpush.msra.mxu0 %v1523
        %1610 = vmatpush.msra.mxu0 %v1522
        %1611 = vmatmul.f32.gmra.mxu0 %v1572
        %v1612 = vpop.f32.mrf.mxu0
        %v1613 = vadd.f32 0.0, %v1612
        %1614 = vdwg.mxu0
        %v1615 = vmax.f32 %v1594, %v1613
        %v1616 = vld [vmem:[%s11] sm:$0x1f]
        %vm1617 = vcmask 15360
        %v1619 = vsel %vm1617, %v1616, 0
        %v1622 = vsel %vm974, %v1615, 0
        %1624 = vmatpush.msra.mxu0 0.0
        %1625 = vmatpush.msra.mxu0 0.0
        %1626 = vmatpush.msra.mxu0 0.0
        %1627 = vmatpush.msra.mxu0 0.0
        %1628 = vmatpush.msra.mxu0 0.0
        %1629 = vmatpush.msra.mxu0 0.0
        %1630 = vmatpush.msra.mxu0 0.0
        %1631 = vmatpush.msra.mxu0 0.0
        %1632 = vmatpush.msra.mxu0 0.0
        %1633 = vmatpush.msra.mxu0 0.0
        %1634 = vmatpush.msra.mxu0 0.0
        %1635 = vmatpush.msra.mxu0 0.0
        %1636 = vmatpush.msra.mxu0 0.0
        %1637 = vmatpush.msra.mxu0 0.0
        %1638 = vmatpush.msra.mxu0 0.0
        %1639 = vmatpush.msra.mxu0 %v1622
        %1640 = vmatmul.f32.gmra.mxu0 %v1619
        %v1641 = vpop.f32.mrf.mxu0
        %v1642 = vadd.f32 0.0, %v1641
        %1643 = vdwg.mxu0
        %v1644 = vld [vmem:[%s12] sm:$0xff]
        %v1645 = vld [vmem:[%s12 + $0x8] sm:$0xff]
        %s1646 = scalar_lea.vmem %s11, 8
        %v1647 = vld [vmem:[%s1646] sm:$0x1f]
        %v1649 = vsel %vm1617, %v1647, 0
        %1651 = vmatpush.msra.mxu0 0.0
        %1652 = vmatpush.msra.mxu0 0.0
        %1653 = vmatpush.msra.mxu0 0.0
        %1654 = vmatpush.msra.mxu0 0.0
        %1655 = vmatpush.msra.mxu0 0.0
        %1656 = vmatpush.msra.mxu0 0.0
        %1657 = vmatpush.msra.mxu0 0.0
        %1658 = vmatpush.msra.mxu0 0.0
        %1659 = vmatpush.msra.mxu0 0.0
        %1660 = vmatpush.msra.mxu0 0.0
        %1661 = vmatpush.msra.mxu0 0.0
        %1662 = vmatpush.msra.mxu0 0.0
        %1663 = vmatpush.msra.mxu0 0.0
        %1664 = vmatpush.msra.mxu0 0.0
        %1665 = vmatpush.msra.mxu0 0.0
        %1666 = vmatpush.msra.mxu0 %v1622
        %1667 = vmatmul.f32.gmra.mxu0 %v1649
        %v1668 = vpop.f32.mrf.mxu0
        %v1669 = vadd.f32 0.0, %v1668
        %1670 = vdwg.mxu0
        %s1671 = scalar_lea.vmem %s12, 16
        %v1672 = vld [vmem:[%s1671] sm:$0xff]
        %v1673 = vld [vmem:[%s1671 + $0x8] sm:$0xff]
        %vm1674 = vcmask 130048
        %v1676 = vsel %vm1674, %v1669, 0
        %1678 = vmatpush.msra.mxu0 0.0
        %1679 = vmatpush.msra.mxu0 0.0
        %1680 = vmatpush.msra.mxu0 0.0
        %1681 = vmatpush.msra.mxu0 0.0
        %1682 = vmatpush.msra.mxu0 0.0
        %1683 = vmatpush.msra.mxu0 0.0
        %1684 = vmatpush.msra.mxu0 0.0
        %1685 = vmatpush.msra.mxu0 0.0
        %1686 = vmatpush.msra.mxu0 0.0
        %1687 = vmatpush.msra.mxu0 0.0
        %1688 = vmatpush.msra.mxu0 0.0
        %1689 = vmatpush.msra.mxu0 0.0
        %1690 = vmatpush.msra.mxu0 0.0
        %1691 = vmatpush.msra.mxu0 0.0
        %1692 = vmatpush.msra.mxu0 %v1673
        %1693 = vmatpush.msra.mxu0 %v1672
        %1694 = vmatmul.f32.gmra.mxu0 %v1676
        %v1695 = vpop.f32.mrf.mxu0
        %v1696 = vadd.f32 0.0, %v1695
        %1697 = vdwg.mxu0
        %v1699 = vsel %vm1674, %v1642, 0
        %1701 = vmatpush.msra.mxu0 0.0
        %1702 = vmatpush.msra.mxu0 0.0
        %1703 = vmatpush.msra.mxu0 0.0
        %1704 = vmatpush.msra.mxu0 0.0
        %1705 = vmatpush.msra.mxu0 0.0
        %1706 = vmatpush.msra.mxu0 0.0
        %1707 = vmatpush.msra.mxu0 0.0
        %1708 = vmatpush.msra.mxu0 0.0
        %1709 = vmatpush.msra.mxu0 0.0
        %1710 = vmatpush.msra.mxu0 0.0
        %1711 = vmatpush.msra.mxu0 0.0
        %1712 = vmatpush.msra.mxu0 0.0
        %1713 = vmatpush.msra.mxu0 0.0
        %1714 = vmatpush.msra.mxu0 0.0
        %1715 = vmatpush.msra.mxu0 %v1645
        %1716 = vmatpush.msra.mxu0 %v1644
        %1717 = vmatmul.f32.gmra.mxu0 %v1699
        %v1718 = vpop.f32.mrf.mxu0
        %v1719 = vadd.f32 %v1696, %v1718
        %1720 = vdwg.mxu0
        %s1721 = scalar_lea.vmem %s11, 16
        %v1722 = vld [vmem:[%s1721] sm:$0x1f]
        %v1724 = vsel %vm1617, %v1722, 0
        %1726 = vmatpush.msra.mxu0 0.0
        %1727 = vmatpush.msra.mxu0 0.0
        %1728 = vmatpush.msra.mxu0 0.0
        %1729 = vmatpush.msra.mxu0 0.0
        %1730 = vmatpush.msra.mxu0 0.0
        %1731 = vmatpush.msra.mxu0 0.0
        %1732 = vmatpush.msra.mxu0 0.0
        %1733 = vmatpush.msra.mxu0 0.0
        %1734 = vmatpush.msra.mxu0 0.0
        %1735 = vmatpush.msra.mxu0 0.0
        %1736 = vmatpush.msra.mxu0 0.0
        %1737 = vmatpush.msra.mxu0 0.0
        %1738 = vmatpush.msra.mxu0 0.0
        %1739 = vmatpush.msra.mxu0 0.0
        %1740 = vmatpush.msra.mxu0 0.0
        %1741 = vmatpush.msra.mxu0 %v1622
        %1742 = vmatmul.f32.gmra.mxu0 %v1724
        %v1743 = vpop.f32.mrf.mxu0
        %v1744 = vadd.f32 0.0, %v1743
        %1745 = vdwg.mxu0
        %s1746 = scalar_lea.vmem %s12, 32
        %v1747 = vld [vmem:[%s1746] sm:$0xff]
        %v1748 = vld [vmem:[%s1746 + $0x8] sm:$0xff]
        %v1750 = vsel %vm1674, %v1744, 0
        %1752 = vmatpush.msra.mxu0 0.0
        %1753 = vmatpush.msra.mxu0 0.0
        %1754 = vmatpush.msra.mxu0 0.0
        %1755 = vmatpush.msra.mxu0 0.0
        %1756 = vmatpush.msra.mxu0 0.0
        %1757 = vmatpush.msra.mxu0 0.0
        %1758 = vmatpush.msra.mxu0 0.0
        %1759 = vmatpush.msra.mxu0 0.0
        %1760 = vmatpush.msra.mxu0 0.0
        %1761 = vmatpush.msra.mxu0 0.0
        %1762 = vmatpush.msra.mxu0 0.0
        %1763 = vmatpush.msra.mxu0 0.0
        %1764 = vmatpush.msra.mxu0 0.0
        %1765 = vmatpush.msra.mxu0 0.0
        %1766 = vmatpush.msra.mxu0 %v1748
        %1767 = vmatpush.msra.mxu0 %v1747
        %1768 = vmatmul.f32.gmra.mxu0 %v1750
        %v1769 = vpop.f32.mrf.mxu0
        %v1770 = vadd.f32 0.0, %v1769
        %1771 = vdwg.mxu0
        %v1772 = vadd.f32 %v1719, %v1770
        %v1773 = vld [vmem:[%s13] sm:$0x1]
        %v1775 = vperm.slane %v1773, 0
        %v1777 = vadd.f32 %v1772, %v1775
        %v1778 = vmax.f32 %v1777, 0.0
        %v1779 = vld [vmem:[%s14] sm:$0xff]
        %v1780 = vld [vmem:[%s14 + $0x8] sm:$0x7f]
        %v1782 = vsel %vm1278, %v1779, 0
        %v1785 = vsel %vm1278, %v1780, 0
        %v1788 = vsel %vm1282, %v1778, 0
        %1790 = vmatpush.msra.mxu0 0.0
        %1791 = vmatpush.msra.mxu0 0.0
        %1792 = vmatpush.msra.mxu0 0.0
        %1793 = vmatpush.msra.mxu0 0.0
        %1794 = vmatpush.msra.mxu0 0.0
        %1795 = vmatpush.msra.mxu0 0.0
        %1796 = vmatpush.msra.mxu0 0.0
        %1797 = vmatpush.msra.mxu0 0.0
        %1798 = vmatpush.msra.mxu0 0.0
        %1799 = vmatpush.msra.mxu0 0.0
        %1800 = vmatpush.msra.mxu0 0.0
        %1801 = vmatpush.msra.mxu0 0.0
        %1802 = vmatpush.msra.mxu0 0.0
        %1803 = vmatpush.msra.mxu0 0.0
        %1804 = vmatpush.msra.mxu0 0.0
        %1805 = vmatpush.msra.mxu0 %v1788
        %1806 = vmatmul.f32.gmra.mxu0 %v1782
        %v1807 = vpop.f32.mrf.mxu0
        %v1808 = vadd.f32 0.0, %v1807
        %1809 = vmatmul.f32.gmra.mxu0 %v1785
        %v1810 = vpop.f32.mrf.mxu0
        %v1811 = vadd.f32 0.0, %v1810
        %1812 = vdwg.mxu0
        %v1813 = vld [vmem:[%s15] sm:$0xff]
        %v1814 = vld [vmem:[%s15 + $0x8] sm:$0xff]
        %v1815 = vld [vmem:[%s15 + $0x10] sm:$0xff]
        %v1816 = vld [vmem:[%s15 + $0x18] sm:$0xff]
        %v1817 = vld [vmem:[%s15 + $0x20] sm:$0xff]
        %v1818 = vld [vmem:[%s15 + $0x28] sm:$0xff]
        %v1819 = vld [vmem:[%s15 + $0x30] sm:$0xff]
        %v1820 = vld [vmem:[%s15 + $0x38] sm:$0xff]
        %v1821 = vld [vmem:[%s15 + $0x40] sm:$0xff]
        %v1822 = vld [vmem:[%s15 + $0x48] sm:$0xff]
        %s1823 = scalar_lea.vmem %s14, 16
        %v1824 = vld [vmem:[%s1823] sm:$0xff]
        %v1825 = vld [vmem:[%s1823 + $0x8] sm:$0x7f]
        %v1827 = vsel %vm1278, %v1824, 0
        %v1830 = vsel %vm1278, %v1825, 0
        %1832 = vmatpush.msra.mxu0 0.0
        %1833 = vmatpush.msra.mxu0 0.0
        %1834 = vmatpush.msra.mxu0 0.0
        %1835 = vmatpush.msra.mxu0 0.0
        %1836 = vmatpush.msra.mxu0 0.0
        %1837 = vmatpush.msra.mxu0 0.0
        %1838 = vmatpush.msra.mxu0 0.0
        %1839 = vmatpush.msra.mxu0 0.0
        %1840 = vmatpush.msra.mxu0 0.0
        %1841 = vmatpush.msra.mxu0 0.0
        %1842 = vmatpush.msra.mxu0 0.0
        %1843 = vmatpush.msra.mxu0 0.0
        %1844 = vmatpush.msra.mxu0 0.0
        %1845 = vmatpush.msra.mxu0 0.0
        %1846 = vmatpush.msra.mxu0 0.0
        %1847 = vmatpush.msra.mxu0 %v1788
        %1848 = vmatmul.f32.gmra.mxu0 %v1827
        %v1849 = vpop.f32.mrf.mxu0
        %v1850 = vadd.f32 0.0, %v1849
        %1851 = vmatmul.f32.gmra.mxu0 %v1830
        %v1852 = vpop.f32.mrf.mxu0
        %v1853 = vadd.f32 0.0, %v1852
        %1854 = vdwg.mxu0
        %s1855 = scalar_lea.vmem %s15, 80
        %v1856 = vld [vmem:[%s1855] sm:$0xff]
        %v1857 = vld [vmem:[%s1855 + $0x8] sm:$0xff]
        %v1858 = vld [vmem:[%s1855 + $0x10] sm:$0xff]
        %v1859 = vld [vmem:[%s1855 + $0x18] sm:$0xff]
        %v1860 = vld [vmem:[%s1855 + $0x20] sm:$0xff]
        %v1861 = vld [vmem:[%s1855 + $0x28] sm:$0xff]
        %v1862 = vld [vmem:[%s1855 + $0x30] sm:$0xff]
        %v1863 = vld [vmem:[%s1855 + $0x38] sm:$0xff]
        %v1864 = vld [vmem:[%s1855 + $0x40] sm:$0xff]
        %v1865 = vld [vmem:[%s1855 + $0x48] sm:$0xff]
        %v1867 = vsel %vm1352, %v1850, 0
        %v1870 = vsel %vm1352, %v1853, 0
        %1872 = vmatpush.msra.mxu0 0.0
        %1873 = vmatpush.msra.mxu0 0.0
        %1874 = vmatpush.msra.mxu0 0.0
        %1875 = vmatpush.msra.mxu0 0.0
        %1876 = vmatpush.msra.mxu0 0.0
        %1877 = vmatpush.msra.mxu0 0.0
        %1878 = vmatpush.msra.mxu0 %v1865
        %1879 = vmatpush.msra.mxu0 %v1864
        %1880 = vmatpush.msra.mxu0 %v1863
        %1881 = vmatpush.msra.mxu0 %v1862
        %1882 = vmatpush.msra.mxu0 %v1861
        %1883 = vmatpush.msra.mxu0 %v1860
        %1884 = vmatpush.msra.mxu0 %v1859
        %1885 = vmatpush.msra.mxu0 %v1858
        %1886 = vmatpush.msra.mxu0 %v1857
        %1887 = vmatpush.msra.mxu0 %v1856
        %1888 = vmatmul.f32.gmra.mxu0 %v1867
        %v1889 = vpop.f32.mrf.mxu0
        %v1890 = vadd.f32 0.0, %v1889
        %1891 = vmatmul.f32.gmra.mxu0 %v1870
        %v1892 = vpop.f32.mrf.mxu0
        %v1893 = vadd.f32 0.0, %v1892
        %1894 = vdwg.mxu0
        %v1896 = vsel %vm1352, %v1808, 0
        %v1899 = vsel %vm1352, %v1811, 0
        %1901 = vmatpush.msra.mxu0 0.0
        %1902 = vmatpush.msra.mxu0 0.0
        %1903 = vmatpush.msra.mxu0 0.0
        %1904 = vmatpush.msra.mxu0 0.0
        %1905 = vmatpush.msra.mxu0 0.0
        %1906 = vmatpush.msra.mxu0 0.0
        %1907 = vmatpush.msra.mxu0 %v1822
        %1908 = vmatpush.msra.mxu0 %v1821
        %1909 = vmatpush.msra.mxu0 %v1820
        %1910 = vmatpush.msra.mxu0 %v1819
        %1911 = vmatpush.msra.mxu0 %v1818
        %1912 = vmatpush.msra.mxu0 %v1817
        %1913 = vmatpush.msra.mxu0 %v1816
        %1914 = vmatpush.msra.mxu0 %v1815
        %1915 = vmatpush.msra.mxu0 %v1814
        %1916 = vmatpush.msra.mxu0 %v1813
        %1917 = vmatmul.f32.gmra.mxu0 %v1896
        %v1918 = vpop.f32.mrf.mxu0
        %v1919 = vadd.f32 %v1890, %v1918
        %1920 = vmatmul.f32.gmra.mxu0 %v1899
        %v1921 = vpop.f32.mrf.mxu0
        %v1922 = vadd.f32 %v1893, %v1921
        %1923 = vdwg.mxu0
        %s1924 = scalar_lea.vmem %s14, 32
        %v1925 = vld [vmem:[%s1924] sm:$0xff]
        %v1926 = vld [vmem:[%s1924 + $0x8] sm:$0x7f]
        %v1928 = vsel %vm1278, %v1925, 0
        %v1931 = vsel %vm1278, %v1926, 0
        %1933 = vmatpush.msra.mxu0 0.0
        %1934 = vmatpush.msra.mxu0 0.0
        %1935 = vmatpush.msra.mxu0 0.0
        %1936 = vmatpush.msra.mxu0 0.0
        %1937 = vmatpush.msra.mxu0 0.0
        %1938 = vmatpush.msra.mxu0 0.0
        %1939 = vmatpush.msra.mxu0 0.0
        %1940 = vmatpush.msra.mxu0 0.0
        %1941 = vmatpush.msra.mxu0 0.0
        %1942 = vmatpush.msra.mxu0 0.0
        %1943 = vmatpush.msra.mxu0 0.0
        %1944 = vmatpush.msra.mxu0 0.0
        %1945 = vmatpush.msra.mxu0 0.0
        %1946 = vmatpush.msra.mxu0 0.0
        %1947 = vmatpush.msra.mxu0 0.0
        %1948 = vmatpush.msra.mxu0 %v1788
        %1949 = vmatmul.f32.gmra.mxu0 %v1928
        %v1950 = vpop.f32.mrf.mxu0
        %v1951 = vadd.f32 0.0, %v1950
        %1952 = vmatmul.f32.gmra.mxu0 %v1931
        %v1953 = vpop.f32.mrf.mxu0
        %v1954 = vadd.f32 0.0, %v1953
        %1955 = vdwg.mxu0
        %s1956 = scalar_lea.vmem %s15, 160
        %v1957 = vld [vmem:[%s1956] sm:$0xff]
        %v1958 = vld [vmem:[%s1956 + $0x8] sm:$0xff]
        %v1959 = vld [vmem:[%s1956 + $0x10] sm:$0xff]
        %v1960 = vld [vmem:[%s1956 + $0x18] sm:$0xff]
        %v1961 = vld [vmem:[%s1956 + $0x20] sm:$0xff]
        %v1962 = vld [vmem:[%s1956 + $0x28] sm:$0xff]
        %v1963 = vld [vmem:[%s1956 + $0x30] sm:$0xff]
        %v1964 = vld [vmem:[%s1956 + $0x38] sm:$0xff]
        %v1965 = vld [vmem:[%s1956 + $0x40] sm:$0xff]
        %v1966 = vld [vmem:[%s1956 + $0x48] sm:$0xff]
        %v1968 = vsel %vm1352, %v1951, 0
        %v1971 = vsel %vm1352, %v1954, 0
        %1973 = vmatpush.msra.mxu0 0.0
        %1974 = vmatpush.msra.mxu0 0.0
        %1975 = vmatpush.msra.mxu0 0.0
        %1976 = vmatpush.msra.mxu0 0.0
        %1977 = vmatpush.msra.mxu0 0.0
        %1978 = vmatpush.msra.mxu0 0.0
        %1979 = vmatpush.msra.mxu0 %v1966
        %1980 = vmatpush.msra.mxu0 %v1965
        %1981 = vmatpush.msra.mxu0 %v1964
        %1982 = vmatpush.msra.mxu0 %v1963
        %1983 = vmatpush.msra.mxu0 %v1962
        %1984 = vmatpush.msra.mxu0 %v1961
        %1985 = vmatpush.msra.mxu0 %v1960
        %1986 = vmatpush.msra.mxu0 %v1959
        %1987 = vmatpush.msra.mxu0 %v1958
        %1988 = vmatpush.msra.mxu0 %v1957
        %1989 = vmatmul.f32.gmra.mxu0 %v1968
        %v1990 = vpop.f32.mrf.mxu0
        %v1991 = vadd.f32 0.0, %v1990
        %1992 = vmatmul.f32.gmra.mxu0 %v1971
        %v1993 = vpop.f32.mrf.mxu0
        %v1994 = vadd.f32 0.0, %v1993
        %1995 = vdwg.mxu0
        %v1996 = vadd.f32 %v1919, %v1991
        %v1997 = vadd.f32 %v1922, %v1994
        %s1998 = scalar_lea.vmem %s14, 48
        %v1999 = vld [vmem:[%s1998] sm:$0xff]
        %v2000 = vld [vmem:[%s1998 + $0x8] sm:$0x7f]
        %v2002 = vsel %vm1278, %v1999, 0
        %v2005 = vsel %vm1278, %v2000, 0
        %2007 = vmatpush.msra.mxu0 0.0
        %2008 = vmatpush.msra.mxu0 0.0
        %2009 = vmatpush.msra.mxu0 0.0
        %2010 = vmatpush.msra.mxu0 0.0
        %2011 = vmatpush.msra.mxu0 0.0
        %2012 = vmatpush.msra.mxu0 0.0
        %2013 = vmatpush.msra.mxu0 0.0
        %2014 = vmatpush.msra.mxu0 0.0
        %2015 = vmatpush.msra.mxu0 0.0
        %2016 = vmatpush.msra.mxu0 0.0
        %2017 = vmatpush.msra.mxu0 0.0
        %2018 = vmatpush.msra.mxu0 0.0
        %2019 = vmatpush.msra.mxu0 0.0
        %2020 = vmatpush.msra.mxu0 0.0
        %2021 = vmatpush.msra.mxu0 0.0
        %2022 = vmatpush.msra.mxu0 %v1788
        %2023 = vmatmul.f32.gmra.mxu0 %v2002
        %v2024 = vpop.f32.mrf.mxu0
        %v2025 = vadd.f32 0.0, %v2024
        %2026 = vmatmul.f32.gmra.mxu0 %v2005
        %v2027 = vpop.f32.mrf.mxu0
        %v2028 = vadd.f32 0.0, %v2027
        %2029 = vdwg.mxu0
        %s2030 = scalar_lea.vmem %s15, 240
        %v2031 = vld [vmem:[%s2030] sm:$0xff]
        %v2032 = vld [vmem:[%s2030 + $0x8] sm:$0xff]
        %v2033 = vld [vmem:[%s2030 + $0x10] sm:$0xff]
        %v2034 = vld [vmem:[%s2030 + $0x18] sm:$0xff]
        %v2035 = vld [vmem:[%s2030 + $0x20] sm:$0xff]
        %v2036 = vld [vmem:[%s2030 + $0x28] sm:$0xff]
        %v2037 = vld [vmem:[%s2030 + $0x30] sm:$0xff]
        %v2038 = vld [vmem:[%s2030 + $0x38] sm:$0xff]
        %v2039 = vld [vmem:[%s2030 + $0x40] sm:$0xff]
        %v2040 = vld [vmem:[%s2030 + $0x48] sm:$0xff]
        %v2042 = vsel %vm1352, %v2025, 0
        %v2045 = vsel %vm1352, %v2028, 0
        %2047 = vmatpush.msra.mxu0 0.0
        %2048 = vmatpush.msra.mxu0 0.0
        %2049 = vmatpush.msra.mxu0 0.0
        %2050 = vmatpush.msra.mxu0 0.0
        %2051 = vmatpush.msra.mxu0 0.0
        %2052 = vmatpush.msra.mxu0 0.0
        %2053 = vmatpush.msra.mxu0 %v2040
        %2054 = vmatpush.msra.mxu0 %v2039
        %2055 = vmatpush.msra.mxu0 %v2038
        %2056 = vmatpush.msra.mxu0 %v2037
        %2057 = vmatpush.msra.mxu0 %v2036
        %2058 = vmatpush.msra.mxu0 %v2035
        %2059 = vmatpush.msra.mxu0 %v2034
        %2060 = vmatpush.msra.mxu0 %v2033
        %2061 = vmatpush.msra.mxu0 %v2032
        %2062 = vmatpush.msra.mxu0 %v2031
        %2063 = vmatmul.f32.gmra.mxu0 %v2042
        %v2064 = vpop.f32.mrf.mxu0
        %v2065 = vadd.f32 0.0, %v2064
        %2066 = vmatmul.f32.gmra.mxu0 %v2045
        %v2067 = vpop.f32.mrf.mxu0
        %v2068 = vadd.f32 0.0, %v2067
        %2069 = vdwg.mxu0
        %v2070 = vadd.f32 %v1996, %v2065
        %v2071 = vadd.f32 %v1997, %v2068
        %s2072 = scalar_lea.vmem %s14, 64
        %v2073 = vld [vmem:[%s2072] sm:$0xff]
        %v2074 = vld [vmem:[%s2072 + $0x8] sm:$0x7f]
        %v2076 = vsel %vm1278, %v2073, 0
        %v2079 = vsel %vm1278, %v2074, 0
        %2081 = vmatpush.msra.mxu0 0.0
        %2082 = vmatpush.msra.mxu0 0.0
        %2083 = vmatpush.msra.mxu0 0.0
        %2084 = vmatpush.msra.mxu0 0.0
        %2085 = vmatpush.msra.mxu0 0.0
        %2086 = vmatpush.msra.mxu0 0.0
        %2087 = vmatpush.msra.mxu0 0.0
        %2088 = vmatpush.msra.mxu0 0.0
        %2089 = vmatpush.msra.mxu0 0.0
        %2090 = vmatpush.msra.mxu0 0.0
        %2091 = vmatpush.msra.mxu0 0.0
        %2092 = vmatpush.msra.mxu0 0.0
        %2093 = vmatpush.msra.mxu0 0.0
        %2094 = vmatpush.msra.mxu0 0.0
        %2095 = vmatpush.msra.mxu0 0.0
        %2096 = vmatpush.msra.mxu0 %v1788
        %2097 = vmatmul.f32.gmra.mxu0 %v2076
        %v2098 = vpop.f32.mrf.mxu0
        %v2099 = vadd.f32 0.0, %v2098
        %2100 = vmatmul.f32.gmra.mxu0 %v2079
        %v2101 = vpop.f32.mrf.mxu0
        %v2102 = vadd.f32 0.0, %v2101
        %2103 = vdwg.mxu0
        %s2104 = scalar_lea.vmem %s15, 320
        %v2105 = vld [vmem:[%s2104] sm:$0xff]
        %v2106 = vld [vmem:[%s2104 + $0x8] sm:$0xff]
        %v2107 = vld [vmem:[%s2104 + $0x10] sm:$0xff]
        %v2108 = vld [vmem:[%s2104 + $0x18] sm:$0xff]
        %v2109 = vld [vmem:[%s2104 + $0x20] sm:$0xff]
        %v2110 = vld [vmem:[%s2104 + $0x28] sm:$0xff]
        %v2111 = vld [vmem:[%s2104 + $0x30] sm:$0xff]
        %v2112 = vld [vmem:[%s2104 + $0x38] sm:$0xff]
        %v2113 = vld [vmem:[%s2104 + $0x40] sm:$0xff]
        %v2114 = vld [vmem:[%s2104 + $0x48] sm:$0xff]
        %v2116 = vsel %vm1352, %v2099, 0
        %v2119 = vsel %vm1352, %v2102, 0
        %2121 = vmatpush.msra.mxu0 0.0
        %2122 = vmatpush.msra.mxu0 0.0
        %2123 = vmatpush.msra.mxu0 0.0
        %2124 = vmatpush.msra.mxu0 0.0
        %2125 = vmatpush.msra.mxu0 0.0
        %2126 = vmatpush.msra.mxu0 0.0
        %2127 = vmatpush.msra.mxu0 %v2114
        %2128 = vmatpush.msra.mxu0 %v2113
        %2129 = vmatpush.msra.mxu0 %v2112
        %2130 = vmatpush.msra.mxu0 %v2111
        %2131 = vmatpush.msra.mxu0 %v2110
        %2132 = vmatpush.msra.mxu0 %v2109
        %2133 = vmatpush.msra.mxu0 %v2108
        %2134 = vmatpush.msra.mxu0 %v2107
        %2135 = vmatpush.msra.mxu0 %v2106
        %2136 = vmatpush.msra.mxu0 %v2105
        %2137 = vmatmul.f32.gmra.mxu0 %v2116
        %v2138 = vpop.f32.mrf.mxu0
        %v2139 = vadd.f32 0.0, %v2138
        %2140 = vmatmul.f32.gmra.mxu0 %v2119
        %v2141 = vpop.f32.mrf.mxu0
        %v2142 = vadd.f32 0.0, %v2141
        %2143 = vdwg.mxu0
        %v2144 = vadd.f32 %v2070, %v2139
        %v2145 = vadd.f32 %v2071, %v2142
        %v2146 = vld [vmem:[%s16] sm:$0x1]
        %v2148 = vperm.slane %v2146, 0
        %v2150 = vadd.f32 %v2144, %v2148
        %v2151 = vadd.f32 %v2145, %v2148
        %v2152 = vmax.f32 %v2150, 0.0
        %v2153 = vmax.f32 %v2151, 0.0
        %v2154 = vld [vmem:[%s17] sm:$0xff]
        %v2155 = vld [vmem:[%s17 + $0x8] sm:$0xff]
        %v2156 = vld [vmem:[%s17 + $0x10] sm:$0xff]
        %v2157 = vld [vmem:[%s17 + $0x18] sm:$0xf]
        %vm2158 = vcmask 121856
        %v2160 = vsel %vm2158, %v2154, 0
        %v2163 = vsel %vm2158, %v2155, 0
        %v2166 = vsel %vm2158, %v2156, 0
        %v2169 = vsel %vm2158, %v2157, 0
        %vm2171 = vcmask 1046528
        %v2173 = vsel %vm2171, %v2153, 0
        %2175 = vmatpush.msra.mxu0 0.0
        %2176 = vmatpush.msra.mxu0 0.0
        %2177 = vmatpush.msra.mxu0 0.0
        %2178 = vmatpush.msra.mxu0 0.0
        %2179 = vmatpush.msra.mxu0 0.0
        %2180 = vmatpush.msra.mxu0 0.0
        %2181 = vmatpush.msra.mxu0 0.0
        %2182 = vmatpush.msra.mxu0 0.0
        %2183 = vmatpush.msra.mxu0 0.0
        %2184 = vmatpush.msra.mxu0 0.0
        %2185 = vmatpush.msra.mxu0 0.0
        %2186 = vmatpush.msra.mxu0 0.0
        %2187 = vmatpush.msra.mxu0 0.0
        %2188 = vmatpush.msra.mxu0 0.0
        %2189 = vmatpush.msra.mxu0 %v2173
        %2190 = vmatpush.msra.mxu0 %v2152
        %2191 = vmatmul.f32.gmra.mxu0 %v2160
        %v2192 = vpop.f32.mrf.mxu0
        %v2193 = vadd.f32 0.0, %v2192
        %2194 = vmatmul.f32.gmra.mxu0 %v2163
        %v2195 = vpop.f32.mrf.mxu0
        %v2196 = vadd.f32 0.0, %v2195
        %2197 = vmatmul.f32.gmra.mxu0 %v2166
        %v2198 = vpop.f32.mrf.mxu0
        %v2199 = vadd.f32 0.0, %v2198
        %2200 = vmatmul.f32.gmra.mxu0 %v2169
        %v2201 = vpop.f32.mrf.mxu0
        %v2202 = vadd.f32 0.0, %v2201
        %2203 = vdwg.mxu0
        %v2204 = vld [vmem:[%s18] sm:$0xff]
        %v2205 = vld [vmem:[%s18 + $0x8] sm:$0xff]
        %v2206 = vld [vmem:[%s18 + $0x10] sm:$0xff]
        %v2207 = vld [vmem:[%s18 + $0x18] sm:$0xff]
        %v2208 = vld [vmem:[%s18 + $0x20] sm:$0xff]
        %v2209 = vld [vmem:[%s18 + $0x28] sm:$0xff]
        %v2210 = vld [vmem:[%s18 + $0x30] sm:$0xff]
        %v2211 = vld [vmem:[%s18 + $0x38] sm:$0xff]
        %v2212 = vld [vmem:[%s18 + $0x40] sm:$0xff]
        %v2213 = vld [vmem:[%s18 + $0x48] sm:$0xff]
        %v2214 = vld [vmem:[%s18 + $0x50] sm:$0xff]
        %v2215 = vld [vmem:[%s18 + $0x58] sm:$0xff]
        %v2216 = vld [vmem:[%s18 + $0x60] sm:$0xff]
        %v2217 = vld [vmem:[%s18 + $0x68] sm:$0xff]
        %v2218 = vld [vmem:[%s18 + $0x70] sm:$0xff]
        %s2219 = scalar_lea.vmem %s17, 32
        %v2220 = vld [vmem:[%s2219] sm:$0xff]
        %v2221 = vld [vmem:[%s2219 + $0x8] sm:$0xff]
        %v2222 = vld [vmem:[%s2219 + $0x10] sm:$0xff]
        %v2223 = vld [vmem:[%s2219 + $0x18] sm:$0xf]
        %v2225 = vsel %vm2158, %v2220, 0
        %v2228 = vsel %vm2158, %v2221, 0
        %v2231 = vsel %vm2158, %v2222, 0
        %v2234 = vsel %vm2158, %v2223, 0
        %2236 = vmatpush.msra.mxu0 0.0
        %2237 = vmatpush.msra.mxu0 0.0
        %2238 = vmatpush.msra.mxu0 0.0
        %2239 = vmatpush.msra.mxu0 0.0
        %2240 = vmatpush.msra.mxu0 0.0
        %2241 = vmatpush.msra.mxu0 0.0
        %2242 = vmatpush.msra.mxu0 0.0
        %2243 = vmatpush.msra.mxu0 0.0
        %2244 = vmatpush.msra.mxu0 0.0
        %2245 = vmatpush.msra.mxu0 0.0
        %2246 = vmatpush.msra.mxu0 0.0
        %2247 = vmatpush.msra.mxu0 0.0
        %2248 = vmatpush.msra.mxu0 0.0
        %2249 = vmatpush.msra.mxu0 0.0
        %2250 = vmatpush.msra.mxu0 %v2173
        %2251 = vmatpush.msra.mxu0 %v2152
        %2252 = vmatmul.f32.gmra.mxu0 %v2225
        %v2253 = vpop.f32.mrf.mxu0
        %v2254 = vadd.f32 0.0, %v2253
        %2255 = vmatmul.f32.gmra.mxu0 %v2228
        %v2256 = vpop.f32.mrf.mxu0
        %v2257 = vadd.f32 0.0, %v2256
        %2258 = vmatmul.f32.gmra.mxu0 %v2231
        %v2259 = vpop.f32.mrf.mxu0
        %v2260 = vadd.f32 0.0, %v2259
        %2261 = vmatmul.f32.gmra.mxu0 %v2234
        %v2262 = vpop.f32.mrf.mxu0
        %v2263 = vadd.f32 0.0, %v2262
        %2264 = vdwg.mxu0
        %s2265 = scalar_lea.vmem %s18, 120
        %v2266 = vld [vmem:[%s2265] sm:$0xff]
        %v2267 = vld [vmem:[%s2265 + $0x8] sm:$0xff]
        %v2268 = vld [vmem:[%s2265 + $0x10] sm:$0xff]
        %v2269 = vld [vmem:[%s2265 + $0x18] sm:$0xff]
        %v2270 = vld [vmem:[%s2265 + $0x20] sm:$0xff]
        %v2271 = vld [vmem:[%s2265 + $0x28] sm:$0xff]
        %v2272 = vld [vmem:[%s2265 + $0x30] sm:$0xff]
        %v2273 = vld [vmem:[%s2265 + $0x38] sm:$0xff]
        %v2274 = vld [vmem:[%s2265 + $0x40] sm:$0xff]
        %v2275 = vld [vmem:[%s2265 + $0x48] sm:$0xff]
        %v2276 = vld [vmem:[%s2265 + $0x50] sm:$0xff]
        %v2277 = vld [vmem:[%s2265 + $0x58] sm:$0xff]
        %v2278 = vld [vmem:[%s2265 + $0x60] sm:$0xff]
        %v2279 = vld [vmem:[%s2265 + $0x68] sm:$0xff]
        %v2280 = vld [vmem:[%s2265 + $0x70] sm:$0xff]
        %vm2281 = vcmask 982016
        %v2283 = vsel %vm2281, %v2254, 0
        %v2286 = vsel %vm2281, %v2257, 0
        %v2289 = vsel %vm2281, %v2260, 0
        %v2292 = vsel %vm2281, %v2263, 0
        %2294 = vmatpush.msra.mxu0 0.0
        %2295 = vmatpush.msra.mxu0 %v2280
        %2296 = vmatpush.msra.mxu0 %v2279
        %2297 = vmatpush.msra.mxu0 %v2278
        %2298 = vmatpush.msra.mxu0 %v2277
        %2299 = vmatpush.msra.mxu0 %v2276
        %2300 = vmatpush.msra.mxu0 %v2275
        %2301 = vmatpush.msra.mxu0 %v2274
        %2302 = vmatpush.msra.mxu0 %v2273
        %2303 = vmatpush.msra.mxu0 %v2272
        %2304 = vmatpush.msra.mxu0 %v2271
        %2305 = vmatpush.msra.mxu0 %v2270
        %2306 = vmatpush.msra.mxu0 %v2269
        %2307 = vmatpush.msra.mxu0 %v2268
        %2308 = vmatpush.msra.mxu0 %v2267
        %2309 = vmatpush.msra.mxu0 %v2266
        %2310 = vmatmul.f32.gmra.mxu0 %v2283
        %v2311 = vpop.f32.mrf.mxu0
        %v2312 = vadd.f32 0.0, %v2311
        %2313 = vmatmul.f32.gmra.mxu0 %v2286
        %v2314 = vpop.f32.mrf.mxu0
        %v2315 = vadd.f32 0.0, %v2314
        %2316 = vmatmul.f32.gmra.mxu0 %v2289
        %v2317 = vpop.f32.mrf.mxu0
        %v2318 = vadd.f32 0.0, %v2317
        %2319 = vmatmul.f32.gmra.mxu0 %v2292
        %v2320 = vpop.f32.mrf.mxu0
        %v2321 = vadd.f32 0.0, %v2320
        %2322 = vdwg.mxu0
        %v2324 = vsel %vm2281, %v2193, 0
        %v2327 = vsel %vm2281, %v2196, 0
        %v2330 = vsel %vm2281, %v2199, 0
        %v2333 = vsel %vm2281, %v2202, 0
        %2335 = vmatpush.msra.mxu0 0.0
        %2336 = vmatpush.msra.mxu0 %v2218
        %2337 = vmatpush.msra.mxu0 %v2217
        %2338 = vmatpush.msra.mxu0 %v2216
        %2339 = vmatpush.msra.mxu0 %v2215
        %2340 = vmatpush.msra.mxu0 %v2214
        %2341 = vmatpush.msra.mxu0 %v2213
        %2342 = vmatpush.msra.mxu0 %v2212
        %2343 = vmatpush.msra.mxu0 %v2211
        %2344 = vmatpush.msra.mxu0 %v2210
        %2345 = vmatpush.msra.mxu0 %v2209
        %2346 = vmatpush.msra.mxu0 %v2208
        %2347 = vmatpush.msra.mxu0 %v2207
        %2348 = vmatpush.msra.mxu0 %v2206
        %2349 = vmatpush.msra.mxu0 %v2205
        %2350 = vmatpush.msra.mxu0 %v2204
        %2351 = vmatmul.f32.gmra.mxu0 %v2324
        %v2352 = vpop.f32.mrf.mxu0
        %v2353 = vadd.f32 %v2312, %v2352
        %2354 = vmatmul.f32.gmra.mxu0 %v2327
        %v2355 = vpop.f32.mrf.mxu0
        %v2356 = vadd.f32 %v2315, %v2355
        %2357 = vmatmul.f32.gmra.mxu0 %v2330
        %v2358 = vpop.f32.mrf.mxu0
        %v2359 = vadd.f32 %v2318, %v2358
        %2360 = vmatmul.f32.gmra.mxu0 %v2333
        %v2361 = vpop.f32.mrf.mxu0
        %v2362 = vadd.f32 %v2321, %v2361
        %2363 = vdwg.mxu0
        %v2364 = vld [vmem:[%s19] sm:$0x1]
        %v2366 = vperm.slane %v2364, 0
        %v2368 = vadd.f32 %v2353, %v2366
        %v2369 = vadd.f32 %v2356, %v2366
        %v2370 = vadd.f32 %v2359, %v2366
        %v2371 = vadd.f32 %v2362, %v2366
        %v2372 = vsub.f32 0.0, %v2368
        %v2373 = vsub.f32 0.0, %v2369
        %v2374 = vsub.f32 0.0, %v2370
        %v2375 = vsub.f32 0.0, %v2371
        %v2376 = vmul.f32 %v2372, 1.442695
        %v2377 = vpow.pop %v2376
        %v2378 = vmul.f32 %v2373, 1.442695
        %v2379 = vpow.pop %v2378
        %v2380 = vmul.f32 %v2374, 1.442695
        %v2381 = vpow.pop %v2380
        %v2382 = vmul.f32 %v2375, 1.442695
        %v2383 = vpow.pop %v2382
        %v2384 = vadd.f32 %v2377, 1.0
        %v2385 = vadd.f32 %v2379, 1.0
        %v2386 = vadd.f32 %v2381, 1.0
        %v2387 = vadd.f32 %v2383, 1.0
        %v2388 = vrcp.pop %v2384
        %v2389 = vmul.f32 %v2384, %v2388
        %v2390 = vsub.f32 1.0, %v2389
        %v2391 = vmul.f32 %v2388, %v2390
        %v2392 = vadd.f32 %v2388, %v2391
        %vm2393 = vweird.f32 %v2384
        %vm2394 = vweird.f32 %v2388
        %vm2395 = vmor %vm2393, %vm2394
        %v2396 = vsel %vm2395, %v2388, %v2392
        %v2397 = vand.u32 2147483647, %v2384
        %vm2398 = vcmp.eq.f32.partialorder %v2397, 8.507059e+37
        %v2399 = vand.u32 %v2384, 2147483648
        %v2400 = vor.u32 1.1754944e-38, %v2399
        %v2401 = vsel %vm2398, %v2400, %v2396
        %v2402 = vmul.f32 1.0, %v2401
        %v2403 = vrcp.pop %v2385
        %v2404 = vmul.f32 %v2385, %v2403
        %v2405 = vsub.f32 1.0, %v2404
        %v2406 = vmul.f32 %v2403, %v2405
        %v2407 = vadd.f32 %v2403, %v2406
        %vm2408 = vweird.f32 %v2385
        %vm2409 = vweird.f32 %v2403
        %vm2410 = vmor %vm2408, %vm2409
        %v2411 = vsel %vm2410, %v2403, %v2407
        %v2412 = vand.u32 2147483647, %v2385
        %vm2413 = vcmp.eq.f32.partialorder %v2412, 8.507059e+37
        %v2414 = vand.u32 %v2385, 2147483648
        %v2415 = vor.u32 1.1754944e-38, %v2414
        %v2416 = vsel %vm2413, %v2415, %v2411
        %v2417 = vmul.f32 1.0, %v2416
        %v2418 = vrcp.pop %v2386
        %v2419 = vmul.f32 %v2386, %v2418
        %v2420 = vsub.f32 1.0, %v2419
        %v2421 = vmul.f32 %v2418, %v2420
        %v2422 = vadd.f32 %v2418, %v2421
        %vm2423 = vweird.f32 %v2386
        %vm2424 = vweird.f32 %v2418
        %vm2425 = vmor %vm2423, %vm2424
        %v2426 = vsel %vm2425, %v2418, %v2422
        %v2427 = vand.u32 2147483647, %v2386
        %vm2428 = vcmp.eq.f32.partialorder %v2427, 8.507059e+37
        %v2429 = vand.u32 %v2386, 2147483648
        %v2430 = vor.u32 1.1754944e-38, %v2429
        %v2431 = vsel %vm2428, %v2430, %v2426
        %v2432 = vmul.f32 1.0, %v2431
        %v2433 = vrcp.pop %v2387
        %v2434 = vmul.f32 %v2387, %v2433
        %v2435 = vsub.f32 1.0, %v2434
        %v2436 = vmul.f32 %v2433, %v2435
        %v2437 = vadd.f32 %v2433, %v2436
        %vm2438 = vweird.f32 %v2387
        %vm2439 = vweird.f32 %v2433
        %vm2440 = vmor %vm2438, %vm2439
        %v2441 = vsel %vm2440, %v2433, %v2437
        %v2442 = vand.u32 2147483647, %v2387
        %vm2443 = vcmp.eq.f32.partialorder %v2442, 8.507059e+37
        %v2444 = vand.u32 %v2387, 2147483648
        %v2445 = vor.u32 1.1754944e-38, %v2444
        %v2446 = vsel %vm2443, %v2445, %v2441
        %v2447 = vmul.f32 1.0, %v2446
        %2448 = vst.msk [vmem:[%s646] sm:$0xff] %vm653, %v2402
        %2449 = vst.msk [vmem:[%s646 + $0x8] sm:$0xff] %vm653, %v2417
        %2450 = vst.msk [vmem:[%s646 + $0x10] sm:$0xff] %vm653, %v2432
        %vm2451 = vcmask 224256
        %2452 = vst.msk [vmem:[%s646 + $0x18] sm:$0xf] %vm2451, %v2447
        %p2453 = scmp.lt.s32.totalorder %s32, 1
        %s2454 = scalar_select %p2453, %s32, 1
        %s2455 = smul.addr %s2454, 4
        %s2456 = smul.addr %s2455, 8
        %s2457 = scalar_lea.vmem %s20, %s2456
        // Predicated region
        $region105: #{encoder_model_forward.1} parent=99 // pred_check
          %p2458 = pneg %p475
        $region106: #{encoder_model_forward.1} parent=99 // pred_check_branch
          %2460 = sbr.rel (%p2458) target = $region108
        $region107: #{encoder_model_forward.1} parent=99 // pred_region
          _
        $region108: #{encoder_model_forward.1} parent=99 // pred_fallthru
          _
      $region100: #{encoder_model_forward.1} parent=5 // pred_fallthru
        _
      %p2461 = scmp.le.s32.totalorder 2, %s27
      // Predicated region
      $region109: #{encoder_model_forward.1} parent=5 // pred_check
        %p2462 = pneg %p2461
      $region110: #{encoder_model_forward.1} parent=5 // pred_check_branch
        %2464 = sbr.rel (%p2462) target = $region112
      $region111: #{encoder_model_forward.1} parent=5 // pred_region
        %s2465 = ssub.s32 %s27, 2
        // Predicated region
        $region113: #{encoder_model_forward.1} parent=111 // pred_check
          %p2466 = pneg %p481
        $region114: #{encoder_model_forward.1} parent=111 // pred_check_branch
          %2468 = sbr.rel (%p2466) target = $region116
        $region115: #{encoder_model_forward.1} parent=111 // pred_region
          %p2469 = scmp.lt.s32.totalorder %s33, 1
          %s2470 = scalar_select %p2469, %s33, 1
          %s2471 = smul.addr %s2470, 4
          %s2472 = smul.addr %s2471, 8
          %s2473 = scalar_lea.vmem %s20, %s2472
        $region116: #{encoder_model_forward.1} parent=111 // pred_fallthru
          _
      $region112: #{encoder_model_forward.1} parent=5 // pred_fallthru
        _
    $region6: #{encoder_model_forward.1} parent=1 // loop_footer
      %s31 = sadd.s32 1, %s27
    $region7: #{encoder_model_forward.1} parent=1 // loop_footer_branch
      %26 = sbr.rel target = $region3
    $region8: #{encoder_model_forward.1} parent=1 // loop_exit
      _
    %2474 = vsyncpa [#allocation3], 1
    %s2475 = scalar_lea.sflag [#allocation3], 1
    %2476 = vsyncpa %s2475, 1

</llo_original>
